<compile_context>
chip_gen: v7x
topology: tpu7x:2x2x1
jax: 0.10.0
libtpu: 0.0.40
codegen_flags: <defaults>
</compile_context>

<pallas_src>
import jax
import jax.numpy as jnp
import numpy as np
from jax import lax
from jax.experimental import pallas as pl
from jax.experimental.pallas import tpu as pltpu


def _round_up(x, m):
    return (x + m - 1) // m * m


# ----------------------------- Pallas kernel -------------------------------
def _topdown_kernel(c_ref, ct_ref, cb_ref, pw_ref, pt_ref, pb_ref,
                    wlat_ref, lsc_ref, lsh_ref, wconv_ref, csc_ref, csh_ref,
                    o_ref):
    """One (batch, row-slab) tile.

    c_ref   : (1, TH, W, Cin) bf16   lateral input rows of this slab
    ct/cb   : (1, 1,  W, Cin) bf16   clamped halo rows i*TH-1 / (i+1)*TH
    pw_ref  : (1, THH, W, F)  bf16   half-height, W-upsampled top-down rows
    pt/pb   : (1, 1,  W, F)   bf16   clamped half-height halo rows
    wlat_ref: (Cin, F)        bf16   1x1 lateral conv weight
    lsc/lsh : (1, F)          f32    folded BN for the lateral conv
    wconv   : (9, F, F)       bf16   3x3 conv weight, tap-major (kh*3+kw)
    csc/csh : (1, F)          f32    folded BN for the 3x3 conv
    o_ref   : (1, TH, W, F)   bf16
    """
    TH, W, Cin = c_ref.shape[1], c_ref.shape[2], c_ref.shape[3]
    THH = pw_ref.shape[1]
    F_ = o_ref.shape[3]
    R = TH + 2
    Wp = _round_up(W + 2, 8)          # padded width (multiple of 8 -> free reshapes)

    # ---- lat = BN(Conv1x1(c)) over the slab rows + 1-row halo on each side ----
    c_all = jnp.concatenate([ct_ref[0], c_ref[0], cb_ref[0]], axis=0)   # (R, W, Cin)
    if Cin <= 8:
        # tiny Cin: a K=Cin MXU contraction wastes >95% of a pass -> VPU MACs.
        # TODO(synk): for a real tiny-Cin deployment, present c lane-dense
        # (fold Cin into W) instead of Cin on the 128-lane minor dim.
        lat = jnp.zeros((R, W, F_), jnp.float32)
        for ci in range(Cin):
            lat = lat + (c_all[:, :, ci:ci + 1].astype(jnp.float32) *
                         wlat_ref[ci:ci + 1, :].astype(jnp.float32).reshape(1, 1, F_))
    else:
        lat = jnp.dot(c_all.reshape(R * W, Cin), wlat_ref[...],
                      preferred_element_type=jnp.float32).reshape(R, W, F_)
    lat = lat * lsc_ref[...].reshape(1, 1, F_) + lsh_ref[...].reshape(1, 1, F_)

    # ---- H half of the 2x bilinear upsample (fused), + lat, + boundary zero ----
    # p_ext rows q = 0..THH+1 are half-res rows (i*THH - 1 + q), edge-clamped.
    p_ext = jnp.concatenate([pt_ref[0], pw_ref[0], pb_ref[0]],
                            axis=0).astype(jnp.float32)                 # (THH+2, W, F)
    tvalid = jnp.where(pl.program_id(1) == 0, 0.0, 1.0)
    bvalid = jnp.where(pl.program_id(1) == pl.num_programs(1) - 1, 0.0, 1.0)

    # full-res row g = i*TH - 1 + r for r = 0..R-1:
    #   r = 0      (odd type)  : 0.75*p[q0] + 0.25*p[q0+1]   (conv pad row at top)
    #   r = 1+2s   (even type) : 0.25*p[q0+s] + 0.75*p[q0+s+1]
    #   r = 2+2s   (odd type)  : 0.75*p[q0+s+1] + 0.25*p[q0+s+2]
    #   r = R-1    (even type) : 0.25*p[THH] + 0.75*p[THH+1]  (conv pad row at bottom)
    x_top = (0.75 * p_ext[0:1] + 0.25 * p_ext[1:2] + lat[0:1]) * tvalid
    x_bot = (0.25 * p_ext[THH:THH + 1] + 0.75 * p_ext[THH + 1:THH + 2]
             + lat[R - 1:R]) * bvalid
    even = 0.25 * p_ext[0:THH] + 0.75 * p_ext[1:THH + 1]
    odd = 0.75 * p_ext[1:THH + 1] + 0.25 * p_ext[2:THH + 2]
    x_mid = jnp.stack([even, odd], axis=1).reshape(TH, W, F_) + lat[1:TH + 1]

    # one concat builds the conv input rows + one trailing zero row (keeps the
    # max tap offset of the flattened view in bounds)
    zrow = jnp.zeros((1, W, F_), jnp.float32)
    x = jnp.concatenate([x_top, x_mid, x_bot, zrow], axis=0)            # (R+1, W, F)

    # ---- W-pad once (real zeros -> 'same' padding), flatten, 9 K=F MXU dots ----
    parts = [jnp.zeros((R + 1, 1, F_), jnp.bfloat16), x.astype(jnp.bfloat16)]
    if Wp > W + 1:
        parts.append(jnp.zeros((R + 1, Wp - W - 1, F_), jnp.bfloat16))
    xp = jnp.concatenate(parts, axis=1)                                 # (R+1, Wp, F)
    x_flat = xp.reshape((R + 1) * Wp, F_)

    M = TH * Wp
    y = None
    for kh in range(3):
        for kw in range(3):
            off = kh * Wp + kw                                          # static offset
            d = jnp.dot(x_flat[off:off + M, :], wconv_ref[kh * 3 + kw],
                        preferred_element_type=jnp.float32)
            y = d if y is None else y + d                               # f32 accumulate

    # ---- folded BN + ReLU; drop junk pad columns; single bf16 store ----
    y = jnp.maximum(y * csc_ref[...] + csh_ref[...], 0.0)
    o_ref[0] = y.reshape(TH, Wp, F_)[:, :W, :].astype(o_ref.dtype)


# ------------------------------- glue ---------------------------------------
def _up2x_along(x, axis):
    """Exact 2x bilinear upsample (half-pixel centers == PyTorch
    F.interpolate(..., mode='bilinear', align_corners=False)) along one axis."""
    n = x.shape[axis]
    sl = lambda s, e: lax.slice_in_dim(x, s, e, axis=axis)
    prev = jnp.concatenate([sl(0, 1), sl(0, n - 1)], axis=axis)
    nxt = jnp.concatenate([sl(1, n), sl(n - 1, n)], axis=axis)
    even = 0.75 * x + 0.25 * prev
    odd = 0.75 * x + 0.25 * nxt
    out = jnp.stack([even, odd], axis=axis + 1)
    shp = list(x.shape)
    shp[axis] = 2 * n
    return out.reshape(shp)


def _bilinear_up2x(x):
    # full 2D upsample -- reference path only; the kernel fuses the H half.
    return _up2x_along(_up2x_along(x, 1), 2)


def _vmem_capacity_bytes():
    try:
        return int(pltpu.get_tpu_info().vmem_capacity_bytes)
    except Exception:
        return 0  # unknown -> conservative defaults


def _pick_tile_h(N, H, W, Cin, F_):
    """Largest even row-slab height TH dividing H whose working set fits a
    generation-aware VMEM budget, shrunk (if possible) until the grid is long
    enough to feed both TensorCores."""
    cap = _vmem_capacity_bytes()
    big = cap >= 128 * 1024 * 1024               # v5e/v6e; v7x has 64 MiB per TC
    budget = (40 if big else 16) * 1024 * 1024
    # rough per-full-res-row working set: double-buffered bf16 c / half-height
    # p_w / bf16 out + in-kernel f32/bf16 slab temporaries.
    per_row = W * (4 * Cin + 28 * F_) + 256
    cap_rows = max(2, budget // per_row)
    divs = [t for t in range(2, min(H, 128) + 1, 2)
            if H % t == 0 and t <= cap_rows]
    th = max(divs) if divs else 2
    while th > 4 and N * (H // th) < 8:
        smaller = [t for t in divs if t < th]
        if not smaller:
            break
        th = max(smaller)
    return th


def _topdown_forward(c_nchw, p_nchw, params, tile_h=None):
    N, Cin, H, W = c_nchw.shape
    F_ = params["w_lat"].shape[1]
    Np, Fp, Hh, Wh = p_nchw.shape
    assert Np == N and Fp == F_ and H == 2 * Hh and W == 2 * Wh, "shape mismatch"

    TH = _pick_tile_h(N, H, W, Cin, F_) if tile_h is None else int(tile_h)
    assert TH % 2 == 0 and H % TH == 0, f"tile_h={TH} must be even and divide H={H}"
    THH = TH // 2
    nT = H // TH

    # NCHW -> NHWC (channels on the 128-lane minor dim); bf16 MXU inputs.
    # TODO(synk): F not a multiple of 128 (toy F=32) leaves lanes underused;
    # production F=256 is lane-dense.
    c = jnp.transpose(c_nchw, (0, 2, 3, 1)).astype(jnp.bfloat16)        # (N, H, W, Cin)
    p = jnp.transpose(p_nchw, (0, 2, 3, 1)).astype(jnp.float32)         # (N, Hh, Wh, F)
    # Only the W half of the bilinear upsample runs in XLA glue (the even/odd
    # lane interleave has no clean Mosaic lowering); it runs at half height and
    # is stored bf16, so its HBM round trip is half of the old full-res p_up.
    p_w = _up2x_along(p, 2).astype(jnp.bfloat16)                        # (N, Hh, W, F)

    w_lat = params["w_lat"].astype(jnp.bfloat16)                        # (Cin, F)
    w_conv = params["w_conv_hwio"].reshape(9, F_, F_).astype(jnp.bfloat16)

    H_last, Hh_last = H - 1, Hh - 1

    grid_spec = pltpu.PrefetchScalarGridSpec(
        num_scalar_prefetch=0,
        grid=(N, nT),
        in_specs=[
            # c slab rows [i*TH, (i+1)*TH)
            pl.BlockSpec((1, TH, W, Cin), lambda n, i: (n, i, 0, 0)),
            # clamped halo rows i*TH-1 / (i+1)*TH (zeroed in-kernel at edges)
            pl.BlockSpec((1, 1, W, Cin),
                         lambda n, i: (n, jnp.maximum(i * TH - 1, 0), 0, 0)),
            pl.BlockSpec((1, 1, W, Cin),
                         lambda n, i: (n, jnp.minimum((i + 1) * TH, H_last), 0, 0)),
            # half-height W-upsampled p slab rows [i*THH, (i+1)*THH)
            pl.BlockSpec((1, THH, W, F_), lambda n, i: (n, i, 0, 0)),
            # clamped 1-row halos (clamping == bilinear edge behaviour)
            pl.BlockSpec((1, 1, W, F_),
                         lambda n, i: (n, jnp.maximum(i * THH - 1, 0), 0, 0)),
            pl.BlockSpec((1, 1, W, F_),
                         lambda n, i: (n, jnp.minimum((i + 1) * THH, Hh_last), 0, 0)),
            # weights / folded-BN constants (constant block index -> no re-DMA)
            pl.BlockSpec((Cin, F_), lambda n, i: (0, 0)),
            pl.BlockSpec((1, F_), lambda n, i: (0, 0)),
            pl.BlockSpec((1, F_), lambda n, i: (0, 0)),
            pl.BlockSpec((9, F_, F_), lambda n, i: (0, 0, 0)),
            pl.BlockSpec((1, F_), lambda n, i: (0, 0)),
            pl.BlockSpec((1, F_), lambda n, i: (0, 0)),
        ],
        out_specs=pl.BlockSpec((1, TH, W, F_), lambda n, i: (n, i, 0, 0)),
    )

    cap = _vmem_capacity_bytes()
    vmem_limit = 64 * 1024 * 1024 if cap >= 128 * 1024 * 1024 else 32 * 1024 * 1024

    flops = int(2 * N * H * W * F_ * (Cin + 9 * F_))
    bytes_accessed = int(
        c.size * 2 + p_w.size * 2 + N * H * W * F_ * 2            # bf16 in / out
        + N * nT * 2 * W * (Cin + F_) * 2                          # halo re-reads
        + w_lat.size * 2 + w_conv.size * 2 + 4 * F_ * 4)

    out_nhwc = pl.pallas_call(
        _topdown_kernel,
        out_shape=jax.ShapeDtypeStruct((N, H, W, F_), jnp.bfloat16),
        grid_spec=grid_spec,
        compiler_params=pltpu.CompilerParams(
            dimension_semantics=("parallel", "parallel"),
            vmem_limit_bytes=vmem_limit),
        cost_estimate=pl.CostEstimate(
            flops=flops, transcendentals=0, bytes_accessed=bytes_accessed),
    )(c, c, c, p_w, p_w, p_w,
      w_lat, params["lat_scale"], params["lat_shift"],
      w_conv, params["conv_scale"], params["conv_shift"])

    # back to NCHW; output stays bf16 (documented numerics change vs f32).
    return jnp.transpose(out_nhwc, (0, 3, 1, 2))


topdown_forward = jax.jit(_topdown_forward, static_argnames=("tile_h",))


# --------------------------- parameter setup --------------------------------
def init_params(key, in_channels, f_channels, eps=1e-5):
    ks = jax.random.split(key, 10)
    w_lat = 0.1 * jax.random.normal(ks[0], (in_channels, f_channels), jnp.float32)

    lat_gamma = 1.0 + 0.1 * jax.random.normal(ks[1], (f_channels,), jnp.float32)
    lat_beta = 0.1 * jax.random.normal(ks[2], (f_channels,), jnp.float32)
    lat_mean = 0.1 * jax.random.normal(ks[3], (f_channels,), jnp.float32)
    lat_var = jnp.abs(jax.random.normal(ks[4], (f_channels,), jnp.float32)) + 0.5
    lat_scale = lat_gamma / jnp.sqrt(lat_var + eps)
    lat_shift = lat_beta - lat_mean * lat_scale

    w_conv = 0.05 * jax.random.normal(
        ks[5], (3, 3, f_channels, f_channels), jnp.float32)             # HWIO
    conv_gamma = 1.0 + 0.1 * jax.random.normal(ks[6], (f_channels,), jnp.float32)
    conv_beta = 0.1 * jax.random.normal(ks[7], (f_channels,), jnp.float32)
    conv_mean = 0.1 * jax.random.normal(ks[8], (f_channels,), jnp.float32)
    conv_var = jnp.abs(jax.random.normal(ks[9], (f_channels,), jnp.float32)) + 0.5
    conv_scale = conv_gamma / jnp.sqrt(conv_var + eps)
    conv_shift = conv_beta - conv_mean * conv_scale

    return {
        "w_lat": w_lat,
        "lat_scale": lat_scale.reshape(1, f_channels),
        "lat_shift": lat_shift.reshape(1, f_channels),
        "w_conv_hwio": w_conv,
        "conv_scale": conv_scale.reshape(1, f_channels),
        "conv_shift": conv_shift.reshape(1, f_channels),
    }


# ----------------------------- pure-JAX reference ---------------------------
def topdown_reference(c_nchw, p_nchw, params):
    c = jnp.transpose(c_nchw, (0, 2, 3, 1)).astype(jnp.float32)
    p = jnp.transpose(p_nchw, (0, 2, 3, 1)).astype(jnp.float32)
    Cin = c.shape[-1]
    F_ = params["w_lat"].shape[1]
    lat = lax.conv_general_dilated(
        c, params["w_lat"].reshape(1, 1, Cin, F_), (1, 1), "VALID",
        dimension_numbers=("NHWC", "HWIO", "NHWC"))
    lat = lat * params["lat_scale"] + params["lat_shift"]
    x = _bilinear_up2x(p) + lat
    y = lax.conv_general_dilated(
        x, params["w_conv_hwio"], (1, 1), "SAME",
        dimension_numbers=("NHWC", "HWIO", "NHWC"))
    y = y * params["conv_scale"] + params["conv_shift"]
    y = jnp.maximum(y, 0.0)
    return jnp.transpose(y, (0, 3, 1, 2))


if __name__ == "__main__":
    key = jax.random.PRNGKey(0)
    k_c, k_p, k_params = jax.random.split(key, 3)

    N, Cin, H, W = 2, 4, 16, 16
    F_ = 32

    params = init_params(k_params, Cin, F_)
    c = jax.random.normal(k_c, (N, Cin, H, W), jnp.float32)             # NCHW (PyTorch)
    p = jax.random.normal(k_p, (N, F_, H // 2, W // 2), jnp.float32)    # NCHW (PyTorch)

    ref = np.asarray(topdown_reference(c, p, params))

    # explicit multi-slab path: exercises clamped halos + fused H-upsample seams
    out_tiled = jax.block_until_ready(topdown_forward(c, p, params, tile_h=8))
    assert out_tiled.shape == (N, F_, H, W)
    np.testing.assert_allclose(np.asarray(out_tiled.astype(jnp.float32)), ref,
                               rtol=2e-2, atol=2e-2)

    # auto-picked (generation-aware) tile size
    out_auto = jax.block_until_ready(topdown_forward(c, p, params))
    np.testing.assert_allclose(np.asarray(out_auto.astype(jnp.float32)), ref,
                               rtol=2e-2, atol=2e-2)

    print("KERNEL_OK")
</pallas_src>

<mosaic_0001>
module attributes {stable_mosaic.version = 11 : i64} {
  func.func @_topdown_kernel(%arg0: i32, %arg1: i32, %arg2: memref<1x8x16x4xbf16, #tpu.memory_space<vmem>>, %arg3: memref<1x1x16x4xbf16, #tpu.memory_space<vmem>>, %arg4: memref<1x1x16x4xbf16, #tpu.memory_space<vmem>>, %arg5: memref<1x4x16x32xbf16, #tpu.memory_space<vmem>>, %arg6: memref<1x1x16x32xbf16, #tpu.memory_space<vmem>>, %arg7: memref<1x1x16x32xbf16, #tpu.memory_space<vmem>>, %arg8: memref<4x32xbf16, #tpu.memory_space<vmem>>, %arg9: memref<1x32xf32, #tpu.memory_space<vmem>>, %arg10: memref<1x32xf32, #tpu.memory_space<vmem>>, %arg11: memref<9x32x32xbf16, #tpu.memory_space<vmem>>, %arg12: memref<1x32xf32, #tpu.memory_space<vmem>>, %arg13: memref<1x32xf32, #tpu.memory_space<vmem>>, %arg14: memref<1x8x16x32xbf16, #tpu.memory_space<vmem>>) attributes {dimension_semantics = [#tpu.dimension_semantics<parallel>, #tpu.dimension_semantics<parallel>], iteration_bounds = array<i64: 2, 2>, scalar_prefetch = 0 : i64, scratch_operands = 0 : i64, tpu.core_type = #tpu.core_type<tc>, window_params = [{transform_indices = @transform_0, window_bounds = array<i64: 1, 8, 16, 4>}, {transform_indices = @transform_1, window_bounds = array<i64: 1, 1, 16, 4>}, {transform_indices = @transform_2, window_bounds = array<i64: 1, 1, 16, 4>}, {transform_indices = @transform_3, window_bounds = array<i64: 1, 4, 16, 32>}, {transform_indices = @transform_4, window_bounds = array<i64: 1, 1, 16, 32>}, {transform_indices = @transform_5, window_bounds = array<i64: 1, 1, 16, 32>}, {pipeline_mode = #tpu.pipeline_mode<synchronous>, transform_indices = @transform_6, window_bounds = array<i64: 4, 32>}, {pipeline_mode = #tpu.pipeline_mode<synchronous>, transform_indices = @transform_7, window_bounds = array<i64: 1, 32>}, {pipeline_mode = #tpu.pipeline_mode<synchronous>, transform_indices = @transform_8, window_bounds = array<i64: 1, 32>}, {pipeline_mode = #tpu.pipeline_mode<synchronous>, transform_indices = @transform_9, window_bounds = array<i64: 9, 32, 32>}, {pipeline_mode = #tpu.pipeline_mode<synchronous>, transform_indices = @transform_10, window_bounds = array<i64: 1, 32>}, {pipeline_mode = #tpu.pipeline_mode<synchronous>, transform_indices = @transform_11, window_bounds = array<i64: 1, 32>}, {transform_indices = @transform_12, window_bounds = array<i64: 1, 8, 16, 32>}]} {
    %c0 = arith.constant 0 : index
    %c0_0 = arith.constant 0 : index
    %c0_1 = arith.constant 0 : index
    %c0_2 = arith.constant 0 : index
    %0 = vector.load %arg3[%c0, %c0_0, %c0_1, %c0_2] : memref<1x1x16x4xbf16, #tpu.memory_space<vmem>>, vector<1x1x16x4xbf16>
    %1 = vector.shape_cast %0 : vector<1x1x16x4xbf16> to vector<1x16x4xbf16>
    %c0_3 = arith.constant 0 : index
    %c0_4 = arith.constant 0 : index
    %c0_5 = arith.constant 0 : index
    %c0_6 = arith.constant 0 : index
    %2 = vector.load %arg2[%c0_3, %c0_4, %c0_5, %c0_6] : memref<1x8x16x4xbf16, #tpu.memory_space<vmem>>, vector<1x8x16x4xbf16>
    %3 = vector.shape_cast %2 : vector<1x8x16x4xbf16> to vector<8x16x4xbf16>
    %c0_7 = arith.constant 0 : index
    %c0_8 = arith.constant 0 : index
    %c0_9 = arith.constant 0 : index
    %c0_10 = arith.constant 0 : index
    %4 = vector.load %arg4[%c0_7, %c0_8, %c0_9, %c0_10] : memref<1x1x16x4xbf16, #tpu.memory_space<vmem>>, vector<1x1x16x4xbf16>
    %5 = vector.shape_cast %4 : vector<1x1x16x4xbf16> to vector<1x16x4xbf16>
    %6 = tpu.concatenate %1, %3, %5 in 0 : vector<1x16x4xbf16>, vector<8x16x4xbf16>, vector<1x16x4xbf16> -> vector<10x16x4xbf16>
    %cst = arith.constant 0.000000e+00 : f32
    %7 = vector.broadcast %cst : f32 to vector<10x16x32xf32>
    %8 = vector.extract_strided_slice %6 {offsets = [0, 0, 0], sizes = [10, 16, 1], strides = [1, 1, 1]} : vector<10x16x4xbf16> to vector<10x16x1xbf16>
    %9 = arith.extf %8 : vector<10x16x1xbf16> to vector<10x16x1xf32>
    %c0_11 = arith.constant 0 : index
    %c0_12 = arith.constant 0 : index
    %10 = vector.load %arg8[%c0_11, %c0_12] : memref<4x32xbf16, #tpu.memory_space<vmem>>, vector<1x32xbf16>
    %11 = arith.extf %10 : vector<1x32xbf16> to vector<1x32xf32>
    %12 = vector.shape_cast %11 : vector<1x32xf32> to vector<1x1x32xf32>
    %13 = vector.broadcast %9 : vector<10x16x1xf32> to vector<10x16x32xf32>
    %14 = vector.broadcast %12 : vector<1x1x32xf32> to vector<10x16x32xf32>
    %15 = arith.mulf %13, %14 : vector<10x16x32xf32>
    %16 = arith.addf %7, %15 : vector<10x16x32xf32>
    %17 = vector.extract_strided_slice %6 {offsets = [0, 0, 1], sizes = [10, 16, 1], strides = [1, 1, 1]} : vector<10x16x4xbf16> to vector<10x16x1xbf16>
    %18 = arith.extf %17 : vector<10x16x1xbf16> to vector<10x16x1xf32>
    %c1 = arith.constant 1 : index
    %c0_13 = arith.constant 0 : index
    %19 = vector.load %arg8[%c1, %c0_13] : memref<4x32xbf16, #tpu.memory_space<vmem>>, vector<1x32xbf16>
    %20 = arith.extf %19 : vector<1x32xbf16> to vector<1x32xf32>
    %21 = vector.shape_cast %20 : vector<1x32xf32> to vector<1x1x32xf32>
    %22 = vector.broadcast %18 : vector<10x16x1xf32> to vector<10x16x32xf32>
    %23 = vector.broadcast %21 : vector<1x1x32xf32> to vector<10x16x32xf32>
    %24 = arith.mulf %22, %23 : vector<10x16x32xf32>
    %25 = arith.addf %16, %24 : vector<10x16x32xf32>
    %26 = vector.extract_strided_slice %6 {offsets = [0, 0, 2], sizes = [10, 16, 1], strides = [1, 1, 1]} : vector<10x16x4xbf16> to vector<10x16x1xbf16>
    %27 = arith.extf %26 : vector<10x16x1xbf16> to vector<10x16x1xf32>
    %c2 = arith.constant 2 : index
    %c0_14 = arith.constant 0 : index
    %28 = vector.load %arg8[%c2, %c0_14] : memref<4x32xbf16, #tpu.memory_space<vmem>>, vector<1x32xbf16>
    %29 = arith.extf %28 : vector<1x32xbf16> to vector<1x32xf32>
    %30 = vector.shape_cast %29 : vector<1x32xf32> to vector<1x1x32xf32>
    %31 = vector.broadcast %27 : vector<10x16x1xf32> to vector<10x16x32xf32>
    %32 = vector.broadcast %30 : vector<1x1x32xf32> to vector<10x16x32xf32>
    %33 = arith.mulf %31, %32 : vector<10x16x32xf32>
    %34 = arith.addf %25, %33 : vector<10x16x32xf32>
    %35 = vector.extract_strided_slice %6 {offsets = [0, 0, 3], sizes = [10, 16, 1], strides = [1, 1, 1]} : vector<10x16x4xbf16> to vector<10x16x1xbf16>
    %36 = arith.extf %35 : vector<10x16x1xbf16> to vector<10x16x1xf32>
    %c3 = arith.constant 3 : index
    %c0_15 = arith.constant 0 : index
    %37 = vector.load %arg8[%c3, %c0_15] : memref<4x32xbf16, #tpu.memory_space<vmem>>, vector<1x32xbf16>
    %38 = arith.extf %37 : vector<1x32xbf16> to vector<1x32xf32>
    %39 = vector.shape_cast %38 : vector<1x32xf32> to vector<1x1x32xf32>
    %40 = vector.broadcast %36 : vector<10x16x1xf32> to vector<10x16x32xf32>
    %41 = vector.broadcast %39 : vector<1x1x32xf32> to vector<10x16x32xf32>
    %42 = arith.mulf %40, %41 : vector<10x16x32xf32>
    %43 = arith.addf %34, %42 : vector<10x16x32xf32>
    %c0_16 = arith.constant 0 : index
    %c0_17 = arith.constant 0 : index
    %44 = vector.load %arg9[%c0_16, %c0_17] : memref<1x32xf32, #tpu.memory_space<vmem>>, vector<1x32xf32>
    %45 = vector.shape_cast %44 : vector<1x32xf32> to vector<1x1x32xf32>
    %46 = vector.broadcast %45 : vector<1x1x32xf32> to vector<10x16x32xf32>
    %47 = arith.mulf %43, %46 : vector<10x16x32xf32>
    %c0_18 = arith.constant 0 : index
    %c0_19 = arith.constant 0 : index
    %48 = vector.load %arg10[%c0_18, %c0_19] : memref<1x32xf32, #tpu.memory_space<vmem>>, vector<1x32xf32>
    %49 = vector.shape_cast %48 : vector<1x32xf32> to vector<1x1x32xf32>
    %50 = vector.broadcast %49 : vector<1x1x32xf32> to vector<10x16x32xf32>
    %51 = arith.addf %47, %50 : vector<10x16x32xf32>
    %c0_20 = arith.constant 0 : index
    %c0_21 = arith.constant 0 : index
    %c0_22 = arith.constant 0 : index
    %c0_23 = arith.constant 0 : index
    %52 = vector.load %arg6[%c0_20, %c0_21, %c0_22, %c0_23] : memref<1x1x16x32xbf16, #tpu.memory_space<vmem>>, vector<1x1x16x32xbf16>
    %53 = vector.shape_cast %52 : vector<1x1x16x32xbf16> to vector<1x16x32xbf16>
    %c0_24 = arith.constant 0 : index
    %c0_25 = arith.constant 0 : index
    %c0_26 = arith.constant 0 : index
    %c0_27 = arith.constant 0 : index
    %54 = vector.load %arg5[%c0_24, %c0_25, %c0_26, %c0_27] : memref<1x4x16x32xbf16, #tpu.memory_space<vmem>>, vector<1x4x16x32xbf16>
    %55 = vector.shape_cast %54 : vector<1x4x16x32xbf16> to vector<4x16x32xbf16>
    %c0_28 = arith.constant 0 : index
    %c0_29 = arith.constant 0 : index
    %c0_30 = arith.constant 0 : index
    %c0_31 = arith.constant 0 : index
    %56 = vector.load %arg7[%c0_28, %c0_29, %c0_30, %c0_31] : memref<1x1x16x32xbf16, #tpu.memory_space<vmem>>, vector<1x1x16x32xbf16>
    %57 = vector.shape_cast %56 : vector<1x1x16x32xbf16> to vector<1x16x32xbf16>
    %58 = tpu.concatenate %53, %55, %57 in 0 : vector<1x16x32xbf16>, vector<4x16x32xbf16>, vector<1x16x32xbf16> -> vector<6x16x32xbf16>
    %59 = arith.extf %58 : vector<6x16x32xbf16> to vector<6x16x32xf32>
    %c0_i32 = arith.constant 0 : i32
    %60 = arith.cmpi eq, %arg1, %c0_i32 : i32
    %cst_32 = arith.constant 0.000000e+00 : f32
    %cst_33 = arith.constant 1.000000e+00 : f32
    %61 = arith.select %60, %cst_32, %cst_33 : f32
    %c1_i32 = arith.constant 1 : i32
    %62 = arith.cmpi eq, %arg1, %c1_i32 : i32
    %cst_34 = arith.constant 0.000000e+00 : f32
    %cst_35 = arith.constant 1.000000e+00 : f32
    %63 = arith.select %62, %cst_34, %cst_35 : f32
    %64 = vector.extract_strided_slice %59 {offsets = [0, 0, 0], sizes = [1, 16, 32], strides = [1, 1, 1]} : vector<6x16x32xf32> to vector<1x16x32xf32>
    %cst_36 = arith.constant 7.500000e-01 : f32
    %65 = vector.broadcast %cst_36 : f32 to vector<1x16x32xf32>
    %66 = arith.mulf %65, %64 : vector<1x16x32xf32>
    %67 = vector.extract_strided_slice %59 {offsets = [1, 0, 0], sizes = [1, 16, 32], strides = [1, 1, 1]} : vector<6x16x32xf32> to vector<1x16x32xf32>
    %cst_37 = arith.constant 2.500000e-01 : f32
    %68 = vector.broadcast %cst_37 : f32 to vector<1x16x32xf32>
    %69 = arith.mulf %68, %67 : vector<1x16x32xf32>
    %70 = arith.addf %66, %69 : vector<1x16x32xf32>
    %71 = vector.extract_strided_slice %51 {offsets = [0, 0, 0], sizes = [1, 16, 32], strides = [1, 1, 1]} : vector<10x16x32xf32> to vector<1x16x32xf32>
    %72 = arith.addf %70, %71 : vector<1x16x32xf32>
    %73 = vector.broadcast %61 : f32 to vector<1x16x32xf32>
    %74 = arith.mulf %72, %73 : vector<1x16x32xf32>
    %75 = vector.extract_strided_slice %59 {offsets = [4, 0, 0], sizes = [1, 16, 32], strides = [1, 1, 1]} : vector<6x16x32xf32> to vector<1x16x32xf32>
    %cst_38 = arith.constant 2.500000e-01 : f32
    %76 = vector.broadcast %cst_38 : f32 to vector<1x16x32xf32>
    %77 = arith.mulf %76, %75 : vector<1x16x32xf32>
    %78 = vector.extract_strided_slice %59 {offsets = [5, 0, 0], sizes = [1, 16, 32], strides = [1, 1, 1]} : vector<6x16x32xf32> to vector<1x16x32xf32>
    %cst_39 = arith.constant 7.500000e-01 : f32
    %79 = vector.broadcast %cst_39 : f32 to vector<1x16x32xf32>
    %80 = arith.mulf %79, %78 : vector<1x16x32xf32>
    %81 = arith.addf %77, %80 : vector<1x16x32xf32>
    %82 = vector.extract_strided_slice %51 {offsets = [9, 0, 0], sizes = [1, 16, 32], strides = [1, 1, 1]} : vector<10x16x32xf32> to vector<1x16x32xf32>
    %83 = arith.addf %81, %82 : vector<1x16x32xf32>
    %84 = vector.broadcast %63 : f32 to vector<1x16x32xf32>
    %85 = arith.mulf %83, %84 : vector<1x16x32xf32>
    %86 = vector.extract_strided_slice %59 {offsets = [0, 0, 0], sizes = [4, 16, 32], strides = [1, 1, 1]} : vector<6x16x32xf32> to vector<4x16x32xf32>
    %cst_40 = arith.constant 2.500000e-01 : f32
    %87 = vector.broadcast %cst_40 : f32 to vector<4x16x32xf32>
    %88 = arith.mulf %87, %86 : vector<4x16x32xf32>
    %89 = vector.extract_strided_slice %59 {offsets = [1, 0, 0], sizes = [4, 16, 32], strides = [1, 1, 1]} : vector<6x16x32xf32> to vector<4x16x32xf32>
    %cst_41 = arith.constant 7.500000e-01 : f32
    %90 = vector.broadcast %cst_41 : f32 to vector<4x16x32xf32>
    %91 = arith.mulf %90, %89 : vector<4x16x32xf32>
    %92 = arith.addf %88, %91 : vector<4x16x32xf32>
    %93 = vector.extract_strided_slice %59 {offsets = [1, 0, 0], sizes = [4, 16, 32], strides = [1, 1, 1]} : vector<6x16x32xf32> to vector<4x16x32xf32>
    %cst_42 = arith.constant 7.500000e-01 : f32
    %94 = vector.broadcast %cst_42 : f32 to vector<4x16x32xf32>
    %95 = arith.mulf %94, %93 : vector<4x16x32xf32>
    %96 = vector.extract_strided_slice %59 {offsets = [2, 0, 0], sizes = [4, 16, 32], strides = [1, 1, 1]} : vector<6x16x32xf32> to vector<4x16x32xf32>
    %cst_43 = arith.constant 2.500000e-01 : f32
    %97 = vector.broadcast %cst_43 : f32 to vector<4x16x32xf32>
    %98 = arith.mulf %97, %96 : vector<4x16x32xf32>
    %99 = arith.addf %95, %98 : vector<4x16x32xf32>
    %100 = vector.shape_cast %92 : vector<4x16x32xf32> to vector<4x1x16x32xf32>
    %101 = vector.shape_cast %99 : vector<4x16x32xf32> to vector<4x1x16x32xf32>
    %102 = tpu.concatenate %100, %101 in 1 : vector<4x1x16x32xf32>, vector<4x1x16x32xf32> -> vector<4x2x16x32xf32>
    %103 = vector.shape_cast %102 : vector<4x2x16x32xf32> to vector<8x16x32xf32>
    %104 = vector.extract_strided_slice %51 {offsets = [1, 0, 0], sizes = [8, 16, 32], strides = [1, 1, 1]} : vector<10x16x32xf32> to vector<8x16x32xf32>
    %105 = arith.addf %103, %104 : vector<8x16x32xf32>
    %cst_44 = arith.constant 0.000000e+00 : f32
    %106 = vector.broadcast %cst_44 : f32 to vector<1x16x32xf32>
    %107 = tpu.concatenate %74, %105, %85, %106 in 0 : vector<1x16x32xf32>, vector<8x16x32xf32>, vector<1x16x32xf32>, vector<1x16x32xf32> -> vector<11x16x32xf32>
    %cst_45 = arith.constant 0.000000e+00 : bf16
    %108 = vector.broadcast %cst_45 : bf16 to vector<11x1x32xbf16>
    %109 = arith.truncf %107 : vector<11x16x32xf32> to vector<11x16x32xbf16>
    %cst_46 = arith.constant 0.000000e+00 : bf16
    %110 = vector.broadcast %cst_46 : bf16 to vector<11x7x32xbf16>
    %111 = tpu.concatenate %108, %109, %110 in 1 : vector<11x1x32xbf16>, vector<11x16x32xbf16>, vector<11x7x32xbf16> -> vector<11x24x32xbf16>
    %112 = vector.shape_cast %111 : vector<11x24x32xbf16> to vector<264x32xbf16>
    %113 = vector.extract_strided_slice %112 {offsets = [0, 0], sizes = [192, 32], strides = [1, 1]} : vector<264x32xbf16> to vector<192x32xbf16>
    %c0_47 = arith.constant 0 : index
    %c0_48 = arith.constant 0 : index
    %c0_49 = arith.constant 0 : index
    %114 = vector.load %arg11[%c0_47, %c0_48, %c0_49] : memref<9x32x32xbf16, #tpu.memory_space<vmem>>, vector<1x32x32xbf16>
    %115 = vector.shape_cast %114 : vector<1x32x32xbf16> to vector<32x32xbf16>
    %cst_50 = arith.constant dense<0.000000e+00> : vector<192x32xf32>
    %116 = tpu.matmul %113, %115, %cst_50 {dimension_numbers = #tpu.dot_dimension_numbers<[1], [0], [0], [1], [0, 0, 1, 1], [], []>} : vector<192x32xbf16>, vector<32x32xbf16>, vector<192x32xf32> -> vector<192x32xf32>
    %117 = vector.extract_strided_slice %112 {offsets = [1, 0], sizes = [192, 32], strides = [1, 1]} : vector<264x32xbf16> to vector<192x32xbf16>
    %c1_51 = arith.constant 1 : index
    %c0_52 = arith.constant 0 : index
    %c0_53 = arith.constant 0 : index
    %118 = vector.load %arg11[%c1_51, %c0_52, %c0_53] : memref<9x32x32xbf16, #tpu.memory_space<vmem>>, vector<1x32x32xbf16>
    %119 = vector.shape_cast %118 : vector<1x32x32xbf16> to vector<32x32xbf16>
    %cst_54 = arith.constant dense<0.000000e+00> : vector<192x32xf32>
    %120 = tpu.matmul %117, %119, %cst_54 {dimension_numbers = #tpu.dot_dimension_numbers<[1], [0], [0], [1], [0, 0, 1, 1], [], []>} : vector<192x32xbf16>, vector<32x32xbf16>, vector<192x32xf32> -> vector<192x32xf32>
    %121 = arith.addf %116, %120 : vector<192x32xf32>
    %122 = vector.extract_strided_slice %112 {offsets = [2, 0], sizes = [192, 32], strides = [1, 1]} : vector<264x32xbf16> to vector<192x32xbf16>
    %c2_55 = arith.constant 2 : index
    %c0_56 = arith.constant 0 : index
    %c0_57 = arith.constant 0 : index
    %123 = vector.load %arg11[%c2_55, %c0_56, %c0_57] : memref<9x32x32xbf16, #tpu.memory_space<vmem>>, vector<1x32x32xbf16>
    %124 = vector.shape_cast %123 : vector<1x32x32xbf16> to vector<32x32xbf16>
    %cst_58 = arith.constant dense<0.000000e+00> : vector<192x32xf32>
    %125 = tpu.matmul %122, %124, %cst_58 {dimension_numbers = #tpu.dot_dimension_numbers<[1], [0], [0], [1], [0, 0, 1, 1], [], []>} : vector<192x32xbf16>, vector<32x32xbf16>, vector<192x32xf32> -> vector<192x32xf32>
    %126 = arith.addf %121, %125 : vector<192x32xf32>
    %127 = vector.extract_strided_slice %112 {offsets = [24, 0], sizes = [192, 32], strides = [1, 1]} : vector<264x32xbf16> to vector<192x32xbf16>
    %c3_59 = arith.constant 3 : index
    %c0_60 = arith.constant 0 : index
    %c0_61 = arith.constant 0 : index
    %128 = vector.load %arg11[%c3_59, %c0_60, %c0_61] : memref<9x32x32xbf16, #tpu.memory_space<vmem>>, vector<1x32x32xbf16>
    %129 = vector.shape_cast %128 : vector<1x32x32xbf16> to vector<32x32xbf16>
    %cst_62 = arith.constant dense<0.000000e+00> : vector<192x32xf32>
    %130 = tpu.matmul %127, %129, %cst_62 {dimension_numbers = #tpu.dot_dimension_numbers<[1], [0], [0], [1], [0, 0, 1, 1], [], []>} : vector<192x32xbf16>, vector<32x32xbf16>, vector<192x32xf32> -> vector<192x32xf32>
    %131 = arith.addf %126, %130 : vector<192x32xf32>
    %132 = vector.extract_strided_slice %112 {offsets = [25, 0], sizes = [192, 32], strides = [1, 1]} : vector<264x32xbf16> to vector<192x32xbf16>
    %c4 = arith.constant 4 : index
    %c0_63 = arith.constant 0 : index
    %c0_64 = arith.constant 0 : index
    %133 = vector.load %arg11[%c4, %c0_63, %c0_64] : memref<9x32x32xbf16, #tpu.memory_space<vmem>>, vector<1x32x32xbf16>
    %134 = vector.shape_cast %133 : vector<1x32x32xbf16> to vector<32x32xbf16>
    %cst_65 = arith.constant dense<0.000000e+00> : vector<192x32xf32>
    %135 = tpu.matmul %132, %134, %cst_65 {dimension_numbers = #tpu.dot_dimension_numbers<[1], [0], [0], [1], [0, 0, 1, 1], [], []>} : vector<192x32xbf16>, vector<32x32xbf16>, vector<192x32xf32> -> vector<192x32xf32>
    %136 = arith.addf %131, %135 : vector<192x32xf32>
    %137 = vector.extract_strided_slice %112 {offsets = [26, 0], sizes = [192, 32], strides = [1, 1]} : vector<264x32xbf16> to vector<192x32xbf16>
    %c5 = arith.constant 5 : index
    %c0_66 = arith.constant 0 : index
    %c0_67 = arith.constant 0 : index
    %138 = vector.load %arg11[%c5, %c0_66, %c0_67] : memref<9x32x32xbf16, #tpu.memory_space<vmem>>, vector<1x32x32xbf16>
    %139 = vector.shape_cast %138 : vector<1x32x32xbf16> to vector<32x32xbf16>
    %cst_68 = arith.constant dense<0.000000e+00> : vector<192x32xf32>
    %140 = tpu.matmul %137, %139, %cst_68 {dimension_numbers = #tpu.dot_dimension_numbers<[1], [0], [0], [1], [0, 0, 1, 1], [], []>} : vector<192x32xbf16>, vector<32x32xbf16>, vector<192x32xf32> -> vector<192x32xf32>
    %141 = arith.addf %136, %140 : vector<192x32xf32>
    %142 = vector.extract_strided_slice %112 {offsets = [48, 0], sizes = [192, 32], strides = [1, 1]} : vector<264x32xbf16> to vector<192x32xbf16>
    %c6 = arith.constant 6 : index
    %c0_69 = arith.constant 0 : index
    %c0_70 = arith.constant 0 : index
    %143 = vector.load %arg11[%c6, %c0_69, %c0_70] : memref<9x32x32xbf16, #tpu.memory_space<vmem>>, vector<1x32x32xbf16>
    %144 = vector.shape_cast %143 : vector<1x32x32xbf16> to vector<32x32xbf16>
    %cst_71 = arith.constant dense<0.000000e+00> : vector<192x32xf32>
    %145 = tpu.matmul %142, %144, %cst_71 {dimension_numbers = #tpu.dot_dimension_numbers<[1], [0], [0], [1], [0, 0, 1, 1], [], []>} : vector<192x32xbf16>, vector<32x32xbf16>, vector<192x32xf32> -> vector<192x32xf32>
    %146 = arith.addf %141, %145 : vector<192x32xf32>
    %147 = vector.extract_strided_slice %112 {offsets = [49, 0], sizes = [192, 32], strides = [1, 1]} : vector<264x32xbf16> to vector<192x32xbf16>
    %c7 = arith.constant 7 : index
    %c0_72 = arith.constant 0 : index
    %c0_73 = arith.constant 0 : index
    %148 = vector.load %arg11[%c7, %c0_72, %c0_73] : memref<9x32x32xbf16, #tpu.memory_space<vmem>>, vector<1x32x32xbf16>
    %149 = vector.shape_cast %148 : vector<1x32x32xbf16> to vector<32x32xbf16>
    %cst_74 = arith.constant dense<0.000000e+00> : vector<192x32xf32>
    %150 = tpu.matmul %147, %149, %cst_74 {dimension_numbers = #tpu.dot_dimension_numbers<[1], [0], [0], [1], [0, 0, 1, 1], [], []>} : vector<192x32xbf16>, vector<32x32xbf16>, vector<192x32xf32> -> vector<192x32xf32>
    %151 = arith.addf %146, %150 : vector<192x32xf32>
    %152 = vector.extract_strided_slice %112 {offsets = [50, 0], sizes = [192, 32], strides = [1, 1]} : vector<264x32xbf16> to vector<192x32xbf16>
    %c8 = arith.constant 8 : index
    %c0_75 = arith.constant 0 : index
    %c0_76 = arith.constant 0 : index
    %153 = vector.load %arg11[%c8, %c0_75, %c0_76] : memref<9x32x32xbf16, #tpu.memory_space<vmem>>, vector<1x32x32xbf16>
    %154 = vector.shape_cast %153 : vector<1x32x32xbf16> to vector<32x32xbf16>
    %cst_77 = arith.constant dense<0.000000e+00> : vector<192x32xf32>
    %155 = tpu.matmul %152, %154, %cst_77 {dimension_numbers = #tpu.dot_dimension_numbers<[1], [0], [0], [1], [0, 0, 1, 1], [], []>} : vector<192x32xbf16>, vector<32x32xbf16>, vector<192x32xf32> -> vector<192x32xf32>
    %156 = arith.addf %151, %155 : vector<192x32xf32>
    %c0_78 = arith.constant 0 : index
    %c0_79 = arith.constant 0 : index
    %157 = vector.load %arg12[%c0_78, %c0_79] : memref<1x32xf32, #tpu.memory_space<vmem>>, vector<1x32xf32>
    %158 = vector.broadcast %157 : vector<1x32xf32> to vector<192x32xf32>
    %159 = arith.mulf %156, %158 : vector<192x32xf32>
    %c0_80 = arith.constant 0 : index
    %c0_81 = arith.constant 0 : index
    %160 = vector.load %arg13[%c0_80, %c0_81] : memref<1x32xf32, #tpu.memory_space<vmem>>, vector<1x32xf32>
    %161 = vector.broadcast %160 : vector<1x32xf32> to vector<192x32xf32>
    %162 = arith.addf %159, %161 : vector<192x32xf32>
    %cst_82 = arith.constant 0.000000e+00 : f32
    %163 = vector.broadcast %cst_82 : f32 to vector<192x32xf32>
    %164 = arith.maximumf %162, %163 : vector<192x32xf32>
    %165 = vector.shape_cast %164 : vector<192x32xf32> to vector<8x24x32xf32>
    %166 = vector.extract_strided_slice %165 {offsets = [0, 0, 0], sizes = [8, 16, 32], strides = [1, 1, 1]} : vector<8x24x32xf32> to vector<8x16x32xf32>
    %167 = arith.truncf %166 : vector<8x16x32xf32> to vector<8x16x32xbf16>
    %c0_83 = arith.constant 0 : index
    %c0_84 = arith.constant 0 : index
    %c0_85 = arith.constant 0 : index
    %c0_86 = arith.constant 0 : index
    %168 = vector.load %arg14[%c0_83, %c0_84, %c0_85, %c0_86] : memref<1x8x16x32xbf16, #tpu.memory_space<vmem>>, vector<1x8x16x32xbf16>
    %169 = vector.shape_cast %168 : vector<1x8x16x32xbf16> to vector<8x16x32xbf16>
    %170 = vector.shape_cast %167 : vector<8x16x32xbf16> to vector<1x8x16x32xbf16>
    tpu.vector_store %arg14[%c0_83, %c0_84, %c0_85, %c0_86], %170 {strides = array<i32>} : memref<1x8x16x32xbf16, #tpu.memory_space<vmem>>, vector<1x8x16x32xbf16>,
    return
  }
  func.func @transform_0(%arg0: i32, %arg1: i32) -> (i32, i32, i32, i32) {
    %c0_i32 = arith.constant 0 : i32
    %c0_i32_0 = arith.constant 0 : i32
    %c0_i32_1 = arith.constant 0 : i32
    return %arg0, %arg1, %c0_i32, %c0_i32_0 : i32, i32, i32, i32
  }
  func.func @transform_1(%arg0: i32, %arg1: i32) -> (i32, i32, i32, i32) {
    %c8_i32 = arith.constant 8 : i32
    %0 = arith.muli %arg1, %c8_i32 : i32
    %c1_i32 = arith.constant 1 : i32
    %1 = arith.subi %0, %c1_i32 : i32
    %c0_i32 = arith.constant 0 : i32
    %2 = arith.maxsi %1, %c0_i32 : i32
    %c0_i32_0 = arith.constant 0 : i32
    %c0_i32_1 = arith.constant 0 : i32
    %c0_i32_2 = arith.constant 0 : i32
    return %arg0, %2, %c0_i32_0, %c0_i32_1 : i32, i32, i32, i32
  }
  func.func @transform_2(%arg0: i32, %arg1: i32) -> (i32, i32, i32, i32) {
    %c1_i32 = arith.constant 1 : i32
    %0 = arith.addi %arg1, %c1_i32 : i32
    %c8_i32 = arith.constant 8 : i32
    %1 = arith.muli %0, %c8_i32 : i32
    %c15_i32 = arith.constant 15 : i32
    %2 = arith.minsi %1, %c15_i32 : i32
    %c0_i32 = arith.constant 0 : i32
    %c0_i32_0 = arith.constant 0 : i32
    %c0_i32_1 = arith.constant 0 : i32
    return %arg0, %2, %c0_i32, %c0_i32_0 : i32, i32, i32, i32
  }
  func.func @transform_3(%arg0: i32, %arg1: i32) -> (i32, i32, i32, i32) {
    %c0_i32 = arith.constant 0 : i32
    %c0_i32_0 = arith.constant 0 : i32
    %c0_i32_1 = arith.constant 0 : i32
    return %arg0, %arg1, %c0_i32, %c0_i32_0 : i32, i32, i32, i32
  }
  func.func @transform_4(%arg0: i32, %arg1: i32) -> (i32, i32, i32, i32) {
    %c4_i32 = arith.constant 4 : i32
    %0 = arith.muli %arg1, %c4_i32 : i32
    %c1_i32 = arith.constant 1 : i32
    %1 = arith.subi %0, %c1_i32 : i32
    %c0_i32 = arith.constant 0 : i32
    %2 = arith.maxsi %1, %c0_i32 : i32
    %c0_i32_0 = arith.constant 0 : i32
    %c0_i32_1 = arith.constant 0 : i32
    %c0_i32_2 = arith.constant 0 : i32
    return %arg0, %2, %c0_i32_0, %c0_i32_1 : i32, i32, i32, i32
  }
  func.func @transform_5(%arg0: i32, %arg1: i32) -> (i32, i32, i32, i32) {
    %c1_i32 = arith.constant 1 : i32
    %0 = arith.addi %arg1, %c1_i32 : i32
    %c4_i32 = arith.constant 4 : i32
    %1 = arith.muli %0, %c4_i32 : i32
    %c7_i32 = arith.constant 7 : i32
    %2 = arith.minsi %1, %c7_i32 : i32
    %c0_i32 = arith.constant 0 : i32
    %c0_i32_0 = arith.constant 0 : i32
    %c0_i32_1 = arith.constant 0 : i32
    return %arg0, %2, %c0_i32, %c0_i32_0 : i32, i32, i32, i32
  }
  func.func @transform_6(%arg0: i32, %arg1: i32) -> (i32, i32) {
    %c0_i32 = arith.constant 0 : i32
    %c0_i32_0 = arith.constant 0 : i32
    %c0_i32_1 = arith.constant 0 : i32
    return %c0_i32, %c0_i32_0 : i32, i32
  }
  func.func @transform_7(%arg0: i32, %arg1: i32) -> (i32, i32) {
    %c0_i32 = arith.constant 0 : i32
    %c0_i32_0 = arith.constant 0 : i32
    %c0_i32_1 = arith.constant 0 : i32
    return %c0_i32, %c0_i32_0 : i32, i32
  }
  func.func @transform_8(%arg0: i32, %arg1: i32) -> (i32, i32) {
    %c0_i32 = arith.constant 0 : i32
    %c0_i32_0 = arith.constant 0 : i32
    %c0_i32_1 = arith.constant 0 : i32
    return %c0_i32, %c0_i32_0 : i32, i32
  }
  func.func @transform_9(%arg0: i32, %arg1: i32) -> (i32, i32, i32) {
    %c0_i32 = arith.constant 0 : i32
    %c0_i32_0 = arith.constant 0 : i32
    %c0_i32_1 = arith.constant 0 : i32
    %c0_i32_2 = arith.constant 0 : i32
    return %c0_i32, %c0_i32_0, %c0_i32_1 : i32, i32, i32
  }
  func.func @transform_10(%arg0: i32, %arg1: i32) -> (i32, i32) {
    %c0_i32 = arith.constant 0 : i32
    %c0_i32_0 = arith.constant 0 : i32
    %c0_i32_1 = arith.constant 0 : i32
    return %c0_i32, %c0_i32_0 : i32, i32
  }
  func.func @transform_11(%arg0: i32, %arg1: i32) -> (i32, i32) {
    %c0_i32 = arith.constant 0 : i32
    %c0_i32_0 = arith.constant 0 : i32
    %c0_i32_1 = arith.constant 0 : i32
    return %c0_i32, %c0_i32_0 : i32, i32
  }
  func.func @transform_12(%arg0: i32, %arg1: i32) -> (i32, i32, i32, i32) {
    %c0_i32 = arith.constant 0 : i32
    %c0_i32_0 = arith.constant 0 : i32
    %c0_i32_1 = arith.constant 0 : i32
    return %arg0, %arg1, %c0_i32, %c0_i32_0 : i32, i32, i32, i32
  }
}

</mosaic_0001>

<llo_original>
// kernel: _topdown_forward.1
$region0: #{_topdown_forward.1}
  #allocation0 [shape = 'u32[]', space=smem, size = 0x4, offset = 0x4, fixed_abs, tag = 'smem constant byte address 0x4 - core index']
  #allocation1 [shape = 'u32[144,128]{1,0:T(1,128)}', space=vmem, size = 0x12000, scoped, tag = 'internal scratch']
  %s0 = inlined_call_operand.vmem [shape: bf16[2,16,16,4], index: 0, kind: input, shape index: {}, may-alias: {0,1,2}]
  %s1 = inlined_call_operand.vmem [shape: bf16[2,16,16,4], index: 1, kind: input, shape index: {}, may-alias: {0,1,2}]
  %s2 = inlined_call_operand.vmem [shape: bf16[2,16,16,4], index: 2, kind: input, shape index: {}, may-alias: {0,1,2}]
  %s3 = inlined_call_operand.vmem [shape: bf16[2,8,16,32], index: 3, kind: input, shape index: {}, may-alias: {3,4,5}]
  %s4 = inlined_call_operand.vmem [shape: bf16[2,8,16,32], index: 4, kind: input, shape index: {}, may-alias: {3,4,5}]
  %s5 = inlined_call_operand.vmem [shape: bf16[2,8,16,32], index: 5, kind: input, shape index: {}, may-alias: {3,4,5}]
  %s6 = inlined_call_operand.vmem [shape: bf16[4,32], index: 6, kind: input, shape index: {}]
  %s7 = inlined_call_operand.vmem [shape: f32[1,32], index: 7, kind: input, shape index: {}]
  %s8 = inlined_call_operand.vmem [shape: f32[1,32], index: 8, kind: input, shape index: {}]
  %s9 = inlined_call_operand.vmem [shape: bf16[9,32,32], index: 9, kind: input, shape index: {}]
  %s10 = inlined_call_operand.vmem [shape: f32[1,32], index: 10, kind: input, shape index: {}]
  %s11 = inlined_call_operand.vmem [shape: f32[1,32], index: 11, kind: input, shape index: {}]
  %s12 = inlined_call_operand.hbm [shape: bf16[2,16,16,32], index: 12, kind: output, shape index: {}]
  %s13 = sld [smem:[#allocation0]]
  $region81: #{_topdown_forward.1} parent=0
    _
  %s15 = ssub.s32 1, %s13
  %s16 = scalar_select 0, %s15, %s13
  $region1: #{_topdown_forward.1} parent=0
    #allocation2 [shape = 'u8[65536]{0}', space=vmem, size = 0x10000, scoped, tag = 'output window, operand 0']
    #allocation3 [shape = 's32[2]{0}', space=sflag, size = 0x8, scoped, tag = 'scoped memory for _topdown_forward.1']
    %17 = vsyncpa [#allocation3], 0
    %s18 = scalar_lea.sflag [#allocation3], 1
    %19 = vsyncpa %s18, 0
    loop: start=0, step=1, limit=6
    $region2: #{_topdown_forward.1} parent=1 // loop_pre_header
      _
    $region3: #{_topdown_forward.1} parent=1 // loop_header
      %s21 = sphi 0, %s25
      %p22 = scmp.ge.s32.totalorder %s21, 6
      %s28 = sphi 0, %s40
      %s29 = sphi 0, %s36
      %s30 = sphi 0, %s28
      %s31 = sphi 0, %s29
      %s32 = sphi 0, %s30
      %s33 = sphi 0, %s31
      %s45 = sphi 0, %s47
      %s48 = sphi 0, %s45
      %s49 = sphi 0, %s48
      %s65 = sphi 0, %s49
      %s81 = sphi 0, %s83
      %s84 = sphi 0, %s81
      %s85 = sphi 0, %s84
      %s101 = sphi 0, %s85
      %s117 = sphi 0, %s119
      %s120 = sphi 0, %s117
      %s121 = sphi 0, %s120
      %s137 = sphi 0, %s121
      %s145 = sphi 0, %s147
      %s148 = sphi 0, %s145
      %s149 = sphi 0, %s148
      %s165 = sphi 0, %s149
      %s181 = sphi 0, %s183
      %s184 = sphi 0, %s181
      %s185 = sphi 0, %s184
      %s201 = sphi 0, %s185
      %s217 = sphi 0, %s219
      %s220 = sphi 0, %s217
      %s221 = sphi 0, %s220
      %s237 = sphi 0, %s221
      %s241 = sphi 0, %s241
      %s243 = sphi 0, %s241
      %s244 = sphi 0, %s243
      %s258 = sphi 0, %s244
      %s262 = sphi 0, %s262
      %s264 = sphi 0, %s262
      %s265 = sphi 0, %s264
      %s279 = sphi 0, %s265
      %s283 = sphi 0, %s283
      %s285 = sphi 0, %s283
      %s286 = sphi 0, %s285
      %s300 = sphi 0, %s286
      %s304 = sphi 0, %s304
      %s306 = sphi 0, %s304
      %s307 = sphi 0, %s306
      %s321 = sphi 0, %s307
      %s325 = sphi 0, %s325
      %s327 = sphi 0, %s325
      %s328 = sphi 0, %s327
      %s342 = sphi 0, %s328
      %s346 = sphi 0, %s346
      %s348 = sphi 0, %s346
      %s349 = sphi 0, %s348
      %s363 = sphi 0, %s349
      %s371 = sphi 0, %s373
      %s374 = sphi 0, %s371
      %s375 = sphi 0, %s374
      %s391 = sphi 0, %s375
    $region4: #{_topdown_forward.1} parent=1 // loop_header_branch
      %24 = sbr.rel (%p22) target = $region8
    $region5: #{_topdown_forward.1} parent=1 // loop_body
      %s26 = ssub.s32 %s21, 1
      %s27 = ssub.s32 %s21, 2
      %s34 = sadd.s32 1, %s29
      %p35 = scmp.ge.s32.totalorder %s34, 2
      %s36 = scalar_select %p35, 0, %s34
      %s37 = sadd.s32 1, %s28
      %s38 = scalar_select %p35, %s37, %s28
      %p39 = scmp.ge.s32.totalorder %s38, 2
      %s40 = scalar_select %p39, 0, %s38
      %s41 = ssub.s32 %s28, %s40
      %s42 = ssub.s32 %s29, %s36
      %s43 = sor.u32 %s41, %s42
      %p44 = scmp.eq.s32.totalorder %s43, 0
      %s46 = sadd.s32 %s45, 1
      %s47 = scalar_select %p44, %s45, %s46
      %p50 = pneg %p44
      %p51 = scmp.eq.s32.totalorder %s21, 3
      %p52 = por %p50, %p51
      %p53 = scmp.ne.s32.totalorder %s45, %s48
      %p54 = scmp.eq.s32.totalorder %s21, 0
      %p55 = por %p53, %p54
      %p56 = scmp.ne.s32.totalorder %s45, %s48
      %p57 = scmp.eq.s32.totalorder %s26, 3
      %p58 = por %p56, %p57
      %p59 = scmp.ne.s32.totalorder %s48, %s49
      %p60 = scmp.eq.s32.totalorder %s26, 0
      %p61 = por %p59, %p60
      %p62 = scmp.ne.s32.totalorder %s48, %s49
      %p63 = scmp.eq.s32.totalorder %s27, 3
      %p64 = por %p62, %p63
      %p66 = scmp.ne.s32.totalorder %s49, %s65
      %p67 = scmp.eq.s32.totalorder %s27, 0
      %p68 = por %p66, %p67
      %s69 = smul.u32 %s29, 8
      %s70 = ssub.s32 %s69, 1
      %p71 = scmp.gt.s32.totalorder %s70, 0
      %s72 = scalar_select %p71, %s70, 0
      %s73 = smul.u32 %s36, 8
      %s74 = ssub.s32 %s73, 1
      %p75 = scmp.gt.s32.totalorder %s74, 0
      %s76 = scalar_select %p75, %s74, 0
      %s77 = ssub.s32 %s28, %s40
      %s78 = ssub.s32 %s72, %s76
      %s79 = sor.u32 %s77, %s78
      %p80 = scmp.eq.s32.totalorder %s79, 0
      %s82 = sadd.s32 %s81, 1
      %s83 = scalar_select %p80, %s81, %s82
      %p86 = pneg %p80
      %p87 = scmp.eq.s32.totalorder %s21, 3
      %p88 = por %p86, %p87
      %p89 = scmp.ne.s32.totalorder %s81, %s84
      %p90 = scmp.eq.s32.totalorder %s21, 0
      %p91 = por %p89, %p90
      %p92 = scmp.ne.s32.totalorder %s81, %s84
      %p93 = scmp.eq.s32.totalorder %s26, 3
      %p94 = por %p92, %p93
      %p95 = scmp.ne.s32.totalorder %s84, %s85
      %p96 = scmp.eq.s32.totalorder %s26, 0
      %p97 = por %p95, %p96
      %p98 = scmp.ne.s32.totalorder %s84, %s85
      %p99 = scmp.eq.s32.totalorder %s27, 3
      %p100 = por %p98, %p99
      %p102 = scmp.ne.s32.totalorder %s85, %s101
      %p103 = scmp.eq.s32.totalorder %s27, 0
      %p104 = por %p102, %p103
      %s105 = sadd.s32 %s29, 1
      %s106 = smul.u32 %s105, 8
      %p107 = scmp.lt.s32.totalorder %s106, 15
      %s108 = scalar_select %p107, %s106, 15
      %s109 = sadd.s32 %s36, 1
      %s110 = smul.u32 %s109, 8
      %p111 = scmp.lt.s32.totalorder %s110, 15
      %s112 = scalar_select %p111, %s110, 15
      %s113 = ssub.s32 %s28, %s40
      %s114 = ssub.s32 %s108, %s112
      %s115 = sor.u32 %s113, %s114
      %p116 = scmp.eq.s32.totalorder %s115, 0
      %s118 = sadd.s32 %s117, 1
      %s119 = scalar_select %p116, %s117, %s118
      %p122 = pneg %p116
      %p123 = scmp.eq.s32.totalorder %s21, 3
      %p124 = por %p122, %p123
      %p125 = scmp.ne.s32.totalorder %s117, %s120
      %p126 = scmp.eq.s32.totalorder %s21, 0
      %p127 = por %p125, %p126
      %p128 = scmp.ne.s32.totalorder %s117, %s120
      %p129 = scmp.eq.s32.totalorder %s26, 3
      %p130 = por %p128, %p129
      %p131 = scmp.ne.s32.totalorder %s120, %s121
      %p132 = scmp.eq.s32.totalorder %s26, 0
      %p133 = por %p131, %p132
      %p134 = scmp.ne.s32.totalorder %s120, %s121
      %p135 = scmp.eq.s32.totalorder %s27, 3
      %p136 = por %p134, %p135
      %p138 = scmp.ne.s32.totalorder %s121, %s137
      %p139 = scmp.eq.s32.totalorder %s27, 0
      %p140 = por %p138, %p139
      %s141 = ssub.s32 %s28, %s40
      %s142 = ssub.s32 %s29, %s36
      %s143 = sor.u32 %s141, %s142
      %p144 = scmp.eq.s32.totalorder %s143, 0
      %s146 = sadd.s32 %s145, 1
      %s147 = scalar_select %p144, %s145, %s146
      %p150 = pneg %p144
      %p151 = scmp.eq.s32.totalorder %s21, 3
      %p152 = por %p150, %p151
      %p153 = scmp.ne.s32.totalorder %s145, %s148
      %p154 = scmp.eq.s32.totalorder %s21, 0
      %p155 = por %p153, %p154
      %p156 = scmp.ne.s32.totalorder %s145, %s148
      %p157 = scmp.eq.s32.totalorder %s26, 3
      %p158 = por %p156, %p157
      %p159 = scmp.ne.s32.totalorder %s148, %s149
      %p160 = scmp.eq.s32.totalorder %s26, 0
      %p161 = por %p159, %p160
      %p162 = scmp.ne.s32.totalorder %s148, %s149
      %p163 = scmp.eq.s32.totalorder %s27, 3
      %p164 = por %p162, %p163
      %p166 = scmp.ne.s32.totalorder %s149, %s165
      %p167 = scmp.eq.s32.totalorder %s27, 0
      %p168 = por %p166, %p167
      %s169 = smul.u32 %s29, 4
      %s170 = ssub.s32 %s169, 1
      %p171 = scmp.gt.s32.totalorder %s170, 0
      %s172 = scalar_select %p171, %s170, 0
      %s173 = smul.u32 %s36, 4
      %s174 = ssub.s32 %s173, 1
      %p175 = scmp.gt.s32.totalorder %s174, 0
      %s176 = scalar_select %p175, %s174, 0
      %s177 = ssub.s32 %s28, %s40
      %s178 = ssub.s32 %s172, %s176
      %s179 = sor.u32 %s177, %s178
      %p180 = scmp.eq.s32.totalorder %s179, 0
      %s182 = sadd.s32 %s181, 1
      %s183 = scalar_select %p180, %s181, %s182
      %p186 = pneg %p180
      %p187 = scmp.eq.s32.totalorder %s21, 3
      %p188 = por %p186, %p187
      %p189 = scmp.ne.s32.totalorder %s181, %s184
      %p190 = scmp.eq.s32.totalorder %s21, 0
      %p191 = por %p189, %p190
      %p192 = scmp.ne.s32.totalorder %s181, %s184
      %p193 = scmp.eq.s32.totalorder %s26, 3
      %p194 = por %p192, %p193
      %p195 = scmp.ne.s32.totalorder %s184, %s185
      %p196 = scmp.eq.s32.totalorder %s26, 0
      %p197 = por %p195, %p196
      %p198 = scmp.ne.s32.totalorder %s184, %s185
      %p199 = scmp.eq.s32.totalorder %s27, 3
      %p200 = por %p198, %p199
      %p202 = scmp.ne.s32.totalorder %s185, %s201
      %p203 = scmp.eq.s32.totalorder %s27, 0
      %p204 = por %p202, %p203
      %s205 = sadd.s32 %s29, 1
      %s206 = smul.u32 %s205, 4
      %p207 = scmp.lt.s32.totalorder %s206, 7
      %s208 = scalar_select %p207, %s206, 7
      %s209 = sadd.s32 %s36, 1
      %s210 = smul.u32 %s209, 4
      %p211 = scmp.lt.s32.totalorder %s210, 7
      %s212 = scalar_select %p211, %s210, 7
      %s213 = ssub.s32 %s28, %s40
      %s214 = ssub.s32 %s208, %s212
      %s215 = sor.u32 %s213, %s214
      %p216 = scmp.eq.s32.totalorder %s215, 0
      %s218 = sadd.s32 %s217, 1
      %s219 = scalar_select %p216, %s217, %s218
      %p222 = pneg %p216
      %p223 = scmp.eq.s32.totalorder %s21, 3
      %p224 = por %p222, %p223
      %p225 = scmp.ne.s32.totalorder %s217, %s220
      %p226 = scmp.eq.s32.totalorder %s21, 0
      %p227 = por %p225, %p226
      %p228 = scmp.ne.s32.totalorder %s217, %s220
      %p229 = scmp.eq.s32.totalorder %s26, 3
      %p230 = por %p228, %p229
      %p231 = scmp.ne.s32.totalorder %s220, %s221
      %p232 = scmp.eq.s32.totalorder %s26, 0
      %p233 = por %p231, %p232
      %p234 = scmp.ne.s32.totalorder %s220, %s221
      %p235 = scmp.eq.s32.totalorder %s27, 3
      %p236 = por %p234, %p235
      %p238 = scmp.ne.s32.totalorder %s221, %s237
      %p239 = scmp.eq.s32.totalorder %s27, 0
      %p240 = por %p238, %p239
      %s242 = sadd.s32 %s241, 1
      %p245 = scmp.eq.s32.totalorder %s21, 3
      %p246 = scmp.ne.s32.totalorder %s241, %s243
      %p247 = scmp.eq.s32.totalorder %s21, 0
      %p248 = por %p246, %p247
      %p249 = scmp.ne.s32.totalorder %s241, %s243
      %p250 = scmp.eq.s32.totalorder %s26, 3
      %p251 = por %p249, %p250
      %p252 = scmp.ne.s32.totalorder %s243, %s244
      %p253 = scmp.eq.s32.totalorder %s26, 0
      %p254 = por %p252, %p253
      %p255 = scmp.ne.s32.totalorder %s243, %s244
      %p256 = scmp.eq.s32.totalorder %s27, 3
      %p257 = por %p255, %p256
      %p259 = scmp.ne.s32.totalorder %s244, %s258
      %p260 = scmp.eq.s32.totalorder %s27, 0
      %p261 = por %p259, %p260
      %s263 = sadd.s32 %s262, 1
      %p266 = scmp.eq.s32.totalorder %s21, 3
      %p267 = scmp.ne.s32.totalorder %s262, %s264
      %p268 = scmp.eq.s32.totalorder %s21, 0
      %p269 = por %p267, %p268
      %p270 = scmp.ne.s32.totalorder %s262, %s264
      %p271 = scmp.eq.s32.totalorder %s26, 3
      %p272 = por %p270, %p271
      %p273 = scmp.ne.s32.totalorder %s264, %s265
      %p274 = scmp.eq.s32.totalorder %s26, 0
      %p275 = por %p273, %p274
      %p276 = scmp.ne.s32.totalorder %s264, %s265
      %p277 = scmp.eq.s32.totalorder %s27, 3
      %p278 = por %p276, %p277
      %p280 = scmp.ne.s32.totalorder %s265, %s279
      %p281 = scmp.eq.s32.totalorder %s27, 0
      %p282 = por %p280, %p281
      %s284 = sadd.s32 %s283, 1
      %p287 = scmp.eq.s32.totalorder %s21, 3
      %p288 = scmp.ne.s32.totalorder %s283, %s285
      %p289 = scmp.eq.s32.totalorder %s21, 0
      %p290 = por %p288, %p289
      %p291 = scmp.ne.s32.totalorder %s283, %s285
      %p292 = scmp.eq.s32.totalorder %s26, 3
      %p293 = por %p291, %p292
      %p294 = scmp.ne.s32.totalorder %s285, %s286
      %p295 = scmp.eq.s32.totalorder %s26, 0
      %p296 = por %p294, %p295
      %p297 = scmp.ne.s32.totalorder %s285, %s286
      %p298 = scmp.eq.s32.totalorder %s27, 3
      %p299 = por %p297, %p298
      %p301 = scmp.ne.s32.totalorder %s286, %s300
      %p302 = scmp.eq.s32.totalorder %s27, 0
      %p303 = por %p301, %p302
      %s305 = sadd.s32 %s304, 1
      %p308 = scmp.eq.s32.totalorder %s21, 3
      %p309 = scmp.ne.s32.totalorder %s304, %s306
      %p310 = scmp.eq.s32.totalorder %s21, 0
      %p311 = por %p309, %p310
      %p312 = scmp.ne.s32.totalorder %s304, %s306
      %p313 = scmp.eq.s32.totalorder %s26, 3
      %p314 = por %p312, %p313
      %p315 = scmp.ne.s32.totalorder %s306, %s307
      %p316 = scmp.eq.s32.totalorder %s26, 0
      %p317 = por %p315, %p316
      %p318 = scmp.ne.s32.totalorder %s306, %s307
      %p319 = scmp.eq.s32.totalorder %s27, 3
      %p320 = por %p318, %p319
      %p322 = scmp.ne.s32.totalorder %s307, %s321
      %p323 = scmp.eq.s32.totalorder %s27, 0
      %p324 = por %p322, %p323
      %s326 = sadd.s32 %s325, 1
      %p329 = scmp.eq.s32.totalorder %s21, 3
      %p330 = scmp.ne.s32.totalorder %s325, %s327
      %p331 = scmp.eq.s32.totalorder %s21, 0
      %p332 = por %p330, %p331
      %p333 = scmp.ne.s32.totalorder %s325, %s327
      %p334 = scmp.eq.s32.totalorder %s26, 3
      %p335 = por %p333, %p334
      %p336 = scmp.ne.s32.totalorder %s327, %s328
      %p337 = scmp.eq.s32.totalorder %s26, 0
      %p338 = por %p336, %p337
      %p339 = scmp.ne.s32.totalorder %s327, %s328
      %p340 = scmp.eq.s32.totalorder %s27, 3
      %p341 = por %p339, %p340
      %p343 = scmp.ne.s32.totalorder %s328, %s342
      %p344 = scmp.eq.s32.totalorder %s27, 0
      %p345 = por %p343, %p344
      %s347 = sadd.s32 %s346, 1
      %p350 = scmp.eq.s32.totalorder %s21, 3
      %p351 = scmp.ne.s32.totalorder %s346, %s348
      %p352 = scmp.eq.s32.totalorder %s21, 0
      %p353 = por %p351, %p352
      %p354 = scmp.ne.s32.totalorder %s346, %s348
      %p355 = scmp.eq.s32.totalorder %s26, 3
      %p356 = por %p354, %p355
      %p357 = scmp.ne.s32.totalorder %s348, %s349
      %p358 = scmp.eq.s32.totalorder %s26, 0
      %p359 = por %p357, %p358
      %p360 = scmp.ne.s32.totalorder %s348, %s349
      %p361 = scmp.eq.s32.totalorder %s27, 3
      %p362 = por %p360, %p361
      %p364 = scmp.ne.s32.totalorder %s349, %s363
      %p365 = scmp.eq.s32.totalorder %s27, 0
      %p366 = por %p364, %p365
      %s367 = ssub.s32 %s28, %s40
      %s368 = ssub.s32 %s29, %s36
      %s369 = sor.u32 %s367, %s368
      %p370 = scmp.eq.s32.totalorder %s369, 0
      %s372 = sadd.s32 %s371, 1
      %s373 = scalar_select %p370, %s371, %s372
      %p376 = pneg %p370
      %p377 = scmp.eq.s32.totalorder %s21, 3
      %p378 = por %p376, %p377
      %p379 = scmp.ne.s32.totalorder %s371, %s374
      %p380 = scmp.eq.s32.totalorder %s21, 0
      %p381 = por %p379, %p380
      %p382 = scmp.ne.s32.totalorder %s371, %s374
      %p383 = scmp.eq.s32.totalorder %s26, 3
      %p384 = por %p382, %p383
      %p385 = scmp.ne.s32.totalorder %s374, %s375
      %p386 = scmp.eq.s32.totalorder %s26, 0
      %p387 = por %p385, %p386
      %p388 = scmp.ne.s32.totalorder %s374, %s375
      %p389 = scmp.eq.s32.totalorder %s27, 3
      %p390 = por %p388, %p389
      %p392 = scmp.ne.s32.totalorder %s375, %s391
      %p393 = scmp.eq.s32.totalorder %s27, 0
      %p394 = por %p392, %p393
      %p395 = scmp.le.s32.totalorder 1, %s21
      %p396 = scmp.lt.s32.totalorder %s21, 5
      %p397 = pnand %p395, %p396
      %p398 = pneg %p397
      // Predicated region
      $region9: #{_topdown_forward.1} parent=5 // pred_check
        _
      $region10: #{_topdown_forward.1} parent=5 // pred_check_branch
        %400 = sbr.rel (%p397) target = $region12
      $region11: #{_topdown_forward.1} parent=5 // pred_region
        %s401 = ssub.s32 %s21, 1
        // Predicated region
        $region13: #{_topdown_forward.1} parent=11 // pred_check
          %p402 = pneg %p254
        $region14: #{_topdown_forward.1} parent=11 // pred_check_branch
          %404 = sbr.rel (%p402) target = $region16
        $region15: #{_topdown_forward.1} parent=11 // pred_region
          _
        $region16: #{_topdown_forward.1} parent=11 // pred_fallthru
          _
        // Predicated region
        $region17: #{_topdown_forward.1} parent=11 // pred_check
          %p405 = pneg %p275
        $region18: #{_topdown_forward.1} parent=11 // pred_check_branch
          %407 = sbr.rel (%p405) target = $region20
        $region19: #{_topdown_forward.1} parent=11 // pred_region
          _
        $region20: #{_topdown_forward.1} parent=11 // pred_fallthru
          _
        // Predicated region
        $region21: #{_topdown_forward.1} parent=11 // pred_check
          %p408 = pneg %p296
        $region22: #{_topdown_forward.1} parent=11 // pred_check_branch
          %410 = sbr.rel (%p408) target = $region24
        $region23: #{_topdown_forward.1} parent=11 // pred_region
          _
        $region24: #{_topdown_forward.1} parent=11 // pred_fallthru
          _
        // Predicated region
        $region25: #{_topdown_forward.1} parent=11 // pred_check
          %p411 = pneg %p317
        $region26: #{_topdown_forward.1} parent=11 // pred_check_branch
          %413 = sbr.rel (%p411) target = $region28
        $region27: #{_topdown_forward.1} parent=11 // pred_region
          _
        $region28: #{_topdown_forward.1} parent=11 // pred_fallthru
          _
        // Predicated region
        $region29: #{_topdown_forward.1} parent=11 // pred_check
          %p414 = pneg %p338
        $region30: #{_topdown_forward.1} parent=11 // pred_check_branch
          %416 = sbr.rel (%p414) target = $region32
        $region31: #{_topdown_forward.1} parent=11 // pred_region
          _
        $region32: #{_topdown_forward.1} parent=11 // pred_fallthru
          _
        // Predicated region
        $region33: #{_topdown_forward.1} parent=11 // pred_check
          %p417 = pneg %p359
        $region34: #{_topdown_forward.1} parent=11 // pred_check_branch
          %419 = sbr.rel (%p417) target = $region36
        $region35: #{_topdown_forward.1} parent=11 // pred_region
          _
        $region36: #{_topdown_forward.1} parent=11 // pred_fallthru
          _
      $region12: #{_topdown_forward.1} parent=5 // pred_fallthru
        _
      %p420 = scmp.lt.s32.totalorder %s21, 4
      // Predicated region
      $region37: #{_topdown_forward.1} parent=5 // pred_check
        %p421 = pneg %p420
      $region38: #{_topdown_forward.1} parent=5 // pred_check_branch
        %423 = sbr.rel (%p421) target = $region40
      $region39: #{_topdown_forward.1} parent=5 // pred_region
        // Predicated region
        $region41: #{_topdown_forward.1} parent=39 // pred_check
          %p424 = pneg %p55
        $region42: #{_topdown_forward.1} parent=39 // pred_check_branch
          %426 = sbr.rel (%p424) target = $region44
        $region43: #{_topdown_forward.1} parent=39 // pred_region
          %s427 = smul.u32 8, %s29
          %p428 = scmp.lt.s32.totalorder %s28, 1
          %s429 = scalar_select %p428, %s28, 1
          %p430 = scmp.lt.s32.totalorder %s427, 15
          %s431 = scalar_select %p430, %s427, 15
          %s432 = smul.addr %s431, 2
          %s433 = smul.addr %s429, 32
          %s434 = sadd.s32 %s432, %s433
          %s435 = smul.addr %s434, 4
          %s436 = scalar_lea.vmem %s0, %s435
          %s437 = smul.u32 8, %s29
        $region44: #{_topdown_forward.1} parent=39 // pred_fallthru
          _
        // Predicated region
        $region45: #{_topdown_forward.1} parent=39 // pred_check
          %p438 = pneg %p91
        $region46: #{_topdown_forward.1} parent=39 // pred_check_branch
          %440 = sbr.rel (%p438) target = $region48
        $region47: #{_topdown_forward.1} parent=39 // pred_region
          %s441 = smul.u32 %s29, 8
          %s442 = ssub.s32 %s441, 1
          %p443 = scmp.gt.s32.totalorder %s442, 0
          %s444 = scalar_select %p443, %s442, 0
          %p445 = scmp.lt.s32.totalorder %s28, 1
          %s446 = scalar_select %p445, %s28, 1
          %p447 = scmp.lt.s32.totalorder %s444, 15
          %s448 = scalar_select %p447, %s444, 15
          %s449 = smul.addr %s448, 2
          %s450 = smul.addr %s446, 32
          %s451 = sadd.s32 %s449, %s450
          %s452 = smul.addr %s451, 4
          %s453 = scalar_lea.vmem %s1, %s452
          %s454 = smul.u32 %s29, 8
          %s455 = ssub.s32 %s454, 1
          %p456 = scmp.gt.s32.totalorder %s455, 0
          %s457 = scalar_select %p456, %s455, 0
        $region48: #{_topdown_forward.1} parent=39 // pred_fallthru
          _
        // Predicated region
        $region49: #{_topdown_forward.1} parent=39 // pred_check
          %p458 = pneg %p127
        $region50: #{_topdown_forward.1} parent=39 // pred_check_branch
          %460 = sbr.rel (%p458) target = $region52
        $region51: #{_topdown_forward.1} parent=39 // pred_region
          %s461 = sadd.s32 %s29, 1
          %s462 = smul.u32 %s461, 8
          %p463 = scmp.lt.s32.totalorder %s462, 15
          %s464 = scalar_select %p463, %s462, 15
          %p465 = scmp.lt.s32.totalorder %s28, 1
          %s466 = scalar_select %p465, %s28, 1
          %p467 = scmp.lt.s32.totalorder %s464, 15
          %s468 = scalar_select %p467, %s464, 15
          %s469 = smul.addr %s468, 2
          %s470 = smul.addr %s466, 32
          %s471 = sadd.s32 %s469, %s470
          %s472 = smul.addr %s471, 4
          %s473 = scalar_lea.vmem %s2, %s472
          %s474 = sadd.s32 %s29, 1
          %s475 = smul.u32 %s474, 8
          %p476 = scmp.lt.s32.totalorder %s475, 15
          %s477 = scalar_select %p476, %s475, 15
        $region52: #{_topdown_forward.1} parent=39 // pred_fallthru
          _
        // Predicated region
        $region53: #{_topdown_forward.1} parent=39 // pred_check
          %p478 = pneg %p155
        $region54: #{_topdown_forward.1} parent=39 // pred_check_branch
          %480 = sbr.rel (%p478) target = $region56
        $region55: #{_topdown_forward.1} parent=39 // pred_region
          %s481 = smul.u32 4, %s29
          %p482 = scmp.lt.s32.totalorder %s28, 1
          %s483 = scalar_select %p482, %s28, 1
          %p484 = scmp.lt.s32.totalorder %s481, 7
          %s485 = scalar_select %p484, %s481, 7
          %s486 = smul.addr %s485, 2
          %s487 = smul.addr %s483, 16
          %s488 = sadd.s32 %s486, %s487
          %s489 = smul.addr %s488, 4
          %s490 = scalar_lea.vmem %s3, %s489
          %s491 = smul.u32 4, %s29
        $region56: #{_topdown_forward.1} parent=39 // pred_fallthru
          _
        // Predicated region
        $region57: #{_topdown_forward.1} parent=39 // pred_check
          %p492 = pneg %p191
        $region58: #{_topdown_forward.1} parent=39 // pred_check_branch
          %494 = sbr.rel (%p492) target = $region60
        $region59: #{_topdown_forward.1} parent=39 // pred_region
          %s495 = smul.u32 %s29, 4
          %s496 = ssub.s32 %s495, 1
          %p497 = scmp.gt.s32.totalorder %s496, 0
          %s498 = scalar_select %p497, %s496, 0
          %p499 = scmp.lt.s32.totalorder %s28, 1
          %s500 = scalar_select %p499, %s28, 1
          %p501 = scmp.lt.s32.totalorder %s498, 7
          %s502 = scalar_select %p501, %s498, 7
          %s503 = smul.addr %s502, 2
          %s504 = smul.addr %s500, 16
          %s505 = sadd.s32 %s503, %s504
          %s506 = smul.addr %s505, 4
          %s507 = scalar_lea.vmem %s4, %s506
          %s508 = smul.u32 %s29, 4
          %s509 = ssub.s32 %s508, 1
          %p510 = scmp.gt.s32.totalorder %s509, 0
          %s511 = scalar_select %p510, %s509, 0
        $region60: #{_topdown_forward.1} parent=39 // pred_fallthru
          _
        // Predicated region
        $region61: #{_topdown_forward.1} parent=39 // pred_check
          %p512 = pneg %p227
        $region62: #{_topdown_forward.1} parent=39 // pred_check_branch
          %514 = sbr.rel (%p512) target = $region64
        $region63: #{_topdown_forward.1} parent=39 // pred_region
          %s515 = sadd.s32 %s29, 1
          %s516 = smul.u32 %s515, 4
          %p517 = scmp.lt.s32.totalorder %s516, 7
          %s518 = scalar_select %p517, %s516, 7
          %p519 = scmp.lt.s32.totalorder %s28, 1
          %s520 = scalar_select %p519, %s28, 1
          %p521 = scmp.lt.s32.totalorder %s518, 7
          %s522 = scalar_select %p521, %s518, 7
          %s523 = smul.addr %s522, 2
          %s524 = smul.addr %s520, 16
          %s525 = sadd.s32 %s523, %s524
          %s526 = smul.addr %s525, 4
          %s527 = scalar_lea.vmem %s5, %s526
          %s528 = sadd.s32 %s29, 1
          %s529 = smul.u32 %s528, 4
          %p530 = scmp.lt.s32.totalorder %s529, 7
          %s531 = scalar_select %p530, %s529, 7
        $region64: #{_topdown_forward.1} parent=39 // pred_fallthru
          _
      $region40: #{_topdown_forward.1} parent=5 // pred_fallthru
        _
      %p532 = scmp.le.s32.totalorder 1, %s21
      %p533 = scmp.lt.s32.totalorder %s21, 5
      %p534 = pnand %p532, %p533
      %p535 = pneg %p534
      // Predicated region
      $region65: #{_topdown_forward.1} parent=5 // pred_check
        _
      $region66: #{_topdown_forward.1} parent=5 // pred_check_branch
        %537 = sbr.rel (%p534) target = $region68
      $region67: #{_topdown_forward.1} parent=5 // pred_region
        %s538 = ssub.s32 %s21, 1
        %s539 = smul.u32 8, %s31
        %p540 = scmp.lt.s32.totalorder %s30, 1
        %s541 = scalar_select %p540, %s30, 1
        %p542 = scmp.lt.s32.totalorder %s539, 15
        %s543 = scalar_select %p542, %s539, 15
        %s544 = smul.addr %s543, 2
        %s545 = smul.addr %s541, 32
        %s546 = sadd.s32 %s544, %s545
        %s547 = smul.addr %s546, 4
        %s548 = scalar_lea.vmem %s0, %s547
        %p549 = pneg %p61
        %p550 = pneg %p58
        %s551 = smul.u32 %s31, 8
        %s552 = ssub.s32 %s551, 1
        %p553 = scmp.gt.s32.totalorder %s552, 0
        %s554 = scalar_select %p553, %s552, 0
        %p555 = scmp.lt.s32.totalorder %s30, 1
        %s556 = scalar_select %p555, %s30, 1
        %p557 = scmp.lt.s32.totalorder %s554, 15
        %s558 = scalar_select %p557, %s554, 15
        %s559 = smul.addr %s558, 2
        %s560 = smul.addr %s556, 32
        %s561 = sadd.s32 %s559, %s560
        %s562 = smul.addr %s561, 4
        %s563 = scalar_lea.vmem %s1, %s562
        %p564 = pneg %p97
        %p565 = pneg %p94
        %s566 = sadd.s32 %s31, 1
        %s567 = smul.u32 %s566, 8
        %p568 = scmp.lt.s32.totalorder %s567, 15
        %s569 = scalar_select %p568, %s567, 15
        %p570 = scmp.lt.s32.totalorder %s30, 1
        %s571 = scalar_select %p570, %s30, 1
        %p572 = scmp.lt.s32.totalorder %s569, 15
        %s573 = scalar_select %p572, %s569, 15
        %s574 = smul.addr %s573, 2
        %s575 = smul.addr %s571, 32
        %s576 = sadd.s32 %s574, %s575
        %s577 = smul.addr %s576, 4
        %s578 = scalar_lea.vmem %s2, %s577
        %p579 = pneg %p133
        %p580 = pneg %p130
        %s581 = smul.u32 4, %s31
        %p582 = scmp.lt.s32.totalorder %s30, 1
        %s583 = scalar_select %p582, %s30, 1
        %p584 = scmp.lt.s32.totalorder %s581, 7
        %s585 = scalar_select %p584, %s581, 7
        %s586 = smul.addr %s585, 2
        %s587 = smul.addr %s583, 16
        %s588 = sadd.s32 %s586, %s587
        %s589 = smul.addr %s588, 4
        %s590 = scalar_lea.vmem %s3, %s589
        %p591 = pneg %p161
        %p592 = pneg %p158
        %s593 = smul.u32 %s31, 4
        %s594 = ssub.s32 %s593, 1
        %p595 = scmp.gt.s32.totalorder %s594, 0
        %s596 = scalar_select %p595, %s594, 0
        %p597 = scmp.lt.s32.totalorder %s30, 1
        %s598 = scalar_select %p597, %s30, 1
        %p599 = scmp.lt.s32.totalorder %s596, 7
        %s600 = scalar_select %p599, %s596, 7
        %s601 = smul.addr %s600, 2
        %s602 = smul.addr %s598, 16
        %s603 = sadd.s32 %s601, %s602
        %s604 = smul.addr %s603, 4
        %s605 = scalar_lea.vmem %s4, %s604
        %p606 = pneg %p197
        %p607 = pneg %p194
        %s608 = sadd.s32 %s31, 1
        %s609 = smul.u32 %s608, 4
        %p610 = scmp.lt.s32.totalorder %s609, 7
        %s611 = scalar_select %p610, %s609, 7
        %p612 = scmp.lt.s32.totalorder %s30, 1
        %s613 = scalar_select %p612, %s30, 1
        %p614 = scmp.lt.s32.totalorder %s611, 7
        %s615 = scalar_select %p614, %s611, 7
        %s616 = smul.addr %s615, 2
        %s617 = smul.addr %s613, 16
        %s618 = sadd.s32 %s616, %s617
        %s619 = smul.addr %s618, 4
        %s620 = scalar_lea.vmem %s5, %s619
        %p621 = pneg %p233
        %p622 = pneg %p230
        %p623 = pneg %p254
        %p624 = pneg %p251
        %p625 = pneg %p275
        %p626 = pneg %p272
        %p627 = pneg %p296
        %p628 = pneg %p293
        %p629 = pneg %p317
        %p630 = pneg %p314
        %p631 = pneg %p338
        %p632 = pneg %p335
        %p633 = pneg %p359
        %p634 = pneg %p356
        %p635 = pneg %p387
        %p636 = pneg %p384
        %s637 = sand.u32 %s374, 1
        %s638 = scalar_lea.sflag [#allocation3], %s637
        %s639 = sand.u32 %s374, 1
        %s640 = smul.addr %s639, 64
        %s641 = scalar_lea.vmem [#allocation2], %s640
        %s642 = smul.u32 8, %s31
        %p643 = scmp.lt.s32.totalorder %s30, 1
        %s644 = scalar_select %p643, %s30, 1
        %p645 = scmp.lt.s32.totalorder %s642, 15
        %s646 = scalar_select %p645, %s642, 15
        %s647 = smul.addr %s646, 2
        %s648 = smul.addr %s644, 32
        %s649 = sadd.s32 %s647, %s648
        %s650 = smul.addr %s649, 4
        %s651 = scalar_lea.vmem %s0, %s650
        %s652 = smul.u32 8, %s31
        %s653 = smul.u32 %s31, 8
        %s654 = ssub.s32 %s653, 1
        %p655 = scmp.gt.s32.totalorder %s654, 0
        %s656 = scalar_select %p655, %s654, 0
        %p657 = scmp.lt.s32.totalorder %s30, 1
        %s658 = scalar_select %p657, %s30, 1
        %p659 = scmp.lt.s32.totalorder %s656, 15
        %s660 = scalar_select %p659, %s656, 15
        %s661 = smul.addr %s660, 2
        %s662 = smul.addr %s658, 32
        %s663 = sadd.s32 %s661, %s662
        %s664 = smul.addr %s663, 4
        %s665 = scalar_lea.vmem %s1, %s664
        %s666 = smul.u32 %s31, 8
        %s667 = ssub.s32 %s666, 1
        %p668 = scmp.gt.s32.totalorder %s667, 0
        %s669 = scalar_select %p668, %s667, 0
        %s670 = sadd.s32 %s31, 1
        %s671 = smul.u32 %s670, 8
        %p672 = scmp.lt.s32.totalorder %s671, 15
        %s673 = scalar_select %p672, %s671, 15
        %p674 = scmp.lt.s32.totalorder %s30, 1
        %s675 = scalar_select %p674, %s30, 1
        %p676 = scmp.lt.s32.totalorder %s673, 15
        %s677 = scalar_select %p676, %s673, 15
        %s678 = smul.addr %s677, 2
        %s679 = smul.addr %s675, 32
        %s680 = sadd.s32 %s678, %s679
        %s681 = smul.addr %s680, 4
        %s682 = scalar_lea.vmem %s2, %s681
        %s683 = sadd.s32 %s31, 1
        %s684 = smul.u32 %s683, 8
        %p685 = scmp.lt.s32.totalorder %s684, 15
        %s686 = scalar_select %p685, %s684, 15
        %s687 = smul.u32 4, %s31
        %p688 = scmp.lt.s32.totalorder %s30, 1
        %s689 = scalar_select %p688, %s30, 1
        %p690 = scmp.lt.s32.totalorder %s687, 7
        %s691 = scalar_select %p690, %s687, 7
        %s692 = smul.addr %s691, 2
        %s693 = smul.addr %s689, 16
        %s694 = sadd.s32 %s692, %s693
        %s695 = smul.addr %s694, 4
        %s696 = scalar_lea.vmem %s3, %s695
        %s697 = smul.u32 4, %s31
        %s698 = smul.u32 %s31, 4
        %s699 = ssub.s32 %s698, 1
        %p700 = scmp.gt.s32.totalorder %s699, 0
        %s701 = scalar_select %p700, %s699, 0
        %p702 = scmp.lt.s32.totalorder %s30, 1
        %s703 = scalar_select %p702, %s30, 1
        %p704 = scmp.lt.s32.totalorder %s701, 7
        %s705 = scalar_select %p704, %s701, 7
        %s706 = smul.addr %s705, 2
        %s707 = smul.addr %s703, 16
        %s708 = sadd.s32 %s706, %s707
        %s709 = smul.addr %s708, 4
        %s710 = scalar_lea.vmem %s4, %s709
        %s711 = smul.u32 %s31, 4
        %s712 = ssub.s32 %s711, 1
        %p713 = scmp.gt.s32.totalorder %s712, 0
        %s714 = scalar_select %p713, %s712, 0
        %s715 = sadd.s32 %s31, 1
        %s716 = smul.u32 %s715, 4
        %p717 = scmp.lt.s32.totalorder %s716, 7
        %s718 = scalar_select %p717, %s716, 7
        %p719 = scmp.lt.s32.totalorder %s30, 1
        %s720 = scalar_select %p719, %s30, 1
        %p721 = scmp.lt.s32.totalorder %s718, 7
        %s722 = scalar_select %p721, %s718, 7
        %s723 = smul.addr %s722, 2
        %s724 = smul.addr %s720, 16
        %s725 = sadd.s32 %s723, %s724
        %s726 = smul.addr %s725, 4
        %s727 = scalar_lea.vmem %s5, %s726
        %s728 = sadd.s32 %s31, 1
        %s729 = smul.u32 %s728, 4
        %p730 = scmp.lt.s32.totalorder %s729, 7
        %s731 = scalar_select %p730, %s729, 7
        %s732 = smul.u32 8, %s31
        %v734 = vld [vmem:[%s665] sm:$0xf]
        %v735 = vld [vmem:[%s665 + $0x4] sm:$0xf]
        %v736 = vld [vmem:[%s651] sm:$0xf]
        %v737 = vld [vmem:[%s651 + $0x4] sm:$0xf]
        %v738 = vld [vmem:[%s651 + $0x8] sm:$0xf]
        %v739 = vld [vmem:[%s651 + $0xc] sm:$0xf]
        %v740 = vld [vmem:[%s651 + $0x10] sm:$0xf]
        %v741 = vld [vmem:[%s651 + $0x14] sm:$0xf]
        %v742 = vld [vmem:[%s651 + $0x18] sm:$0xf]
        %v743 = vld [vmem:[%s651 + $0x1c] sm:$0xf]
        %v744 = vld [vmem:[%s651 + $0x20] sm:$0xf]
        %v745 = vld [vmem:[%s651 + $0x24] sm:$0xf]
        %v746 = vld [vmem:[%s651 + $0x28] sm:$0xf]
        %v747 = vld [vmem:[%s651 + $0x2c] sm:$0xf]
        %v748 = vld [vmem:[%s651 + $0x30] sm:$0xf]
        %v749 = vld [vmem:[%s651 + $0x34] sm:$0xf]
        %v750 = vld [vmem:[%s651 + $0x38] sm:$0xf]
        %v751 = vld [vmem:[%s651 + $0x3c] sm:$0xf]
        %v752 = vld [vmem:[%s682] sm:$0xf]
        %v753 = vld [vmem:[%s682 + $0x4] sm:$0xf]
        %v754 = vunpack.c.l.bf16 %v734
        %v755 = vunpack.c.l.bf16 %v735
        %v756 = vunpack.c.l.bf16 %v736
        %v757 = vunpack.c.l.bf16 %v737
        %v758 = vunpack.c.l.bf16 %v738
        %v759 = vunpack.c.l.bf16 %v739
        %v760 = vunpack.c.l.bf16 %v740
        %v761 = vunpack.c.l.bf16 %v741
        %v762 = vunpack.c.l.bf16 %v742
        %v763 = vunpack.c.l.bf16 %v743
        %v764 = vunpack.c.l.bf16 %v744
        %v765 = vunpack.c.l.bf16 %v745
        %v766 = vunpack.c.l.bf16 %v746
        %v767 = vunpack.c.l.bf16 %v747
        %v768 = vunpack.c.l.bf16 %v748
        %v769 = vunpack.c.l.bf16 %v749
        %v770 = vunpack.c.l.bf16 %v750
        %v771 = vunpack.c.l.bf16 %v751
        %v772 = vunpack.c.l.bf16 %v752
        %v773 = vunpack.c.l.bf16 %v753
        %v774 = vld [vmem:[%s6] sm:$0x1]
        %v775 = vunpack.c.l.bf16 %v774
        %777 = vset.pattern.permute.xlu0 0
        %778 = vperm.xlu0 %777, %v754
        %v779 = vpop.permute.xlu0 %778
        %782 = vset.pattern.permute.xlu0 0
        %783 = vperm.xlu0 %782, %v755
        %v784 = vpop.permute.xlu0 %783
        %787 = vset.pattern.permute.xlu0 0
        %788 = vperm.xlu0 %787, %v756
        %v789 = vpop.permute.xlu0 %788
        %792 = vset.pattern.permute.xlu0 0
        %793 = vperm.xlu0 %792, %v757
        %v794 = vpop.permute.xlu0 %793
        %797 = vset.pattern.permute.xlu0 0
        %798 = vperm.xlu0 %797, %v758
        %v799 = vpop.permute.xlu0 %798
        %802 = vset.pattern.permute.xlu0 0
        %803 = vperm.xlu0 %802, %v759
        %v804 = vpop.permute.xlu0 %803
        %807 = vset.pattern.permute.xlu0 0
        %808 = vperm.xlu0 %807, %v760
        %v809 = vpop.permute.xlu0 %808
        %812 = vset.pattern.permute.xlu0 0
        %813 = vperm.xlu0 %812, %v761
        %v814 = vpop.permute.xlu0 %813
        %817 = vset.pattern.permute.xlu0 0
        %818 = vperm.xlu0 %817, %v762
        %v819 = vpop.permute.xlu0 %818
        %822 = vset.pattern.permute.xlu0 0
        %823 = vperm.xlu0 %822, %v763
        %v824 = vpop.permute.xlu0 %823
        %827 = vset.pattern.permute.xlu0 0
        %828 = vperm.xlu0 %827, %v764
        %v829 = vpop.permute.xlu0 %828
        %832 = vset.pattern.permute.xlu0 0
        %833 = vperm.xlu0 %832, %v765
        %v834 = vpop.permute.xlu0 %833
        %837 = vset.pattern.permute.xlu0 0
        %838 = vperm.xlu0 %837, %v766
        %v839 = vpop.permute.xlu0 %838
        %842 = vset.pattern.permute.xlu0 0
        %843 = vperm.xlu0 %842, %v767
        %v844 = vpop.permute.xlu0 %843
        %847 = vset.pattern.permute.xlu0 0
        %848 = vperm.xlu0 %847, %v768
        %v849 = vpop.permute.xlu0 %848
        %852 = vset.pattern.permute.xlu0 0
        %853 = vperm.xlu0 %852, %v769
        %v854 = vpop.permute.xlu0 %853
        %857 = vset.pattern.permute.xlu0 0
        %858 = vperm.xlu0 %857, %v770
        %v859 = vpop.permute.xlu0 %858
        %862 = vset.pattern.permute.xlu0 0
        %863 = vperm.xlu0 %862, %v771
        %v864 = vpop.permute.xlu0 %863
        %867 = vset.pattern.permute.xlu0 0
        %868 = vperm.xlu0 %867, %v772
        %v869 = vpop.permute.xlu0 %868
        %872 = vset.pattern.permute.xlu0 0
        %873 = vperm.xlu0 %872, %v773
        %v874 = vpop.permute.xlu0 %873
        %v876 = vlaneseq
        %v877 = vshrl.u32 %v876, 7
        %v878 = vsub.s32 0, %v877
        %v879 = vrot.slane %v775, %v878
        %v880 = vmul.f32 %v779, %v879
        %v881 = vmul.f32 %v784, %v879
        %v882 = vmul.f32 %v789, %v879
        %v883 = vmul.f32 %v794, %v879
        %v884 = vmul.f32 %v799, %v879
        %v885 = vmul.f32 %v804, %v879
        %v886 = vmul.f32 %v809, %v879
        %v887 = vmul.f32 %v814, %v879
        %v888 = vmul.f32 %v819, %v879
        %v889 = vmul.f32 %v824, %v879
        %v890 = vmul.f32 %v829, %v879
        %v891 = vmul.f32 %v834, %v879
        %v892 = vmul.f32 %v839, %v879
        %v893 = vmul.f32 %v844, %v879
        %v894 = vmul.f32 %v849, %v879
        %v895 = vmul.f32 %v854, %v879
        %v896 = vmul.f32 %v859, %v879
        %v897 = vmul.f32 %v864, %v879
        %v898 = vmul.f32 %v869, %v879
        %v899 = vmul.f32 %v874, %v879
        %v900 = vadd.f32 %v880, 0.0
        %v901 = vadd.f32 %v881, 0.0
        %v902 = vadd.f32 %v882, 0.0
        %v903 = vadd.f32 %v883, 0.0
        %v904 = vadd.f32 %v884, 0.0
        %v905 = vadd.f32 %v885, 0.0
        %v906 = vadd.f32 %v886, 0.0
        %v907 = vadd.f32 %v887, 0.0
        %v908 = vadd.f32 %v888, 0.0
        %v909 = vadd.f32 %v889, 0.0
        %v910 = vadd.f32 %v890, 0.0
        %v911 = vadd.f32 %v891, 0.0
        %v912 = vadd.f32 %v892, 0.0
        %v913 = vadd.f32 %v893, 0.0
        %v914 = vadd.f32 %v894, 0.0
        %v915 = vadd.f32 %v895, 0.0
        %v916 = vadd.f32 %v896, 0.0
        %v917 = vadd.f32 %v897, 0.0
        %v918 = vadd.f32 %v898, 0.0
        %v919 = vadd.f32 %v899, 0.0
        %920 = vset.pattern.permute.xlu0 1
        %921 = vperm.xlu0 %920, %v754
        %v922 = vpop.permute.xlu0 %921
        %924 = vset.pattern.permute.xlu0 1
        %925 = vperm.xlu0 %924, %v755
        %v926 = vpop.permute.xlu0 %925
        %928 = vset.pattern.permute.xlu0 1
        %929 = vperm.xlu0 %928, %v756
        %v930 = vpop.permute.xlu0 %929
        %932 = vset.pattern.permute.xlu0 1
        %933 = vperm.xlu0 %932, %v757
        %v934 = vpop.permute.xlu0 %933
        %936 = vset.pattern.permute.xlu0 1
        %937 = vperm.xlu0 %936, %v758
        %v938 = vpop.permute.xlu0 %937
        %940 = vset.pattern.permute.xlu0 1
        %941 = vperm.xlu0 %940, %v759
        %v942 = vpop.permute.xlu0 %941
        %944 = vset.pattern.permute.xlu0 1
        %945 = vperm.xlu0 %944, %v760
        %v946 = vpop.permute.xlu0 %945
        %948 = vset.pattern.permute.xlu0 1
        %949 = vperm.xlu0 %948, %v761
        %v950 = vpop.permute.xlu0 %949
        %952 = vset.pattern.permute.xlu0 1
        %953 = vperm.xlu0 %952, %v762
        %v954 = vpop.permute.xlu0 %953
        %956 = vset.pattern.permute.xlu0 1
        %957 = vperm.xlu0 %956, %v763
        %v958 = vpop.permute.xlu0 %957
        %960 = vset.pattern.permute.xlu0 1
        %961 = vperm.xlu0 %960, %v764
        %v962 = vpop.permute.xlu0 %961
        %964 = vset.pattern.permute.xlu0 1
        %965 = vperm.xlu0 %964, %v765
        %v966 = vpop.permute.xlu0 %965
        %968 = vset.pattern.permute.xlu0 1
        %969 = vperm.xlu0 %968, %v766
        %v970 = vpop.permute.xlu0 %969
        %972 = vset.pattern.permute.xlu0 1
        %973 = vperm.xlu0 %972, %v767
        %v974 = vpop.permute.xlu0 %973
        %976 = vset.pattern.permute.xlu0 1
        %977 = vperm.xlu0 %976, %v768
        %v978 = vpop.permute.xlu0 %977
        %980 = vset.pattern.permute.xlu0 1
        %981 = vperm.xlu0 %980, %v769
        %v982 = vpop.permute.xlu0 %981
        %984 = vset.pattern.permute.xlu0 1
        %985 = vperm.xlu0 %984, %v770
        %v986 = vpop.permute.xlu0 %985
        %988 = vset.pattern.permute.xlu0 1
        %989 = vperm.xlu0 %988, %v771
        %v990 = vpop.permute.xlu0 %989
        %992 = vset.pattern.permute.xlu0 1
        %993 = vperm.xlu0 %992, %v772
        %v994 = vpop.permute.xlu0 %993
        %996 = vset.pattern.permute.xlu0 1
        %997 = vperm.xlu0 %996, %v773
        %v998 = vpop.permute.xlu0 %997
        %v1000 = vlaneseq
        %v1001 = vshrl.u32 %v1000, 7
        %v1002 = vsub.s32 1, %v1001
        %v1003 = vrot.slane %v775, %v1002
        %v1004 = vmul.f32 %v922, %v1003
        %v1005 = vmul.f32 %v926, %v1003
        %v1006 = vmul.f32 %v930, %v1003
        %v1007 = vmul.f32 %v934, %v1003
        %v1008 = vmul.f32 %v938, %v1003
        %v1009 = vmul.f32 %v942, %v1003
        %v1010 = vmul.f32 %v946, %v1003
        %v1011 = vmul.f32 %v950, %v1003
        %v1012 = vmul.f32 %v954, %v1003
        %v1013 = vmul.f32 %v958, %v1003
        %v1014 = vmul.f32 %v962, %v1003
        %v1015 = vmul.f32 %v966, %v1003
        %v1016 = vmul.f32 %v970, %v1003
        %v1017 = vmul.f32 %v974, %v1003
        %v1018 = vmul.f32 %v978, %v1003
        %v1019 = vmul.f32 %v982, %v1003
        %v1020 = vmul.f32 %v986, %v1003
        %v1021 = vmul.f32 %v990, %v1003
        %v1022 = vmul.f32 %v994, %v1003
        %v1023 = vmul.f32 %v998, %v1003
        %v1024 = vadd.f32 %v900, %v1004
        %v1025 = vadd.f32 %v901, %v1005
        %v1026 = vadd.f32 %v902, %v1006
        %v1027 = vadd.f32 %v903, %v1007
        %v1028 = vadd.f32 %v904, %v1008
        %v1029 = vadd.f32 %v905, %v1009
        %v1030 = vadd.f32 %v906, %v1010
        %v1031 = vadd.f32 %v907, %v1011
        %v1032 = vadd.f32 %v908, %v1012
        %v1033 = vadd.f32 %v909, %v1013
        %v1034 = vadd.f32 %v910, %v1014
        %v1035 = vadd.f32 %v911, %v1015
        %v1036 = vadd.f32 %v912, %v1016
        %v1037 = vadd.f32 %v913, %v1017
        %v1038 = vadd.f32 %v914, %v1018
        %v1039 = vadd.f32 %v915, %v1019
        %v1040 = vadd.f32 %v916, %v1020
        %v1041 = vadd.f32 %v917, %v1021
        %v1042 = vadd.f32 %v918, %v1022
        %v1043 = vadd.f32 %v919, %v1023
        %v1044 = vld [vmem:[%s6] sm:$0x2]
        %v1045 = vunpack.c.l.bf16 %v1044
        %1046 = vset.pattern.permute.xlu0 2
        %1047 = vperm.xlu0 %1046, %v754
        %v1048 = vpop.permute.xlu0 %1047
        %1050 = vset.pattern.permute.xlu0 2
        %1051 = vperm.xlu0 %1050, %v755
        %v1052 = vpop.permute.xlu0 %1051
        %1054 = vset.pattern.permute.xlu0 2
        %1055 = vperm.xlu0 %1054, %v756
        %v1056 = vpop.permute.xlu0 %1055
        %1058 = vset.pattern.permute.xlu0 2
        %1059 = vperm.xlu0 %1058, %v757
        %v1060 = vpop.permute.xlu0 %1059
        %1062 = vset.pattern.permute.xlu0 2
        %1063 = vperm.xlu0 %1062, %v758
        %v1064 = vpop.permute.xlu0 %1063
        %1066 = vset.pattern.permute.xlu0 2
        %1067 = vperm.xlu0 %1066, %v759
        %v1068 = vpop.permute.xlu0 %1067
        %1070 = vset.pattern.permute.xlu0 2
        %1071 = vperm.xlu0 %1070, %v760
        %v1072 = vpop.permute.xlu0 %1071
        %1074 = vset.pattern.permute.xlu0 2
        %1075 = vperm.xlu0 %1074, %v761
        %v1076 = vpop.permute.xlu0 %1075
        %1078 = vset.pattern.permute.xlu0 2
        %1079 = vperm.xlu0 %1078, %v762
        %v1080 = vpop.permute.xlu0 %1079
        %1082 = vset.pattern.permute.xlu0 2
        %1083 = vperm.xlu0 %1082, %v763
        %v1084 = vpop.permute.xlu0 %1083
        %1086 = vset.pattern.permute.xlu0 2
        %1087 = vperm.xlu0 %1086, %v764
        %v1088 = vpop.permute.xlu0 %1087
        %1090 = vset.pattern.permute.xlu0 2
        %1091 = vperm.xlu0 %1090, %v765
        %v1092 = vpop.permute.xlu0 %1091
        %1094 = vset.pattern.permute.xlu0 2
        %1095 = vperm.xlu0 %1094, %v766
        %v1096 = vpop.permute.xlu0 %1095
        %1098 = vset.pattern.permute.xlu0 2
        %1099 = vperm.xlu0 %1098, %v767
        %v1100 = vpop.permute.xlu0 %1099
        %1102 = vset.pattern.permute.xlu0 2
        %1103 = vperm.xlu0 %1102, %v768
        %v1104 = vpop.permute.xlu0 %1103
        %1106 = vset.pattern.permute.xlu0 2
        %1107 = vperm.xlu0 %1106, %v769
        %v1108 = vpop.permute.xlu0 %1107
        %1110 = vset.pattern.permute.xlu0 2
        %1111 = vperm.xlu0 %1110, %v770
        %v1112 = vpop.permute.xlu0 %1111
        %1114 = vset.pattern.permute.xlu0 2
        %1115 = vperm.xlu0 %1114, %v771
        %v1116 = vpop.permute.xlu0 %1115
        %1118 = vset.pattern.permute.xlu0 2
        %1119 = vperm.xlu0 %1118, %v772
        %v1120 = vpop.permute.xlu0 %1119
        %1122 = vset.pattern.permute.xlu0 2
        %1123 = vperm.xlu0 %1122, %v773
        %v1124 = vpop.permute.xlu0 %1123
        %v1126 = vlaneseq
        %v1127 = vshrl.u32 %v1126, 7
        %v1128 = vsub.s32 2, %v1127
        %v1129 = vrot.slane %v1045, %v1128
        %v1130 = vmul.f32 %v1048, %v1129
        %v1131 = vmul.f32 %v1052, %v1129
        %v1132 = vmul.f32 %v1056, %v1129
        %v1133 = vmul.f32 %v1060, %v1129
        %v1134 = vmul.f32 %v1064, %v1129
        %v1135 = vmul.f32 %v1068, %v1129
        %v1136 = vmul.f32 %v1072, %v1129
        %v1137 = vmul.f32 %v1076, %v1129
        %v1138 = vmul.f32 %v1080, %v1129
        %v1139 = vmul.f32 %v1084, %v1129
        %v1140 = vmul.f32 %v1088, %v1129
        %v1141 = vmul.f32 %v1092, %v1129
        %v1142 = vmul.f32 %v1096, %v1129
        %v1143 = vmul.f32 %v1100, %v1129
        %v1144 = vmul.f32 %v1104, %v1129
        %v1145 = vmul.f32 %v1108, %v1129
        %v1146 = vmul.f32 %v1112, %v1129
        %v1147 = vmul.f32 %v1116, %v1129
        %v1148 = vmul.f32 %v1120, %v1129
        %v1149 = vmul.f32 %v1124, %v1129
        %v1150 = vadd.f32 %v1024, %v1130
        %v1151 = vadd.f32 %v1025, %v1131
        %v1152 = vadd.f32 %v1026, %v1132
        %v1153 = vadd.f32 %v1027, %v1133
        %v1154 = vadd.f32 %v1028, %v1134
        %v1155 = vadd.f32 %v1029, %v1135
        %v1156 = vadd.f32 %v1030, %v1136
        %v1157 = vadd.f32 %v1031, %v1137
        %v1158 = vadd.f32 %v1032, %v1138
        %v1159 = vadd.f32 %v1033, %v1139
        %v1160 = vadd.f32 %v1034, %v1140
        %v1161 = vadd.f32 %v1035, %v1141
        %v1162 = vadd.f32 %v1036, %v1142
        %v1163 = vadd.f32 %v1037, %v1143
        %v1164 = vadd.f32 %v1038, %v1144
        %v1165 = vadd.f32 %v1039, %v1145
        %v1166 = vadd.f32 %v1040, %v1146
        %v1167 = vadd.f32 %v1041, %v1147
        %v1168 = vadd.f32 %v1042, %v1148
        %v1169 = vadd.f32 %v1043, %v1149
        %1170 = vset.pattern.permute.xlu0 3
        %1171 = vperm.xlu0 %1170, %v754
        %v1172 = vpop.permute.xlu0 %1171
        %1174 = vset.pattern.permute.xlu0 3
        %1175 = vperm.xlu0 %1174, %v755
        %v1176 = vpop.permute.xlu0 %1175
        %1178 = vset.pattern.permute.xlu0 3
        %1179 = vperm.xlu0 %1178, %v756
        %v1180 = vpop.permute.xlu0 %1179
        %1182 = vset.pattern.permute.xlu0 3
        %1183 = vperm.xlu0 %1182, %v757
        %v1184 = vpop.permute.xlu0 %1183
        %1186 = vset.pattern.permute.xlu0 3
        %1187 = vperm.xlu0 %1186, %v758
        %v1188 = vpop.permute.xlu0 %1187
        %1190 = vset.pattern.permute.xlu0 3
        %1191 = vperm.xlu0 %1190, %v759
        %v1192 = vpop.permute.xlu0 %1191
        %1194 = vset.pattern.permute.xlu0 3
        %1195 = vperm.xlu0 %1194, %v760
        %v1196 = vpop.permute.xlu0 %1195
        %1198 = vset.pattern.permute.xlu0 3
        %1199 = vperm.xlu0 %1198, %v761
        %v1200 = vpop.permute.xlu0 %1199
        %1202 = vset.pattern.permute.xlu0 3
        %1203 = vperm.xlu0 %1202, %v762
        %v1204 = vpop.permute.xlu0 %1203
        %1206 = vset.pattern.permute.xlu0 3
        %1207 = vperm.xlu0 %1206, %v763
        %v1208 = vpop.permute.xlu0 %1207
        %1210 = vset.pattern.permute.xlu0 3
        %1211 = vperm.xlu0 %1210, %v764
        %v1212 = vpop.permute.xlu0 %1211
        %1214 = vset.pattern.permute.xlu0 3
        %1215 = vperm.xlu0 %1214, %v765
        %v1216 = vpop.permute.xlu0 %1215
        %1218 = vset.pattern.permute.xlu0 3
        %1219 = vperm.xlu0 %1218, %v766
        %v1220 = vpop.permute.xlu0 %1219
        %1222 = vset.pattern.permute.xlu0 3
        %1223 = vperm.xlu0 %1222, %v767
        %v1224 = vpop.permute.xlu0 %1223
        %1226 = vset.pattern.permute.xlu0 3
        %1227 = vperm.xlu0 %1226, %v768
        %v1228 = vpop.permute.xlu0 %1227
        %1230 = vset.pattern.permute.xlu0 3
        %1231 = vperm.xlu0 %1230, %v769
        %v1232 = vpop.permute.xlu0 %1231
        %1234 = vset.pattern.permute.xlu0 3
        %1235 = vperm.xlu0 %1234, %v770
        %v1236 = vpop.permute.xlu0 %1235
        %1238 = vset.pattern.permute.xlu0 3
        %1239 = vperm.xlu0 %1238, %v771
        %v1240 = vpop.permute.xlu0 %1239
        %1242 = vset.pattern.permute.xlu0 3
        %1243 = vperm.xlu0 %1242, %v772
        %v1244 = vpop.permute.xlu0 %1243
        %1246 = vset.pattern.permute.xlu0 3
        %1247 = vperm.xlu0 %1246, %v773
        %v1248 = vpop.permute.xlu0 %1247
        %v1250 = vlaneseq
        %v1251 = vshrl.u32 %v1250, 7
        %v1252 = vsub.s32 3, %v1251
        %v1253 = vrot.slane %v1045, %v1252
        %v1254 = vmul.f32 %v1172, %v1253
        %v1255 = vmul.f32 %v1176, %v1253
        %v1256 = vmul.f32 %v1180, %v1253
        %v1257 = vmul.f32 %v1184, %v1253
        %v1258 = vmul.f32 %v1188, %v1253
        %v1259 = vmul.f32 %v1192, %v1253
        %v1260 = vmul.f32 %v1196, %v1253
        %v1261 = vmul.f32 %v1200, %v1253
        %v1262 = vmul.f32 %v1204, %v1253
        %v1263 = vmul.f32 %v1208, %v1253
        %v1264 = vmul.f32 %v1212, %v1253
        %v1265 = vmul.f32 %v1216, %v1253
        %v1266 = vmul.f32 %v1220, %v1253
        %v1267 = vmul.f32 %v1224, %v1253
        %v1268 = vmul.f32 %v1228, %v1253
        %v1269 = vmul.f32 %v1232, %v1253
        %v1270 = vmul.f32 %v1236, %v1253
        %v1271 = vmul.f32 %v1240, %v1253
        %v1272 = vmul.f32 %v1244, %v1253
        %v1273 = vmul.f32 %v1248, %v1253
        %v1274 = vadd.f32 %v1150, %v1254
        %v1275 = vadd.f32 %v1151, %v1255
        %v1276 = vadd.f32 %v1152, %v1256
        %v1277 = vadd.f32 %v1153, %v1257
        %v1278 = vadd.f32 %v1154, %v1258
        %v1279 = vadd.f32 %v1155, %v1259
        %v1280 = vadd.f32 %v1156, %v1260
        %v1281 = vadd.f32 %v1157, %v1261
        %v1282 = vadd.f32 %v1158, %v1262
        %v1283 = vadd.f32 %v1159, %v1263
        %v1284 = vadd.f32 %v1160, %v1264
        %v1285 = vadd.f32 %v1161, %v1265
        %v1286 = vadd.f32 %v1162, %v1266
        %v1287 = vadd.f32 %v1163, %v1267
        %v1288 = vadd.f32 %v1164, %v1268
        %v1289 = vadd.f32 %v1165, %v1269
        %v1290 = vadd.f32 %v1166, %v1270
        %v1291 = vadd.f32 %v1167, %v1271
        %v1292 = vadd.f32 %v1168, %v1272
        %v1293 = vadd.f32 %v1169, %v1273
        %v1294 = vld [vmem:[%s7] sm:$0x1]
        %v1296 = vlaneseq
        %v1297 = vshrl.u32 %v1296, 7
        %v1298 = vsub.s32 0, %v1297
        %v1299 = vrot.slane %v1294, %v1298
        %v1301 = vmul.f32 %v1274, %v1299
        %v1302 = vmul.f32 %v1275, %v1299
        %v1303 = vmul.f32 %v1276, %v1299
        %v1304 = vmul.f32 %v1277, %v1299
        %v1305 = vmul.f32 %v1278, %v1299
        %v1306 = vmul.f32 %v1279, %v1299
        %v1307 = vmul.f32 %v1280, %v1299
        %v1308 = vmul.f32 %v1281, %v1299
        %v1309 = vmul.f32 %v1282, %v1299
        %v1310 = vmul.f32 %v1283, %v1299
        %v1311 = vmul.f32 %v1284, %v1299
        %v1312 = vmul.f32 %v1285, %v1299
        %v1313 = vmul.f32 %v1286, %v1299
        %v1314 = vmul.f32 %v1287, %v1299
        %v1315 = vmul.f32 %v1288, %v1299
        %v1316 = vmul.f32 %v1289, %v1299
        %v1317 = vmul.f32 %v1290, %v1299
        %v1318 = vmul.f32 %v1291, %v1299
        %v1319 = vmul.f32 %v1292, %v1299
        %v1320 = vmul.f32 %v1293, %v1299
        %v1321 = vld [vmem:[%s8] sm:$0x1]
        %v1323 = vlaneseq
        %v1324 = vshrl.u32 %v1323, 7
        %v1325 = vsub.s32 0, %v1324
        %v1326 = vrot.slane %v1321, %v1325
        %v1328 = vadd.f32 %v1301, %v1326
        %v1329 = vadd.f32 %v1302, %v1326
        %v1330 = vadd.f32 %v1303, %v1326
        %v1331 = vadd.f32 %v1304, %v1326
        %v1332 = vadd.f32 %v1305, %v1326
        %v1333 = vadd.f32 %v1306, %v1326
        %v1334 = vadd.f32 %v1307, %v1326
        %v1335 = vadd.f32 %v1308, %v1326
        %v1336 = vadd.f32 %v1309, %v1326
        %v1337 = vadd.f32 %v1310, %v1326
        %v1338 = vadd.f32 %v1311, %v1326
        %v1339 = vadd.f32 %v1312, %v1326
        %v1340 = vadd.f32 %v1313, %v1326
        %v1341 = vadd.f32 %v1314, %v1326
        %v1342 = vadd.f32 %v1315, %v1326
        %v1343 = vadd.f32 %v1316, %v1326
        %v1344 = vadd.f32 %v1317, %v1326
        %v1345 = vadd.f32 %v1318, %v1326
        %v1346 = vadd.f32 %v1319, %v1326
        %v1347 = vadd.f32 %v1320, %v1326
        %v1348 = vld [vmem:[%s710] sm:$0xf]
        %v1349 = vld [vmem:[%s710 + $0x4] sm:$0xf]
        %v1350 = vld [vmem:[%s696] sm:$0xf]
        %v1351 = vld [vmem:[%s696 + $0x4] sm:$0xf]
        %v1352 = vld [vmem:[%s696 + $0x8] sm:$0xf]
        %v1353 = vld [vmem:[%s696 + $0xc] sm:$0xf]
        %v1354 = vld [vmem:[%s696 + $0x10] sm:$0xf]
        %v1355 = vld [vmem:[%s696 + $0x14] sm:$0xf]
        %v1356 = vld [vmem:[%s696 + $0x18] sm:$0xf]
        %v1357 = vld [vmem:[%s696 + $0x1c] sm:$0xf]
        %v1358 = vld [vmem:[%s727] sm:$0xf]
        %v1359 = vld [vmem:[%s727 + $0x4] sm:$0xf]
        %v1360 = vunpack.c.l.bf16 %v1348
        %v1361 = vunpack.c.l.bf16 %v1349
        %v1362 = vunpack.c.l.bf16 %v1350
        %v1363 = vunpack.c.l.bf16 %v1351
        %v1364 = vunpack.c.l.bf16 %v1352
        %v1365 = vunpack.c.l.bf16 %v1353
        %v1366 = vunpack.c.l.bf16 %v1354
        %v1367 = vunpack.c.l.bf16 %v1355
        %v1368 = vunpack.c.l.bf16 %v1356
        %v1369 = vunpack.c.l.bf16 %v1357
        %v1370 = vunpack.c.l.bf16 %v1358
        %v1371 = vunpack.c.l.bf16 %v1359
        %p1372 = scmp.eq.s32.totalorder %s31, 0
        %s1373 = scalar_select %p1372, 0.0, 1.0
        %p1374 = scmp.eq.s32.totalorder %s31, 1
        %s1375 = scalar_select %p1374, 0.0, 1.0
        %v1376 = vmul.f32 %v1360, 0.75
        %v1377 = vmul.f32 %v1361, 0.75
        %v1378 = vmul.f32 %v1362, 0.25
        %v1379 = vmul.f32 %v1363, 0.25
        %v1380 = vadd.f32 %v1376, %v1378
        %v1381 = vadd.f32 %v1377, %v1379
        %v1382 = vadd.f32 %v1380, %v1328
        %v1383 = vadd.f32 %v1381, %v1329
        %v1384 = vstv %s1373
        %v1385 = vmul.f32 %v1382, %v1384
        %v1386 = vmul.f32 %v1383, %v1384
        %v1387 = vmul.f32 %v1368, 0.25
        %v1388 = vmul.f32 %v1369, 0.25
        %v1389 = vmul.f32 %v1370, 0.75
        %v1390 = vmul.f32 %v1371, 0.75
        %v1391 = vadd.f32 %v1387, %v1389
        %v1392 = vadd.f32 %v1388, %v1390
        %v1393 = vadd.f32 %v1391, %v1346
        %v1394 = vadd.f32 %v1392, %v1347
        %v1395 = vstv %s1375
        %v1396 = vmul.f32 %v1393, %v1395
        %v1397 = vmul.f32 %v1394, %v1395
        %v1398 = vmul.f32 %v1360, 0.25
        %v1399 = vmul.f32 %v1361, 0.25
        %v1400 = vmul.f32 %v1364, 0.25
        %v1401 = vmul.f32 %v1365, 0.25
        %v1402 = vmul.f32 %v1366, 0.25
        %v1403 = vmul.f32 %v1367, 0.25
        %v1404 = vmul.f32 %v1362, 0.75
        %v1405 = vmul.f32 %v1363, 0.75
        %v1406 = vmul.f32 %v1364, 0.75
        %v1407 = vmul.f32 %v1365, 0.75
        %v1408 = vmul.f32 %v1366, 0.75
        %v1409 = vmul.f32 %v1367, 0.75
        %v1410 = vmul.f32 %v1368, 0.75
        %v1411 = vmul.f32 %v1369, 0.75
        %v1412 = vadd.f32 %v1398, %v1404
        %v1413 = vadd.f32 %v1399, %v1405
        %v1414 = vadd.f32 %v1378, %v1406
        %v1415 = vadd.f32 %v1379, %v1407
        %v1416 = vadd.f32 %v1400, %v1408
        %v1417 = vadd.f32 %v1401, %v1409
        %v1418 = vadd.f32 %v1402, %v1410
        %v1419 = vadd.f32 %v1403, %v1411
        %v1420 = vmul.f32 %v1370, 0.25
        %v1421 = vmul.f32 %v1371, 0.25
        %v1422 = vadd.f32 %v1404, %v1400
        %v1423 = vadd.f32 %v1405, %v1401
        %v1424 = vadd.f32 %v1406, %v1402
        %v1425 = vadd.f32 %v1407, %v1403
        %v1426 = vadd.f32 %v1408, %v1387
        %v1427 = vadd.f32 %v1409, %v1388
        %v1428 = vadd.f32 %v1410, %v1420
        %v1429 = vadd.f32 %v1411, %v1421
        %v1430 = vadd.f32 %v1412, %v1330
        %v1431 = vadd.f32 %v1413, %v1331
        %v1432 = vadd.f32 %v1422, %v1332
        %v1433 = vadd.f32 %v1423, %v1333
        %v1434 = vadd.f32 %v1414, %v1334
        %v1435 = vadd.f32 %v1415, %v1335
        %v1436 = vadd.f32 %v1424, %v1336
        %v1437 = vadd.f32 %v1425, %v1337
        %v1438 = vadd.f32 %v1416, %v1338
        %v1439 = vadd.f32 %v1417, %v1339
        %v1440 = vadd.f32 %v1426, %v1340
        %v1441 = vadd.f32 %v1427, %v1341
        %v1442 = vadd.f32 %v1418, %v1342
        %v1443 = vadd.f32 %v1419, %v1343
        %v1444 = vadd.f32 %v1428, %v1344
        %v1445 = vadd.f32 %v1429, %v1345
        %v1446 = vpack.c.bf16 %v1386, %v1385
        %v1447 = vpack.c.bf16 %v1431, %v1430
        %v1448 = vpack.c.bf16 %v1433, %v1432
        %v1449 = vpack.c.bf16 %v1435, %v1434
        %v1450 = vpack.c.bf16 %v1437, %v1436
        %v1451 = vpack.c.bf16 %v1439, %v1438
        %v1452 = vpack.c.bf16 %v1441, %v1440
        %v1453 = vpack.c.bf16 %v1443, %v1442
        %v1454 = vpack.c.bf16 %v1445, %v1444
        %v1455 = vpack.c.bf16 %v1397, %v1396
        %v1456 = vpack.c.bf16 0.0, 0.0
        %v1458 = vshrl.u32 %v1446, 16
        %v1460 = vrot.slane %v1458, 7
        %v1461 = vshll.u32 %v1446, 16
        %v1463 = vor.u32 %v1460, %v1461
        %v1465 = vshrl.u32 %v1447, 16
        %v1467 = vrot.slane %v1465, 7
        %v1468 = vshll.u32 %v1447, 16
        %v1470 = vor.u32 %v1467, %v1468
        %v1472 = vshrl.u32 %v1448, 16
        %v1474 = vrot.slane %v1472, 7
        %v1475 = vshll.u32 %v1448, 16
        %v1477 = vor.u32 %v1474, %v1475
        %v1479 = vshrl.u32 %v1449, 16
        %v1481 = vrot.slane %v1479, 7
        %v1482 = vshll.u32 %v1449, 16
        %v1484 = vor.u32 %v1481, %v1482
        %v1486 = vshrl.u32 %v1450, 16
        %v1488 = vrot.slane %v1486, 7
        %v1489 = vshll.u32 %v1450, 16
        %v1491 = vor.u32 %v1488, %v1489
        %v1493 = vshrl.u32 %v1451, 16
        %v1495 = vrot.slane %v1493, 7
        %v1496 = vshll.u32 %v1451, 16
        %v1498 = vor.u32 %v1495, %v1496
        %v1500 = vshrl.u32 %v1452, 16
        %v1502 = vrot.slane %v1500, 7
        %v1503 = vshll.u32 %v1452, 16
        %v1505 = vor.u32 %v1502, %v1503
        %v1507 = vshrl.u32 %v1453, 16
        %v1509 = vrot.slane %v1507, 7
        %v1510 = vshll.u32 %v1453, 16
        %v1512 = vor.u32 %v1509, %v1510
        %v1514 = vshrl.u32 %v1454, 16
        %v1516 = vrot.slane %v1514, 7
        %v1517 = vshll.u32 %v1454, 16
        %v1519 = vor.u32 %v1516, %v1517
        %v1521 = vshrl.u32 %v1455, 16
        %v1523 = vrot.slane %v1521, 7
        %v1524 = vshll.u32 %v1455, 16
        %v1526 = vor.u32 %v1523, %v1524
        %v1528 = vshrl.u32 %v1456, 16
        %v1530 = vrot.slane %v1528, 7
        %v1531 = vshll.u32 %v1456, 16
        %v1533 = vor.u32 %v1530, %v1531
        %vm1555 = vcmask 1040384
        %vm1556 = vsmask.f32 256
        %vm1557 = vmand %vm1555, %vm1556
        %v1558 = vsel %vm1557, 0, %v1463
        %v1559 = vsel %vm1557, 0, %v1470
        %v1560 = vsel %vm1557, 0, %v1477
        %v1561 = vsel %vm1557, 0, %v1484
        %v1562 = vsel %vm1557, 0, %v1491
        %v1563 = vsel %vm1557, 0, %v1498
        %v1564 = vsel %vm1557, 0, %v1505
        %v1565 = vsel %vm1557, 0, %v1512
        %v1566 = vsel %vm1557, 0, %v1519
        %v1567 = vsel %vm1557, 0, %v1526
        %v1568 = vsel %vm1557, 0, %v1533
        %v1569 = vsel %vm1557, %v1460, 0
        %v1570 = vsel %vm1557, %v1467, 0
        %v1571 = vsel %vm1557, %v1474, 0
        %v1572 = vsel %vm1557, %v1481, 0
        %v1573 = vsel %vm1557, %v1488, 0
        %v1574 = vsel %vm1557, %v1495, 0
        %v1575 = vsel %vm1557, %v1502, 0
        %v1576 = vsel %vm1557, %v1509, 0
        %v1577 = vsel %vm1557, %v1516, 0
        %v1578 = vsel %vm1557, %v1523, 0
        %v1600 = vunpack.c.l.b16 %v1558
        %v1601 = vunpack.c.h.b16 %v1558
        %v1602 = vunpack.c.l.b16 %v1569
        %v1603 = vunpack.c.l.b16 %v1559
        %v1604 = vunpack.c.h.b16 %v1559
        %v1605 = vunpack.c.l.b16 %v1570
        %v1606 = vunpack.c.l.b16 %v1560
        %v1607 = vunpack.c.h.b16 %v1560
        %v1608 = vunpack.c.l.b16 %v1571
        %v1609 = vunpack.c.l.b16 %v1561
        %v1610 = vunpack.c.h.b16 %v1561
        %v1611 = vunpack.c.l.b16 %v1572
        %v1612 = vunpack.c.l.b16 %v1562
        %v1613 = vunpack.c.h.b16 %v1562
        %v1614 = vunpack.c.l.b16 %v1573
        %v1615 = vunpack.c.l.b16 %v1563
        %v1616 = vunpack.c.h.b16 %v1563
        %v1617 = vunpack.c.l.b16 %v1574
        %v1618 = vunpack.c.l.b16 %v1564
        %v1619 = vunpack.c.h.b16 %v1564
        %v1620 = vunpack.c.l.b16 %v1575
        %v1621 = vunpack.c.l.b16 %v1565
        %v1622 = vunpack.c.h.b16 %v1565
        %v1623 = vunpack.c.l.b16 %v1576
        %v1624 = vunpack.c.l.b16 %v1566
        %v1625 = vunpack.c.h.b16 %v1566
        %v1626 = vunpack.c.l.b16 %v1577
        %v1627 = vunpack.c.l.b16 %v1567
        %v1628 = vunpack.c.h.b16 %v1567
        %v1629 = vunpack.c.l.b16 %v1578
        %v1630 = vunpack.c.l.b16 %v1568
        %v1631 = vld [vmem:[%s9] sm:$0xf]
        %v1632 = vld [vmem:[%s9 + $0x4] sm:$0xf]
        %v1633 = vld [vmem:[%s9 + $0x8] sm:$0xf]
        %v1634 = vld [vmem:[%s9 + $0xc] sm:$0xf]
        %s1635 = scalar_lea.vmem %s9, 16
        %v1636 = vld [vmem:[%s1635] sm:$0xf]
        %v1637 = vld [vmem:[%s1635 + $0x4] sm:$0xf]
        %v1638 = vld [vmem:[%s1635 + $0x8] sm:$0xf]
        %v1639 = vld [vmem:[%s1635 + $0xc] sm:$0xf]
        %v1640 = vpack.c.b16 %v1601, %v1600
        %v1641 = vpack.c.b16 %v1603, %v1602
        %v1642 = vpack.c.b16 %v1605, %v1604
        %v1643 = vpack.c.b16 %v1607, %v1606
        %v1644 = vpack.c.b16 %v1609, %v1608
        %v1645 = vpack.c.b16 %v1611, %v1610
        %v1646 = vpack.c.b16 %v1613, %v1612
        %v1647 = vpack.c.b16 %v1615, %v1614
        %v1648 = vpack.c.b16 %v1617, %v1616
        %v1649 = vpack.c.b16 %v1619, %v1618
        %v1650 = vpack.c.b16 %v1621, %v1620
        %v1651 = vpack.c.b16 %v1623, %v1622
        %v1652 = vpack.c.b16 %v1624, %v1624
        %vm1653 = vsmask.f32 7424
        %v1655 = vshrl.u32 %v1640, 16
        %v1657 = vshll.u32 %v1640, 16
        %v1659 = vrot.slane %v1657, 1
        %v1660 = vor.u32 %v1655, %v1659
        %v1662 = vshll.u32 %v1641, 16
        %v1664 = vrot.slane %v1662, 1
        %v1665 = vsel %vm1653, %v1660, %v1664
        %v1666 = vshrl.u32 %v1641, 16
        %v1668 = vor.u32 %v1666, %v1664
        %v1670 = vshll.u32 %v1642, 16
        %v1672 = vrot.slane %v1670, 1
        %v1673 = vsel %vm1653, %v1668, %v1672
        %v1674 = vshrl.u32 %v1642, 16
        %v1676 = vor.u32 %v1674, %v1672
        %v1678 = vshll.u32 %v1643, 16
        %v1680 = vrot.slane %v1678, 1
        %v1681 = vsel %vm1653, %v1676, %v1680
        %v1682 = vshrl.u32 %v1643, 16
        %v1684 = vor.u32 %v1682, %v1680
        %v1686 = vshll.u32 %v1644, 16
        %v1688 = vrot.slane %v1686, 1
        %v1689 = vsel %vm1653, %v1684, %v1688
        %v1690 = vshrl.u32 %v1644, 16
        %v1692 = vor.u32 %v1690, %v1688
        %v1694 = vshll.u32 %v1645, 16
        %v1696 = vrot.slane %v1694, 1
        %v1697 = vsel %vm1653, %v1692, %v1696
        %v1698 = vshrl.u32 %v1645, 16
        %v1700 = vor.u32 %v1698, %v1696
        %v1702 = vshll.u32 %v1646, 16
        %v1704 = vrot.slane %v1702, 1
        %v1705 = vsel %vm1653, %v1700, %v1704
        %v1706 = vshrl.u32 %v1646, 16
        %v1708 = vor.u32 %v1706, %v1704
        %v1710 = vshll.u32 %v1647, 16
        %v1712 = vrot.slane %v1710, 1
        %v1713 = vsel %vm1653, %v1708, %v1712
        %v1714 = vshrl.u32 %v1647, 16
        %v1716 = vor.u32 %v1714, %v1712
        %v1718 = vshll.u32 %v1648, 16
        %v1720 = vrot.slane %v1718, 1
        %v1721 = vsel %vm1653, %v1716, %v1720
        %v1722 = vshrl.u32 %v1648, 16
        %v1724 = vor.u32 %v1722, %v1720
        %v1726 = vshll.u32 %v1649, 16
        %v1728 = vrot.slane %v1726, 1
        %v1729 = vsel %vm1653, %v1724, %v1728
        %v1730 = vshrl.u32 %v1649, 16
        %v1732 = vor.u32 %v1730, %v1728
        %v1734 = vshll.u32 %v1650, 16
        %v1736 = vrot.slane %v1734, 1
        %v1737 = vsel %vm1653, %v1732, %v1736
        %v1738 = vshrl.u32 %v1650, 16
        %v1740 = vor.u32 %v1738, %v1736
        %v1742 = vshll.u32 %v1651, 16
        %v1744 = vrot.slane %v1742, 1
        %v1745 = vsel %vm1653, %v1740, %v1744
        %v1746 = vshrl.u32 %v1651, 16
        %v1748 = vor.u32 %v1746, %v1744
        %v1750 = vshll.u32 %v1652, 16
        %v1752 = vrot.slane %v1750, 1
        %v1753 = vsel %vm1653, %v1748, %v1752
        %v1758 = vunpack.c.l.b16 %v1636
        %v1759 = vunpack.c.l.b16 %v1637
        %v1760 = vunpack.c.l.b16 %v1638
        %v1761 = vunpack.c.l.b16 %v1639
        %v1762 = vpack.c.b16 %v1759, %v1758
        %v1763 = vpack.c.b16 %v1761, %v1760
        %vm1766 = vcmask 261120
        %v1768 = vsel %vm1766, %v1665, 0
        %v1771 = vsel %vm1766, %v1673, 0
        %v1774 = vsel %vm1766, %v1681, 0
        %v1777 = vsel %vm1766, %v1689, 0
        %v1780 = vsel %vm1766, %v1697, 0
        %v1783 = vsel %vm1766, %v1705, 0
        %v1786 = vsel %vm1766, %v1713, 0
        %v1789 = vsel %vm1766, %v1721, 0
        %v1792 = vsel %vm1766, %v1729, 0
        %v1795 = vsel %vm1766, %v1737, 0
        %v1798 = vsel %vm1766, %v1745, 0
        %v1801 = vsel %vm1766, %v1753, 0
        %1803 = vmatprep.subr.bf16.mxu0 0
        %1804 = vmatpush1.bf16.msra.mxu0 %v1762
        %1805 = vmatprep.subr.bf16.mxu0 0
        %1806 = vmatpush1.bf16.msra.mxu0 %v1763
        %1807 = vmatprep.subr.bf16.mxu0 0
        %1808 = vmatpush1.bf16.msra.mxu0 0
        %1809 = vmatprep.subr.bf16.mxu0 0
        %1810 = vmatpush1.bf16.msra.mxu0 0
        %1811 = vmatprep.subr.bf16.mxu0 0
        %1812 = vmatpush1.bf16.msra.mxu0 0
        %1813 = vmatprep.subr.bf16.mxu0 0
        %1814 = vmatpush1.bf16.msra.mxu0 0
        %1815 = vmatprep.subr.bf16.mxu0 0
        %1816 = vmatpush1.bf16.msra.mxu0 0
        %1817 = vmatprep.subr.bf16.mxu0 0
        %1818 = vmatpush1.bf16.msra.mxu0 0
        %1819 = vmatprep.subr.bf16.mxu0 0
        %1820 = vmatpush1.bf16.msra.mxu0 0
        %1821 = vmatprep.subr.bf16.mxu0 0
        %1822 = vmatpush1.bf16.msra.mxu0 0
        %1823 = vmatprep.subr.bf16.mxu0 0
        %1824 = vmatpush1.bf16.msra.mxu0 0
        %1825 = vmatprep.subr.bf16.mxu0 0
        %1826 = vmatpush1.bf16.msra.mxu0 0
        %1827 = vmatprep.subr.bf16.mxu0 0
        %1828 = vmatpush1.bf16.msra.mxu0 0
        %1829 = vmatprep.subr.bf16.mxu0 0
        %1830 = vmatpush1.bf16.msra.mxu0 0
        %1831 = vmatprep.subr.bf16.mxu0 0
        %1832 = vmatpush1.bf16.msra.mxu0 0
        %1833 = vmatprep.subr.bf16.mxu0 0
        %1834 = vmatpush1.bf16.msra.mxu0 0
        %1835 = vmatprep.mubr.bf16.mxu0 0
        %1836 = vmatmul.mubr.bf16.gmra.mrb[0].mxu0 %v1768
        %v1837 = vpop.f32.mrb[0].mxu0
        %v1838 = vadd.f32 0.0, %v1837
        %v1839 = vpop.f32.mrb[0].mxu0
        %v1840 = vpop.f32.mrb[0].mxu0
        %v1841 = vadd.f32 0.0, %v1840
        %v1842 = vpop.f32.mrb[0].mxu0
        %1843 = vmatprep.mubr.bf16.mxu0 0
        %1844 = vmatmul.mubr.bf16.gmra.mrb[0].mxu0 %v1771
        %v1845 = vpop.f32.mrb[0].mxu0
        %v1846 = vpop.f32.mrb[0].mxu0
        %v1847 = vpop.f32.mrb[0].mxu0
        %v1848 = vadd.f32 0.0, %v1847
        %v1849 = vpop.f32.mrb[0].mxu0
        %1850 = vmatprep.mubr.bf16.mxu0 0
        %1851 = vmatmul.mubr.bf16.gmra.mrb[0].mxu0 %v1774
        %v1852 = vpop.f32.mrb[0].mxu0
        %v1853 = vadd.f32 0.0, %v1852
        %v1854 = vpop.f32.mrb[0].mxu0
        %v1855 = vpop.f32.mrb[0].mxu0
        %v1856 = vpop.f32.mrb[0].mxu0
        %1857 = vmatprep.mubr.bf16.mxu0 0
        %1858 = vmatmul.mubr.bf16.gmra.mrb[0].mxu0 %v1777
        %v1859 = vpop.f32.mrb[0].mxu0
        %v1860 = vadd.f32 0.0, %v1859
        %v1861 = vpop.f32.mrb[0].mxu0
        %v1862 = vpop.f32.mrb[0].mxu0
        %v1863 = vadd.f32 0.0, %v1862
        %v1864 = vpop.f32.mrb[0].mxu0
        %1865 = vmatprep.mubr.bf16.mxu0 0
        %1866 = vmatmul.mubr.bf16.gmra.mrb[0].mxu0 %v1780
        %v1867 = vpop.f32.mrb[0].mxu0
        %v1868 = vpop.f32.mrb[0].mxu0
        %v1869 = vpop.f32.mrb[0].mxu0
        %v1870 = vadd.f32 0.0, %v1869
        %v1871 = vpop.f32.mrb[0].mxu0
        %1872 = vmatprep.mubr.bf16.mxu0 0
        %1873 = vmatmul.mubr.bf16.gmra.mrb[0].mxu0 %v1783
        %v1874 = vpop.f32.mrb[0].mxu0
        %v1875 = vadd.f32 0.0, %v1874
        %v1876 = vpop.f32.mrb[0].mxu0
        %v1877 = vpop.f32.mrb[0].mxu0
        %v1878 = vpop.f32.mrb[0].mxu0
        %1879 = vmatprep.mubr.bf16.mxu0 0
        %1880 = vmatmul.mubr.bf16.gmra.mrb[0].mxu0 %v1786
        %v1881 = vpop.f32.mrb[0].mxu0
        %v1882 = vadd.f32 0.0, %v1881
        %v1883 = vpop.f32.mrb[0].mxu0
        %v1884 = vpop.f32.mrb[0].mxu0
        %v1885 = vadd.f32 0.0, %v1884
        %v1886 = vpop.f32.mrb[0].mxu0
        %1887 = vmatprep.mubr.bf16.mxu0 0
        %1888 = vmatmul.mubr.bf16.gmra.mrb[0].mxu0 %v1789
        %v1889 = vpop.f32.mrb[0].mxu0
        %v1890 = vpop.f32.mrb[0].mxu0
        %v1891 = vpop.f32.mrb[0].mxu0
        %v1892 = vadd.f32 0.0, %v1891
        %v1893 = vpop.f32.mrb[0].mxu0
        %1894 = vmatprep.mubr.bf16.mxu0 0
        %1895 = vmatmul.mubr.bf16.gmra.mrb[0].mxu0 %v1792
        %v1896 = vpop.f32.mrb[0].mxu0
        %v1897 = vadd.f32 0.0, %v1896
        %v1898 = vpop.f32.mrb[0].mxu0
        %v1899 = vpop.f32.mrb[0].mxu0
        %v1900 = vpop.f32.mrb[0].mxu0
        %1901 = vmatprep.mubr.bf16.mxu0 0
        %1902 = vmatmul.mubr.bf16.gmra.mrb[0].mxu0 %v1795
        %v1903 = vpop.f32.mrb[0].mxu0
        %v1904 = vadd.f32 0.0, %v1903
        %v1905 = vpop.f32.mrb[0].mxu0
        %v1906 = vpop.f32.mrb[0].mxu0
        %v1907 = vadd.f32 0.0, %v1906
        %v1908 = vpop.f32.mrb[0].mxu0
        %1909 = vmatprep.mubr.bf16.mxu0 0
        %1910 = vmatmul.mubr.bf16.gmra.mrb[0].mxu0 %v1798
        %v1911 = vpop.f32.mrb[0].mxu0
        %v1912 = vpop.f32.mrb[0].mxu0
        %v1913 = vpop.f32.mrb[0].mxu0
        %v1914 = vadd.f32 0.0, %v1913
        %v1915 = vpop.f32.mrb[0].mxu0
        %1916 = vmatprep.mubr.bf16.mxu0 0
        %1917 = vmatmul.mubr.bf16.gmra.mrb[0].mxu0 %v1801
        %v1918 = vpop.f32.mrb[0].mxu0
        %v1919 = vadd.f32 0.0, %v1918
        %v1920 = vpop.f32.mrb[0].mxu0
        %v1921 = vpop.f32.mrb[0].mxu0
        %v1922 = vpop.f32.mrb[0].mxu0
        %1923 = vdwg.mxu0
        %v1928 = vunpack.c.l.b16 %v1631
        %v1929 = vunpack.c.l.b16 %v1632
        %v1930 = vunpack.c.l.b16 %v1633
        %v1931 = vunpack.c.l.b16 %v1634
        %v1932 = vpack.c.b16 %v1929, %v1928
        %v1933 = vpack.c.b16 %v1931, %v1930
        %v1936 = vsel %vm1766, %v1640, 0
        %v1938 = vsel %vm1766, %v1641, 0
        %v1940 = vsel %vm1766, %v1642, 0
        %v1942 = vsel %vm1766, %v1643, 0
        %v1944 = vsel %vm1766, %v1644, 0
        %v1946 = vsel %vm1766, %v1645, 0
        %v1948 = vsel %vm1766, %v1646, 0
        %v1950 = vsel %vm1766, %v1647, 0
        %v1952 = vsel %vm1766, %v1648, 0
        %v1954 = vsel %vm1766, %v1649, 0
        %v1956 = vsel %vm1766, %v1650, 0
        %v1958 = vsel %vm1766, %v1651, 0
        %1960 = vmatprep.subr.bf16.mxu0 0
        %1961 = vmatpush1.bf16.msra.mxu0 %v1932
        %1962 = vmatprep.subr.bf16.mxu0 0
        %1963 = vmatpush1.bf16.msra.mxu0 %v1933
        %1964 = vmatprep.subr.bf16.mxu0 0
        %1965 = vmatpush1.bf16.msra.mxu0 0
        %1966 = vmatprep.subr.bf16.mxu0 0
        %1967 = vmatpush1.bf16.msra.mxu0 0
        %1968 = vmatprep.subr.bf16.mxu0 0
        %1969 = vmatpush1.bf16.msra.mxu0 0
        %1970 = vmatprep.subr.bf16.mxu0 0
        %1971 = vmatpush1.bf16.msra.mxu0 0
        %1972 = vmatprep.subr.bf16.mxu0 0
        %1973 = vmatpush1.bf16.msra.mxu0 0
        %1974 = vmatprep.subr.bf16.mxu0 0
        %1975 = vmatpush1.bf16.msra.mxu0 0
        %1976 = vmatprep.subr.bf16.mxu0 0
        %1977 = vmatpush1.bf16.msra.mxu0 0
        %1978 = vmatprep.subr.bf16.mxu0 0
        %1979 = vmatpush1.bf16.msra.mxu0 0
        %1980 = vmatprep.subr.bf16.mxu0 0
        %1981 = vmatpush1.bf16.msra.mxu0 0
        %1982 = vmatprep.subr.bf16.mxu0 0
        %1983 = vmatpush1.bf16.msra.mxu0 0
        %1984 = vmatprep.subr.bf16.mxu0 0
        %1985 = vmatpush1.bf16.msra.mxu0 0
        %1986 = vmatprep.subr.bf16.mxu0 0
        %1987 = vmatpush1.bf16.msra.mxu0 0
        %1988 = vmatprep.subr.bf16.mxu0 0
        %1989 = vmatpush1.bf16.msra.mxu0 0
        %1990 = vmatprep.subr.bf16.mxu0 0
        %1991 = vmatpush1.bf16.msra.mxu0 0
        %1992 = vmatprep.mubr.bf16.mxu0 0
        %1993 = vmatmul.mubr.bf16.gmra.mrb[0].mxu0 %v1936
        %v1994 = vpop.f32.mrb[0].mxu0
        %v1995 = vadd.f32 %v1838, %v1994
        %v1996 = vpop.f32.mrb[0].mxu0
        %v1997 = vpop.f32.mrb[0].mxu0
        %v1998 = vadd.f32 %v1841, %v1997
        %v1999 = vpop.f32.mrb[0].mxu0
        %2000 = vmatprep.mubr.bf16.mxu0 0
        %2001 = vmatmul.mubr.bf16.gmra.mrb[0].mxu0 %v1938
        %v2002 = vpop.f32.mrb[0].mxu0
        %v2003 = vpop.f32.mrb[0].mxu0
        %v2004 = vpop.f32.mrb[0].mxu0
        %v2005 = vadd.f32 %v1848, %v2004
        %v2006 = vpop.f32.mrb[0].mxu0
        %2007 = vmatprep.mubr.bf16.mxu0 0
        %2008 = vmatmul.mubr.bf16.gmra.mrb[0].mxu0 %v1940
        %v2009 = vpop.f32.mrb[0].mxu0
        %v2010 = vadd.f32 %v1853, %v2009
        %v2011 = vpop.f32.mrb[0].mxu0
        %v2012 = vpop.f32.mrb[0].mxu0
        %v2013 = vpop.f32.mrb[0].mxu0
        %2014 = vmatprep.mubr.bf16.mxu0 0
        %2015 = vmatmul.mubr.bf16.gmra.mrb[0].mxu0 %v1942
        %v2016 = vpop.f32.mrb[0].mxu0
        %v2017 = vadd.f32 %v1860, %v2016
        %v2018 = vpop.f32.mrb[0].mxu0
        %v2019 = vpop.f32.mrb[0].mxu0
        %v2020 = vadd.f32 %v1863, %v2019
        %v2021 = vpop.f32.mrb[0].mxu0
        %2022 = vmatprep.mubr.bf16.mxu0 0
        %2023 = vmatmul.mubr.bf16.gmra.mrb[0].mxu0 %v1944
        %v2024 = vpop.f32.mrb[0].mxu0
        %v2025 = vpop.f32.mrb[0].mxu0
        %v2026 = vpop.f32.mrb[0].mxu0
        %v2027 = vadd.f32 %v1870, %v2026
        %v2028 = vpop.f32.mrb[0].mxu0
        %2029 = vmatprep.mubr.bf16.mxu0 0
        %2030 = vmatmul.mubr.bf16.gmra.mrb[0].mxu0 %v1946
        %v2031 = vpop.f32.mrb[0].mxu0
        %v2032 = vadd.f32 %v1875, %v2031
        %v2033 = vpop.f32.mrb[0].mxu0
        %v2034 = vpop.f32.mrb[0].mxu0
        %v2035 = vpop.f32.mrb[0].mxu0
        %2036 = vmatprep.mubr.bf16.mxu0 0
        %2037 = vmatmul.mubr.bf16.gmra.mrb[0].mxu0 %v1948
        %v2038 = vpop.f32.mrb[0].mxu0
        %v2039 = vadd.f32 %v1882, %v2038
        %v2040 = vpop.f32.mrb[0].mxu0
        %v2041 = vpop.f32.mrb[0].mxu0
        %v2042 = vadd.f32 %v1885, %v2041
        %v2043 = vpop.f32.mrb[0].mxu0
        %2044 = vmatprep.mubr.bf16.mxu0 0
        %2045 = vmatmul.mubr.bf16.gmra.mrb[0].mxu0 %v1950
        %v2046 = vpop.f32.mrb[0].mxu0
        %v2047 = vpop.f32.mrb[0].mxu0
        %v2048 = vpop.f32.mrb[0].mxu0
        %v2049 = vadd.f32 %v1892, %v2048
        %v2050 = vpop.f32.mrb[0].mxu0
        %2051 = vmatprep.mubr.bf16.mxu0 0
        %2052 = vmatmul.mubr.bf16.gmra.mrb[0].mxu0 %v1952
        %v2053 = vpop.f32.mrb[0].mxu0
        %v2054 = vadd.f32 %v1897, %v2053
        %v2055 = vpop.f32.mrb[0].mxu0
        %v2056 = vpop.f32.mrb[0].mxu0
        %v2057 = vpop.f32.mrb[0].mxu0
        %2058 = vmatprep.mubr.bf16.mxu0 0
        %2059 = vmatmul.mubr.bf16.gmra.mrb[0].mxu0 %v1954
        %v2060 = vpop.f32.mrb[0].mxu0
        %v2061 = vadd.f32 %v1904, %v2060
        %v2062 = vpop.f32.mrb[0].mxu0
        %v2063 = vpop.f32.mrb[0].mxu0
        %v2064 = vadd.f32 %v1907, %v2063
        %v2065 = vpop.f32.mrb[0].mxu0
        %2066 = vmatprep.mubr.bf16.mxu0 0
        %2067 = vmatmul.mubr.bf16.gmra.mrb[0].mxu0 %v1956
        %v2068 = vpop.f32.mrb[0].mxu0
        %v2069 = vpop.f32.mrb[0].mxu0
        %v2070 = vpop.f32.mrb[0].mxu0
        %v2071 = vadd.f32 %v1914, %v2070
        %v2072 = vpop.f32.mrb[0].mxu0
        %2073 = vmatprep.mubr.bf16.mxu0 0
        %2074 = vmatmul.mubr.bf16.gmra.mrb[0].mxu0 %v1958
        %v2075 = vpop.f32.mrb[0].mxu0
        %v2076 = vadd.f32 %v1919, %v2075
        %v2077 = vpop.f32.mrb[0].mxu0
        %v2078 = vpop.f32.mrb[0].mxu0
        %v2079 = vpop.f32.mrb[0].mxu0
        %2080 = vdwg.mxu0
        %s2081 = scalar_lea.vmem %s9, 32
        %v2082 = vld [vmem:[%s2081] sm:$0xf]
        %v2083 = vld [vmem:[%s2081 + $0x4] sm:$0xf]
        %v2084 = vld [vmem:[%s2081 + $0x8] sm:$0xf]
        %v2085 = vld [vmem:[%s2081 + $0xc] sm:$0xf]
        %vm2086 = vcmask 1046528
        %v2087 = vrot.slane %v1640, 1
        %v2088 = vrot.slane %v1641, 1
        %v2089 = vsel %vm2086, %v2087, %v2088
        %v2090 = vrot.slane %v1642, 1
        %v2091 = vsel %vm2086, %v2088, %v2090
        %v2092 = vrot.slane %v1643, 1
        %v2093 = vsel %vm2086, %v2090, %v2092
        %v2094 = vrot.slane %v1644, 1
        %v2095 = vsel %vm2086, %v2092, %v2094
        %v2096 = vrot.slane %v1645, 1
        %v2097 = vsel %vm2086, %v2094, %v2096
        %v2098 = vrot.slane %v1646, 1
        %v2099 = vsel %vm2086, %v2096, %v2098
        %v2100 = vrot.slane %v1647, 1
        %v2101 = vsel %vm2086, %v2098, %v2100
        %v2102 = vrot.slane %v1648, 1
        %v2103 = vsel %vm2086, %v2100, %v2102
        %v2104 = vrot.slane %v1649, 1
        %v2105 = vsel %vm2086, %v2102, %v2104
        %v2106 = vrot.slane %v1650, 1
        %v2107 = vsel %vm2086, %v2104, %v2106
        %v2108 = vrot.slane %v1651, 1
        %v2109 = vsel %vm2086, %v2106, %v2108
        %v2110 = vrot.slane %v1652, 1
        %v2111 = vsel %vm2086, %v2108, %v2110
        %v2116 = vunpack.c.l.b16 %v2082
        %v2117 = vunpack.c.l.b16 %v2083
        %v2118 = vunpack.c.l.b16 %v2084
        %v2119 = vunpack.c.l.b16 %v2085
        %v2120 = vpack.c.b16 %v2117, %v2116
        %v2121 = vpack.c.b16 %v2119, %v2118
        %v2125 = vsel %vm1766, %v2089, 0
        %v2128 = vsel %vm1766, %v2091, 0
        %v2131 = vsel %vm1766, %v2093, 0
        %v2134 = vsel %vm1766, %v2095, 0
        %v2137 = vsel %vm1766, %v2097, 0
        %v2140 = vsel %vm1766, %v2099, 0
        %v2143 = vsel %vm1766, %v2101, 0
        %v2146 = vsel %vm1766, %v2103, 0
        %v2149 = vsel %vm1766, %v2105, 0
        %v2152 = vsel %vm1766, %v2107, 0
        %v2155 = vsel %vm1766, %v2109, 0
        %v2158 = vsel %vm1766, %v2111, 0
        %2160 = vmatprep.subr.bf16.mxu0 0
        %2161 = vmatpush1.bf16.msra.mxu0 %v2120
        %2162 = vmatprep.subr.bf16.mxu0 0
        %2163 = vmatpush1.bf16.msra.mxu0 %v2121
        %2164 = vmatprep.subr.bf16.mxu0 0
        %2165 = vmatpush1.bf16.msra.mxu0 0
        %2166 = vmatprep.subr.bf16.mxu0 0
        %2167 = vmatpush1.bf16.msra.mxu0 0
        %2168 = vmatprep.subr.bf16.mxu0 0
        %2169 = vmatpush1.bf16.msra.mxu0 0
        %2170 = vmatprep.subr.bf16.mxu0 0
        %2171 = vmatpush1.bf16.msra.mxu0 0
        %2172 = vmatprep.subr.bf16.mxu0 0
        %2173 = vmatpush1.bf16.msra.mxu0 0
        %2174 = vmatprep.subr.bf16.mxu0 0
        %2175 = vmatpush1.bf16.msra.mxu0 0
        %2176 = vmatprep.subr.bf16.mxu0 0
        %2177 = vmatpush1.bf16.msra.mxu0 0
        %2178 = vmatprep.subr.bf16.mxu0 0
        %2179 = vmatpush1.bf16.msra.mxu0 0
        %2180 = vmatprep.subr.bf16.mxu0 0
        %2181 = vmatpush1.bf16.msra.mxu0 0
        %2182 = vmatprep.subr.bf16.mxu0 0
        %2183 = vmatpush1.bf16.msra.mxu0 0
        %2184 = vmatprep.subr.bf16.mxu0 0
        %2185 = vmatpush1.bf16.msra.mxu0 0
        %2186 = vmatprep.subr.bf16.mxu0 0
        %2187 = vmatpush1.bf16.msra.mxu0 0
        %2188 = vmatprep.subr.bf16.mxu0 0
        %2189 = vmatpush1.bf16.msra.mxu0 0
        %2190 = vmatprep.subr.bf16.mxu0 0
        %2191 = vmatpush1.bf16.msra.mxu0 0
        %2192 = vmatprep.mubr.bf16.mxu0 0
        %2193 = vmatmul.mubr.bf16.gmra.mrb[0].mxu0 %v2125
        %v2194 = vpop.f32.mrb[0].mxu0
        %v2195 = vadd.f32 0.0, %v2194
        %v2196 = vpop.f32.mrb[0].mxu0
        %v2197 = vpop.f32.mrb[0].mxu0
        %v2198 = vadd.f32 0.0, %v2197
        %v2199 = vpop.f32.mrb[0].mxu0
        %2200 = vmatprep.mubr.bf16.mxu0 0
        %2201 = vmatmul.mubr.bf16.gmra.mrb[0].mxu0 %v2128
        %v2202 = vpop.f32.mrb[0].mxu0
        %v2203 = vpop.f32.mrb[0].mxu0
        %v2204 = vpop.f32.mrb[0].mxu0
        %v2205 = vadd.f32 0.0, %v2204
        %v2206 = vpop.f32.mrb[0].mxu0
        %2207 = vmatprep.mubr.bf16.mxu0 0
        %2208 = vmatmul.mubr.bf16.gmra.mrb[0].mxu0 %v2131
        %v2209 = vpop.f32.mrb[0].mxu0
        %v2210 = vadd.f32 0.0, %v2209
        %v2211 = vpop.f32.mrb[0].mxu0
        %v2212 = vpop.f32.mrb[0].mxu0
        %v2213 = vpop.f32.mrb[0].mxu0
        %2214 = vmatprep.mubr.bf16.mxu0 0
        %2215 = vmatmul.mubr.bf16.gmra.mrb[0].mxu0 %v2134
        %v2216 = vpop.f32.mrb[0].mxu0
        %v2217 = vadd.f32 0.0, %v2216
        %v2218 = vpop.f32.mrb[0].mxu0
        %v2219 = vpop.f32.mrb[0].mxu0
        %v2220 = vadd.f32 0.0, %v2219
        %v2221 = vpop.f32.mrb[0].mxu0
        %2222 = vmatprep.mubr.bf16.mxu0 0
        %2223 = vmatmul.mubr.bf16.gmra.mrb[0].mxu0 %v2137
        %v2224 = vpop.f32.mrb[0].mxu0
        %v2225 = vpop.f32.mrb[0].mxu0
        %v2226 = vpop.f32.mrb[0].mxu0
        %v2227 = vadd.f32 0.0, %v2226
        %v2228 = vpop.f32.mrb[0].mxu0
        %2229 = vmatprep.mubr.bf16.mxu0 0
        %2230 = vmatmul.mubr.bf16.gmra.mrb[0].mxu0 %v2140
        %v2231 = vpop.f32.mrb[0].mxu0
        %v2232 = vadd.f32 0.0, %v2231
        %v2233 = vpop.f32.mrb[0].mxu0
        %v2234 = vpop.f32.mrb[0].mxu0
        %v2235 = vpop.f32.mrb[0].mxu0
        %2236 = vmatprep.mubr.bf16.mxu0 0
        %2237 = vmatmul.mubr.bf16.gmra.mrb[0].mxu0 %v2143
        %v2238 = vpop.f32.mrb[0].mxu0
        %v2239 = vadd.f32 0.0, %v2238
        %v2240 = vpop.f32.mrb[0].mxu0
        %v2241 = vpop.f32.mrb[0].mxu0
        %v2242 = vadd.f32 0.0, %v2241
        %v2243 = vpop.f32.mrb[0].mxu0
        %2244 = vmatprep.mubr.bf16.mxu0 0
        %2245 = vmatmul.mubr.bf16.gmra.mrb[0].mxu0 %v2146
        %v2246 = vpop.f32.mrb[0].mxu0
        %v2247 = vpop.f32.mrb[0].mxu0
        %v2248 = vpop.f32.mrb[0].mxu0
        %v2249 = vadd.f32 0.0, %v2248
        %v2250 = vpop.f32.mrb[0].mxu0
        %2251 = vmatprep.mubr.bf16.mxu0 0
        %2252 = vmatmul.mubr.bf16.gmra.mrb[0].mxu0 %v2149
        %v2253 = vpop.f32.mrb[0].mxu0
        %v2254 = vadd.f32 0.0, %v2253
        %v2255 = vpop.f32.mrb[0].mxu0
        %v2256 = vpop.f32.mrb[0].mxu0
        %v2257 = vpop.f32.mrb[0].mxu0
        %2258 = vmatprep.mubr.bf16.mxu0 0
        %2259 = vmatmul.mubr.bf16.gmra.mrb[0].mxu0 %v2152
        %v2260 = vpop.f32.mrb[0].mxu0
        %v2261 = vadd.f32 0.0, %v2260
        %v2262 = vpop.f32.mrb[0].mxu0
        %v2263 = vpop.f32.mrb[0].mxu0
        %v2264 = vadd.f32 0.0, %v2263
        %v2265 = vpop.f32.mrb[0].mxu0
        %2266 = vmatprep.mubr.bf16.mxu0 0
        %2267 = vmatmul.mubr.bf16.gmra.mrb[0].mxu0 %v2155
        %v2268 = vpop.f32.mrb[0].mxu0
        %v2269 = vpop.f32.mrb[0].mxu0
        %v2270 = vpop.f32.mrb[0].mxu0
        %v2271 = vadd.f32 0.0, %v2270
        %v2272 = vpop.f32.mrb[0].mxu0
        %2273 = vmatprep.mubr.bf16.mxu0 0
        %2274 = vmatmul.mubr.bf16.gmra.mrb[0].mxu0 %v2158
        %v2275 = vpop.f32.mrb[0].mxu0
        %v2276 = vadd.f32 0.0, %v2275
        %v2277 = vpop.f32.mrb[0].mxu0
        %v2278 = vpop.f32.mrb[0].mxu0
        %v2279 = vpop.f32.mrb[0].mxu0
        %2280 = vdwg.mxu0
        %v2281 = vadd.f32 %v1995, %v2195
        %v2282 = vadd.f32 %v1998, %v2198
        %v2283 = vadd.f32 %v2005, %v2205
        %v2284 = vadd.f32 %v2010, %v2210
        %v2285 = vadd.f32 %v2017, %v2217
        %v2286 = vadd.f32 %v2020, %v2220
        %v2287 = vadd.f32 %v2027, %v2227
        %v2288 = vadd.f32 %v2032, %v2232
        %v2289 = vadd.f32 %v2039, %v2239
        %v2290 = vadd.f32 %v2042, %v2242
        %v2291 = vadd.f32 %v2049, %v2249
        %v2292 = vadd.f32 %v2054, %v2254
        %v2293 = vadd.f32 %v2061, %v2261
        %v2294 = vadd.f32 %v2064, %v2264
        %v2295 = vadd.f32 %v2071, %v2271
        %v2296 = vadd.f32 %v2076, %v2276
        %s2297 = scalar_lea.vmem %s9, 48
        %v2298 = vld [vmem:[%s2297] sm:$0xf]
        %v2299 = vld [vmem:[%s2297 + $0x4] sm:$0xf]
        %v2300 = vld [vmem:[%s2297 + $0x8] sm:$0xf]
        %v2301 = vld [vmem:[%s2297 + $0xc] sm:$0xf]
        %v2302 = vpack.c.b16 %v1604, %v1603
        %v2303 = vpack.c.b16 %v1606, %v1605
        %v2304 = vpack.c.b16 %v1608, %v1607
        %v2305 = vpack.c.b16 %v1610, %v1609
        %v2306 = vpack.c.b16 %v1612, %v1611
        %v2307 = vpack.c.b16 %v1614, %v1613
        %v2308 = vpack.c.b16 %v1616, %v1615
        %v2309 = vpack.c.b16 %v1618, %v1617
        %v2310 = vpack.c.b16 %v1620, %v1619
        %v2311 = vpack.c.b16 %v1622, %v1621
        %v2312 = vpack.c.b16 %v1624, %v1623
        %v2313 = vpack.c.b16 %v1626, %v1625
        %v2318 = vunpack.c.l.b16 %v2298
        %v2319 = vunpack.c.l.b16 %v2299
        %v2320 = vunpack.c.l.b16 %v2300
        %v2321 = vunpack.c.l.b16 %v2301
        %v2322 = vpack.c.b16 %v2319, %v2318
        %v2323 = vpack.c.b16 %v2321, %v2320
        %v2327 = vsel %vm1766, %v2302, 0
        %v2330 = vsel %vm1766, %v2303, 0
        %v2333 = vsel %vm1766, %v2304, 0
        %v2336 = vsel %vm1766, %v2305, 0
        %v2339 = vsel %vm1766, %v2306, 0
        %v2342 = vsel %vm1766, %v2307, 0
        %v2345 = vsel %vm1766, %v2308, 0
        %v2348 = vsel %vm1766, %v2309, 0
        %v2351 = vsel %vm1766, %v2310, 0
        %v2354 = vsel %vm1766, %v2311, 0
        %v2357 = vsel %vm1766, %v2312, 0
        %v2360 = vsel %vm1766, %v2313, 0
        %2362 = vmatprep.subr.bf16.mxu0 0
        %2363 = vmatpush1.bf16.msra.mxu0 %v2322
        %2364 = vmatprep.subr.bf16.mxu0 0
        %2365 = vmatpush1.bf16.msra.mxu0 %v2323
        %2366 = vmatprep.subr.bf16.mxu0 0
        %2367 = vmatpush1.bf16.msra.mxu0 0
        %2368 = vmatprep.subr.bf16.mxu0 0
        %2369 = vmatpush1.bf16.msra.mxu0 0
        %2370 = vmatprep.subr.bf16.mxu0 0
        %2371 = vmatpush1.bf16.msra.mxu0 0
        %2372 = vmatprep.subr.bf16.mxu0 0
        %2373 = vmatpush1.bf16.msra.mxu0 0
        %2374 = vmatprep.subr.bf16.mxu0 0
        %2375 = vmatpush1.bf16.msra.mxu0 0
        %2376 = vmatprep.subr.bf16.mxu0 0
        %2377 = vmatpush1.bf16.msra.mxu0 0
        %2378 = vmatprep.subr.bf16.mxu0 0
        %2379 = vmatpush1.bf16.msra.mxu0 0
        %2380 = vmatprep.subr.bf16.mxu0 0
        %2381 = vmatpush1.bf16.msra.mxu0 0
        %2382 = vmatprep.subr.bf16.mxu0 0
        %2383 = vmatpush1.bf16.msra.mxu0 0
        %2384 = vmatprep.subr.bf16.mxu0 0
        %2385 = vmatpush1.bf16.msra.mxu0 0
        %2386 = vmatprep.subr.bf16.mxu0 0
        %2387 = vmatpush1.bf16.msra.mxu0 0
        %2388 = vmatprep.subr.bf16.mxu0 0
        %2389 = vmatpush1.bf16.msra.mxu0 0
        %2390 = vmatprep.subr.bf16.mxu0 0
        %2391 = vmatpush1.bf16.msra.mxu0 0
        %2392 = vmatprep.subr.bf16.mxu0 0
        %2393 = vmatpush1.bf16.msra.mxu0 0
        %2394 = vmatprep.mubr.bf16.mxu0 0
        %2395 = vmatmul.mubr.bf16.gmra.mrb[0].mxu0 %v2327
        %v2396 = vpop.f32.mrb[0].mxu0
        %v2397 = vadd.f32 0.0, %v2396
        %v2398 = vpop.f32.mrb[0].mxu0
        %v2399 = vpop.f32.mrb[0].mxu0
        %v2400 = vadd.f32 0.0, %v2399
        %v2401 = vpop.f32.mrb[0].mxu0
        %2402 = vmatprep.mubr.bf16.mxu0 0
        %2403 = vmatmul.mubr.bf16.gmra.mrb[0].mxu0 %v2330
        %v2404 = vpop.f32.mrb[0].mxu0
        %v2405 = vpop.f32.mrb[0].mxu0
        %v2406 = vpop.f32.mrb[0].mxu0
        %v2407 = vadd.f32 0.0, %v2406
        %v2408 = vpop.f32.mrb[0].mxu0
        %2409 = vmatprep.mubr.bf16.mxu0 0
        %2410 = vmatmul.mubr.bf16.gmra.mrb[0].mxu0 %v2333
        %v2411 = vpop.f32.mrb[0].mxu0
        %v2412 = vadd.f32 0.0, %v2411
        %v2413 = vpop.f32.mrb[0].mxu0
        %v2414 = vpop.f32.mrb[0].mxu0
        %v2415 = vpop.f32.mrb[0].mxu0
        %2416 = vmatprep.mubr.bf16.mxu0 0
        %2417 = vmatmul.mubr.bf16.gmra.mrb[0].mxu0 %v2336
        %v2418 = vpop.f32.mrb[0].mxu0
        %v2419 = vadd.f32 0.0, %v2418
        %v2420 = vpop.f32.mrb[0].mxu0
        %v2421 = vpop.f32.mrb[0].mxu0
        %v2422 = vadd.f32 0.0, %v2421
        %v2423 = vpop.f32.mrb[0].mxu0
        %2424 = vmatprep.mubr.bf16.mxu0 0
        %2425 = vmatmul.mubr.bf16.gmra.mrb[0].mxu0 %v2339
        %v2426 = vpop.f32.mrb[0].mxu0
        %v2427 = vpop.f32.mrb[0].mxu0
        %v2428 = vpop.f32.mrb[0].mxu0
        %v2429 = vadd.f32 0.0, %v2428
        %v2430 = vpop.f32.mrb[0].mxu0
        %2431 = vmatprep.mubr.bf16.mxu0 0
        %2432 = vmatmul.mubr.bf16.gmra.mrb[0].mxu0 %v2342
        %v2433 = vpop.f32.mrb[0].mxu0
        %v2434 = vadd.f32 0.0, %v2433
        %v2435 = vpop.f32.mrb[0].mxu0
        %v2436 = vpop.f32.mrb[0].mxu0
        %v2437 = vpop.f32.mrb[0].mxu0
        %2438 = vmatprep.mubr.bf16.mxu0 0
        %2439 = vmatmul.mubr.bf16.gmra.mrb[0].mxu0 %v2345
        %v2440 = vpop.f32.mrb[0].mxu0
        %v2441 = vadd.f32 0.0, %v2440
        %v2442 = vpop.f32.mrb[0].mxu0
        %v2443 = vpop.f32.mrb[0].mxu0
        %v2444 = vadd.f32 0.0, %v2443
        %v2445 = vpop.f32.mrb[0].mxu0
        %2446 = vmatprep.mubr.bf16.mxu0 0
        %2447 = vmatmul.mubr.bf16.gmra.mrb[0].mxu0 %v2348
        %v2448 = vpop.f32.mrb[0].mxu0
        %v2449 = vpop.f32.mrb[0].mxu0
        %v2450 = vpop.f32.mrb[0].mxu0
        %v2451 = vadd.f32 0.0, %v2450
        %v2452 = vpop.f32.mrb[0].mxu0
        %2453 = vmatprep.mubr.bf16.mxu0 0
        %2454 = vmatmul.mubr.bf16.gmra.mrb[0].mxu0 %v2351
        %v2455 = vpop.f32.mrb[0].mxu0
        %v2456 = vadd.f32 0.0, %v2455
        %v2457 = vpop.f32.mrb[0].mxu0
        %v2458 = vpop.f32.mrb[0].mxu0
        %v2459 = vpop.f32.mrb[0].mxu0
        %2460 = vmatprep.mubr.bf16.mxu0 0
        %2461 = vmatmul.mubr.bf16.gmra.mrb[0].mxu0 %v2354
        %v2462 = vpop.f32.mrb[0].mxu0
        %v2463 = vadd.f32 0.0, %v2462
        %v2464 = vpop.f32.mrb[0].mxu0
        %v2465 = vpop.f32.mrb[0].mxu0
        %v2466 = vadd.f32 0.0, %v2465
        %v2467 = vpop.f32.mrb[0].mxu0
        %2468 = vmatprep.mubr.bf16.mxu0 0
        %2469 = vmatmul.mubr.bf16.gmra.mrb[0].mxu0 %v2357
        %v2470 = vpop.f32.mrb[0].mxu0
        %v2471 = vpop.f32.mrb[0].mxu0
        %v2472 = vpop.f32.mrb[0].mxu0
        %v2473 = vadd.f32 0.0, %v2472
        %v2474 = vpop.f32.mrb[0].mxu0
        %2475 = vmatprep.mubr.bf16.mxu0 0
        %2476 = vmatmul.mubr.bf16.gmra.mrb[0].mxu0 %v2360
        %v2477 = vpop.f32.mrb[0].mxu0
        %v2478 = vadd.f32 0.0, %v2477
        %v2479 = vpop.f32.mrb[0].mxu0
        %v2480 = vpop.f32.mrb[0].mxu0
        %v2481 = vpop.f32.mrb[0].mxu0
        %2482 = vdwg.mxu0
        %v2483 = vadd.f32 %v2281, %v2397
        %v2484 = vadd.f32 %v2282, %v2400
        %v2485 = vadd.f32 %v2283, %v2407
        %v2486 = vadd.f32 %v2284, %v2412
        %v2487 = vadd.f32 %v2285, %v2419
        %v2488 = vadd.f32 %v2286, %v2422
        %v2489 = vadd.f32 %v2287, %v2429
        %v2490 = vadd.f32 %v2288, %v2434
        %v2491 = vadd.f32 %v2289, %v2441
        %v2492 = vadd.f32 %v2290, %v2444
        %v2493 = vadd.f32 %v2291, %v2451
        %v2494 = vadd.f32 %v2292, %v2456
        %v2495 = vadd.f32 %v2293, %v2463
        %v2496 = vadd.f32 %v2294, %v2466
        %v2497 = vadd.f32 %v2295, %v2473
        %v2498 = vadd.f32 %v2296, %v2478
        %s2499 = scalar_lea.vmem %s9, 64
        %v2500 = vld [vmem:[%s2499] sm:$0xf]
        %v2501 = vld [vmem:[%s2499 + $0x4] sm:$0xf]
        %v2502 = vld [vmem:[%s2499 + $0x8] sm:$0xf]
        %v2503 = vld [vmem:[%s2499 + $0xc] sm:$0xf]
        %v2504 = vpack.c.b16 %v1627, %v1627
        %v2505 = vshrl.u32 %v2302, 16
        %v2507 = vshll.u32 %v2302, 16
        %v2509 = vrot.slane %v2507, 1
        %v2510 = vor.u32 %v2505, %v2509
        %v2511 = vshll.u32 %v2303, 16
        %v2513 = vrot.slane %v2511, 1
        %v2514 = vsel %vm1653, %v2510, %v2513
        %v2515 = vshrl.u32 %v2303, 16
        %v2517 = vor.u32 %v2515, %v2513
        %v2518 = vshll.u32 %v2304, 16
        %v2520 = vrot.slane %v2518, 1
        %v2521 = vsel %vm1653, %v2517, %v2520
        %v2522 = vshrl.u32 %v2304, 16
        %v2524 = vor.u32 %v2522, %v2520
        %v2525 = vshll.u32 %v2305, 16
        %v2527 = vrot.slane %v2525, 1
        %v2528 = vsel %vm1653, %v2524, %v2527
        %v2529 = vshrl.u32 %v2305, 16
        %v2531 = vor.u32 %v2529, %v2527
        %v2532 = vshll.u32 %v2306, 16
        %v2534 = vrot.slane %v2532, 1
        %v2535 = vsel %vm1653, %v2531, %v2534
        %v2536 = vshrl.u32 %v2306, 16
        %v2538 = vor.u32 %v2536, %v2534
        %v2539 = vshll.u32 %v2307, 16
        %v2541 = vrot.slane %v2539, 1
        %v2542 = vsel %vm1653, %v2538, %v2541
        %v2543 = vshrl.u32 %v2307, 16
        %v2545 = vor.u32 %v2543, %v2541
        %v2546 = vshll.u32 %v2308, 16
        %v2548 = vrot.slane %v2546, 1
        %v2549 = vsel %vm1653, %v2545, %v2548
        %v2550 = vshrl.u32 %v2308, 16
        %v2552 = vor.u32 %v2550, %v2548
        %v2553 = vshll.u32 %v2309, 16
        %v2555 = vrot.slane %v2553, 1
        %v2556 = vsel %vm1653, %v2552, %v2555
        %v2557 = vshrl.u32 %v2309, 16
        %v2559 = vor.u32 %v2557, %v2555
        %v2560 = vshll.u32 %v2310, 16
        %v2562 = vrot.slane %v2560, 1
        %v2563 = vsel %vm1653, %v2559, %v2562
        %v2564 = vshrl.u32 %v2310, 16
        %v2566 = vor.u32 %v2564, %v2562
        %v2567 = vshll.u32 %v2311, 16
        %v2569 = vrot.slane %v2567, 1
        %v2570 = vsel %vm1653, %v2566, %v2569
        %v2571 = vshrl.u32 %v2311, 16
        %v2573 = vor.u32 %v2571, %v2569
        %v2574 = vshll.u32 %v2312, 16
        %v2576 = vrot.slane %v2574, 1
        %v2577 = vsel %vm1653, %v2573, %v2576
        %v2578 = vshrl.u32 %v2312, 16
        %v2580 = vor.u32 %v2578, %v2576
        %v2581 = vshll.u32 %v2313, 16
        %v2583 = vrot.slane %v2581, 1
        %v2584 = vsel %vm1653, %v2580, %v2583
        %v2585 = vshrl.u32 %v2313, 16
        %v2587 = vor.u32 %v2585, %v2583
        %v2589 = vshll.u32 %v2504, 16
        %v2591 = vrot.slane %v2589, 1
        %v2592 = vsel %vm1653, %v2587, %v2591
        %v2597 = vunpack.c.l.b16 %v2500
        %v2598 = vunpack.c.l.b16 %v2501
        %v2599 = vunpack.c.l.b16 %v2502
        %v2600 = vunpack.c.l.b16 %v2503
        %v2601 = vpack.c.b16 %v2598, %v2597
        %v2602 = vpack.c.b16 %v2600, %v2599
        %v2606 = vsel %vm1766, %v2514, 0
        %v2609 = vsel %vm1766, %v2521, 0
        %v2612 = vsel %vm1766, %v2528, 0
        %v2615 = vsel %vm1766, %v2535, 0
        %v2618 = vsel %vm1766, %v2542, 0
        %v2621 = vsel %vm1766, %v2549, 0
        %v2624 = vsel %vm1766, %v2556, 0
        %v2627 = vsel %vm1766, %v2563, 0
        %v2630 = vsel %vm1766, %v2570, 0
        %v2633 = vsel %vm1766, %v2577, 0
        %v2636 = vsel %vm1766, %v2584, 0
        %v2639 = vsel %vm1766, %v2592, 0
        %2641 = vmatprep.subr.bf16.mxu0 0
        %2642 = vmatpush1.bf16.msra.mxu0 %v2601
        %2643 = vmatprep.subr.bf16.mxu0 0
        %2644 = vmatpush1.bf16.msra.mxu0 %v2602
        %2645 = vmatprep.subr.bf16.mxu0 0
        %2646 = vmatpush1.bf16.msra.mxu0 0
        %2647 = vmatprep.subr.bf16.mxu0 0
        %2648 = vmatpush1.bf16.msra.mxu0 0
        %2649 = vmatprep.subr.bf16.mxu0 0
        %2650 = vmatpush1.bf16.msra.mxu0 0
        %2651 = vmatprep.subr.bf16.mxu0 0
        %2652 = vmatpush1.bf16.msra.mxu0 0
        %2653 = vmatprep.subr.bf16.mxu0 0
        %2654 = vmatpush1.bf16.msra.mxu0 0
        %2655 = vmatprep.subr.bf16.mxu0 0
        %2656 = vmatpush1.bf16.msra.mxu0 0
        %2657 = vmatprep.subr.bf16.mxu0 0
        %2658 = vmatpush1.bf16.msra.mxu0 0
        %2659 = vmatprep.subr.bf16.mxu0 0
        %2660 = vmatpush1.bf16.msra.mxu0 0
        %2661 = vmatprep.subr.bf16.mxu0 0
        %2662 = vmatpush1.bf16.msra.mxu0 0
        %2663 = vmatprep.subr.bf16.mxu0 0
        %2664 = vmatpush1.bf16.msra.mxu0 0
        %2665 = vmatprep.subr.bf16.mxu0 0
        %2666 = vmatpush1.bf16.msra.mxu0 0
        %2667 = vmatprep.subr.bf16.mxu0 0
        %2668 = vmatpush1.bf16.msra.mxu0 0
        %2669 = vmatprep.subr.bf16.mxu0 0
        %2670 = vmatpush1.bf16.msra.mxu0 0
        %2671 = vmatprep.subr.bf16.mxu0 0
        %2672 = vmatpush1.bf16.msra.mxu0 0
        %2673 = vmatprep.mubr.bf16.mxu0 0
        %2674 = vmatmul.mubr.bf16.gmra.mrb[0].mxu0 %v2606
        %v2675 = vpop.f32.mrb[0].mxu0
        %v2676 = vadd.f32 0.0, %v2675
        %v2677 = vpop.f32.mrb[0].mxu0
        %v2678 = vpop.f32.mrb[0].mxu0
        %v2679 = vadd.f32 0.0, %v2678
        %v2680 = vpop.f32.mrb[0].mxu0
        %2681 = vmatprep.mubr.bf16.mxu0 0
        %2682 = vmatmul.mubr.bf16.gmra.mrb[0].mxu0 %v2609
        %v2683 = vpop.f32.mrb[0].mxu0
        %v2684 = vpop.f32.mrb[0].mxu0
        %v2685 = vpop.f32.mrb[0].mxu0
        %v2686 = vadd.f32 0.0, %v2685
        %v2687 = vpop.f32.mrb[0].mxu0
        %2688 = vmatprep.mubr.bf16.mxu0 0
        %2689 = vmatmul.mubr.bf16.gmra.mrb[0].mxu0 %v2612
        %v2690 = vpop.f32.mrb[0].mxu0
        %v2691 = vadd.f32 0.0, %v2690
        %v2692 = vpop.f32.mrb[0].mxu0
        %v2693 = vpop.f32.mrb[0].mxu0
        %v2694 = vpop.f32.mrb[0].mxu0
        %2695 = vmatprep.mubr.bf16.mxu0 0
        %2696 = vmatmul.mubr.bf16.gmra.mrb[0].mxu0 %v2615
        %v2697 = vpop.f32.mrb[0].mxu0
        %v2698 = vadd.f32 0.0, %v2697
        %v2699 = vpop.f32.mrb[0].mxu0
        %v2700 = vpop.f32.mrb[0].mxu0
        %v2701 = vadd.f32 0.0, %v2700
        %v2702 = vpop.f32.mrb[0].mxu0
        %2703 = vmatprep.mubr.bf16.mxu0 0
        %2704 = vmatmul.mubr.bf16.gmra.mrb[0].mxu0 %v2618
        %v2705 = vpop.f32.mrb[0].mxu0
        %v2706 = vpop.f32.mrb[0].mxu0
        %v2707 = vpop.f32.mrb[0].mxu0
        %v2708 = vadd.f32 0.0, %v2707
        %v2709 = vpop.f32.mrb[0].mxu0
        %2710 = vmatprep.mubr.bf16.mxu0 0
        %2711 = vmatmul.mubr.bf16.gmra.mrb[0].mxu0 %v2621
        %v2712 = vpop.f32.mrb[0].mxu0
        %v2713 = vadd.f32 0.0, %v2712
        %v2714 = vpop.f32.mrb[0].mxu0
        %v2715 = vpop.f32.mrb[0].mxu0
        %v2716 = vpop.f32.mrb[0].mxu0
        %2717 = vmatprep.mubr.bf16.mxu0 0
        %2718 = vmatmul.mubr.bf16.gmra.mrb[0].mxu0 %v2624
        %v2719 = vpop.f32.mrb[0].mxu0
        %v2720 = vadd.f32 0.0, %v2719
        %v2721 = vpop.f32.mrb[0].mxu0
        %v2722 = vpop.f32.mrb[0].mxu0
        %v2723 = vadd.f32 0.0, %v2722
        %v2724 = vpop.f32.mrb[0].mxu0
        %2725 = vmatprep.mubr.bf16.mxu0 0
        %2726 = vmatmul.mubr.bf16.gmra.mrb[0].mxu0 %v2627
        %v2727 = vpop.f32.mrb[0].mxu0
        %v2728 = vpop.f32.mrb[0].mxu0
        %v2729 = vpop.f32.mrb[0].mxu0
        %v2730 = vadd.f32 0.0, %v2729
        %v2731 = vpop.f32.mrb[0].mxu0
        %2732 = vmatprep.mubr.bf16.mxu0 0
        %2733 = vmatmul.mubr.bf16.gmra.mrb[0].mxu0 %v2630
        %v2734 = vpop.f32.mrb[0].mxu0
        %v2735 = vadd.f32 0.0, %v2734
        %v2736 = vpop.f32.mrb[0].mxu0
        %v2737 = vpop.f32.mrb[0].mxu0
        %v2738 = vpop.f32.mrb[0].mxu0
        %2739 = vmatprep.mubr.bf16.mxu0 0
        %2740 = vmatmul.mubr.bf16.gmra.mrb[0].mxu0 %v2633
        %v2741 = vpop.f32.mrb[0].mxu0
        %v2742 = vadd.f32 0.0, %v2741
        %v2743 = vpop.f32.mrb[0].mxu0
        %v2744 = vpop.f32.mrb[0].mxu0
        %v2745 = vadd.f32 0.0, %v2744
        %v2746 = vpop.f32.mrb[0].mxu0
        %2747 = vmatprep.mubr.bf16.mxu0 0
        %2748 = vmatmul.mubr.bf16.gmra.mrb[0].mxu0 %v2636
        %v2749 = vpop.f32.mrb[0].mxu0
        %v2750 = vpop.f32.mrb[0].mxu0
        %v2751 = vpop.f32.mrb[0].mxu0
        %v2752 = vadd.f32 0.0, %v2751
        %v2753 = vpop.f32.mrb[0].mxu0
        %2754 = vmatprep.mubr.bf16.mxu0 0
        %2755 = vmatmul.mubr.bf16.gmra.mrb[0].mxu0 %v2639
        %v2756 = vpop.f32.mrb[0].mxu0
        %v2757 = vadd.f32 0.0, %v2756
        %v2758 = vpop.f32.mrb[0].mxu0
        %v2759 = vpop.f32.mrb[0].mxu0
        %v2760 = vpop.f32.mrb[0].mxu0
        %2761 = vdwg.mxu0
        %v2762 = vadd.f32 %v2483, %v2676
        %v2763 = vadd.f32 %v2484, %v2679
        %v2764 = vadd.f32 %v2485, %v2686
        %v2765 = vadd.f32 %v2486, %v2691
        %v2766 = vadd.f32 %v2487, %v2698
        %v2767 = vadd.f32 %v2488, %v2701
        %v2768 = vadd.f32 %v2489, %v2708
        %v2769 = vadd.f32 %v2490, %v2713
        %v2770 = vadd.f32 %v2491, %v2720
        %v2771 = vadd.f32 %v2492, %v2723
        %v2772 = vadd.f32 %v2493, %v2730
        %v2773 = vadd.f32 %v2494, %v2735
        %v2774 = vadd.f32 %v2495, %v2742
        %v2775 = vadd.f32 %v2496, %v2745
        %v2776 = vadd.f32 %v2497, %v2752
        %v2777 = vadd.f32 %v2498, %v2757
        %s2778 = scalar_lea.vmem %s9, 80
        %v2779 = vld [vmem:[%s2778] sm:$0xf]
        %v2780 = vld [vmem:[%s2778 + $0x4] sm:$0xf]
        %v2781 = vld [vmem:[%s2778 + $0x8] sm:$0xf]
        %v2782 = vld [vmem:[%s2778 + $0xc] sm:$0xf]
        %v2783 = vrot.slane %v2302, 1
        %v2784 = vrot.slane %v2303, 1
        %v2785 = vsel %vm2086, %v2783, %v2784
        %v2786 = vrot.slane %v2304, 1
        %v2787 = vsel %vm2086, %v2784, %v2786
        %v2788 = vrot.slane %v2305, 1
        %v2789 = vsel %vm2086, %v2786, %v2788
        %v2790 = vrot.slane %v2306, 1
        %v2791 = vsel %vm2086, %v2788, %v2790
        %v2792 = vrot.slane %v2307, 1
        %v2793 = vsel %vm2086, %v2790, %v2792
        %v2794 = vrot.slane %v2308, 1
        %v2795 = vsel %vm2086, %v2792, %v2794
        %v2796 = vrot.slane %v2309, 1
        %v2797 = vsel %vm2086, %v2794, %v2796
        %v2798 = vrot.slane %v2310, 1
        %v2799 = vsel %vm2086, %v2796, %v2798
        %v2800 = vrot.slane %v2311, 1
        %v2801 = vsel %vm2086, %v2798, %v2800
        %v2802 = vrot.slane %v2312, 1
        %v2803 = vsel %vm2086, %v2800, %v2802
        %v2804 = vrot.slane %v2313, 1
        %v2805 = vsel %vm2086, %v2802, %v2804
        %v2806 = vrot.slane %v2504, 1
        %v2807 = vsel %vm2086, %v2804, %v2806
        %v2812 = vunpack.c.l.b16 %v2779
        %v2813 = vunpack.c.l.b16 %v2780
        %v2814 = vunpack.c.l.b16 %v2781
        %v2815 = vunpack.c.l.b16 %v2782
        %v2816 = vpack.c.b16 %v2813, %v2812
        %v2817 = vpack.c.b16 %v2815, %v2814
        %v2821 = vsel %vm1766, %v2785, 0
        %v2824 = vsel %vm1766, %v2787, 0
        %v2827 = vsel %vm1766, %v2789, 0
        %v2830 = vsel %vm1766, %v2791, 0
        %v2833 = vsel %vm1766, %v2793, 0
        %v2836 = vsel %vm1766, %v2795, 0
        %v2839 = vsel %vm1766, %v2797, 0
        %v2842 = vsel %vm1766, %v2799, 0
        %v2845 = vsel %vm1766, %v2801, 0
        %v2848 = vsel %vm1766, %v2803, 0
        %v2851 = vsel %vm1766, %v2805, 0
        %v2854 = vsel %vm1766, %v2807, 0
        %2856 = vmatprep.subr.bf16.mxu0 0
        %2857 = vmatpush1.bf16.msra.mxu0 %v2816
        %2858 = vmatprep.subr.bf16.mxu0 0
        %2859 = vmatpush1.bf16.msra.mxu0 %v2817
        %2860 = vmatprep.subr.bf16.mxu0 0
        %2861 = vmatpush1.bf16.msra.mxu0 0
        %2862 = vmatprep.subr.bf16.mxu0 0
        %2863 = vmatpush1.bf16.msra.mxu0 0
        %2864 = vmatprep.subr.bf16.mxu0 0
        %2865 = vmatpush1.bf16.msra.mxu0 0
        %2866 = vmatprep.subr.bf16.mxu0 0
        %2867 = vmatpush1.bf16.msra.mxu0 0
        %2868 = vmatprep.subr.bf16.mxu0 0
        %2869 = vmatpush1.bf16.msra.mxu0 0
        %2870 = vmatprep.subr.bf16.mxu0 0
        %2871 = vmatpush1.bf16.msra.mxu0 0
        %2872 = vmatprep.subr.bf16.mxu0 0
        %2873 = vmatpush1.bf16.msra.mxu0 0
        %2874 = vmatprep.subr.bf16.mxu0 0
        %2875 = vmatpush1.bf16.msra.mxu0 0
        %2876 = vmatprep.subr.bf16.mxu0 0
        %2877 = vmatpush1.bf16.msra.mxu0 0
        %2878 = vmatprep.subr.bf16.mxu0 0
        %2879 = vmatpush1.bf16.msra.mxu0 0
        %2880 = vmatprep.subr.bf16.mxu0 0
        %2881 = vmatpush1.bf16.msra.mxu0 0
        %2882 = vmatprep.subr.bf16.mxu0 0
        %2883 = vmatpush1.bf16.msra.mxu0 0
        %2884 = vmatprep.subr.bf16.mxu0 0
        %2885 = vmatpush1.bf16.msra.mxu0 0
        %2886 = vmatprep.subr.bf16.mxu0 0
        %2887 = vmatpush1.bf16.msra.mxu0 0
        %2888 = vmatprep.mubr.bf16.mxu0 0
        %2889 = vmatmul.mubr.bf16.gmra.mrb[0].mxu0 %v2821
        %v2890 = vpop.f32.mrb[0].mxu0
        %v2891 = vadd.f32 0.0, %v2890
        %v2892 = vpop.f32.mrb[0].mxu0
        %v2893 = vpop.f32.mrb[0].mxu0
        %v2894 = vadd.f32 0.0, %v2893
        %v2895 = vpop.f32.mrb[0].mxu0
        %2896 = vmatprep.mubr.bf16.mxu0 0
        %2897 = vmatmul.mubr.bf16.gmra.mrb[0].mxu0 %v2824
        %v2898 = vpop.f32.mrb[0].mxu0
        %v2899 = vpop.f32.mrb[0].mxu0
        %v2900 = vpop.f32.mrb[0].mxu0
        %v2901 = vadd.f32 0.0, %v2900
        %v2902 = vpop.f32.mrb[0].mxu0
        %2903 = vmatprep.mubr.bf16.mxu0 0
        %2904 = vmatmul.mubr.bf16.gmra.mrb[0].mxu0 %v2827
        %v2905 = vpop.f32.mrb[0].mxu0
        %v2906 = vadd.f32 0.0, %v2905
        %v2907 = vpop.f32.mrb[0].mxu0
        %v2908 = vpop.f32.mrb[0].mxu0
        %v2909 = vpop.f32.mrb[0].mxu0
        %2910 = vmatprep.mubr.bf16.mxu0 0
        %2911 = vmatmul.mubr.bf16.gmra.mrb[0].mxu0 %v2830
        %v2912 = vpop.f32.mrb[0].mxu0
        %v2913 = vadd.f32 0.0, %v2912
        %v2914 = vpop.f32.mrb[0].mxu0
        %v2915 = vpop.f32.mrb[0].mxu0
        %v2916 = vadd.f32 0.0, %v2915
        %v2917 = vpop.f32.mrb[0].mxu0
        %2918 = vmatprep.mubr.bf16.mxu0 0
        %2919 = vmatmul.mubr.bf16.gmra.mrb[0].mxu0 %v2833
        %v2920 = vpop.f32.mrb[0].mxu0
        %v2921 = vpop.f32.mrb[0].mxu0
        %v2922 = vpop.f32.mrb[0].mxu0
        %v2923 = vadd.f32 0.0, %v2922
        %v2924 = vpop.f32.mrb[0].mxu0
        %2925 = vmatprep.mubr.bf16.mxu0 0
        %2926 = vmatmul.mubr.bf16.gmra.mrb[0].mxu0 %v2836
        %v2927 = vpop.f32.mrb[0].mxu0
        %v2928 = vadd.f32 0.0, %v2927
        %v2929 = vpop.f32.mrb[0].mxu0
        %v2930 = vpop.f32.mrb[0].mxu0
        %v2931 = vpop.f32.mrb[0].mxu0
        %2932 = vmatprep.mubr.bf16.mxu0 0
        %2933 = vmatmul.mubr.bf16.gmra.mrb[0].mxu0 %v2839
        %v2934 = vpop.f32.mrb[0].mxu0
        %v2935 = vadd.f32 0.0, %v2934
        %v2936 = vpop.f32.mrb[0].mxu0
        %v2937 = vpop.f32.mrb[0].mxu0
        %v2938 = vadd.f32 0.0, %v2937
        %v2939 = vpop.f32.mrb[0].mxu0
        %2940 = vmatprep.mubr.bf16.mxu0 0
        %2941 = vmatmul.mubr.bf16.gmra.mrb[0].mxu0 %v2842
        %v2942 = vpop.f32.mrb[0].mxu0
        %v2943 = vpop.f32.mrb[0].mxu0
        %v2944 = vpop.f32.mrb[0].mxu0
        %v2945 = vadd.f32 0.0, %v2944
        %v2946 = vpop.f32.mrb[0].mxu0
        %2947 = vmatprep.mubr.bf16.mxu0 0
        %2948 = vmatmul.mubr.bf16.gmra.mrb[0].mxu0 %v2845
        %v2949 = vpop.f32.mrb[0].mxu0
        %v2950 = vadd.f32 0.0, %v2949
        %v2951 = vpop.f32.mrb[0].mxu0
        %v2952 = vpop.f32.mrb[0].mxu0
        %v2953 = vpop.f32.mrb[0].mxu0
        %2954 = vmatprep.mubr.bf16.mxu0 0
        %2955 = vmatmul.mubr.bf16.gmra.mrb[0].mxu0 %v2848
        %v2956 = vpop.f32.mrb[0].mxu0
        %v2957 = vadd.f32 0.0, %v2956
        %v2958 = vpop.f32.mrb[0].mxu0
        %v2959 = vpop.f32.mrb[0].mxu0
        %v2960 = vadd.f32 0.0, %v2959
        %v2961 = vpop.f32.mrb[0].mxu0
        %2962 = vmatprep.mubr.bf16.mxu0 0
        %2963 = vmatmul.mubr.bf16.gmra.mrb[0].mxu0 %v2851
        %v2964 = vpop.f32.mrb[0].mxu0
        %v2965 = vpop.f32.mrb[0].mxu0
        %v2966 = vpop.f32.mrb[0].mxu0
        %v2967 = vadd.f32 0.0, %v2966
        %v2968 = vpop.f32.mrb[0].mxu0
        %2969 = vmatprep.mubr.bf16.mxu0 0
        %2970 = vmatmul.mubr.bf16.gmra.mrb[0].mxu0 %v2854
        %v2971 = vpop.f32.mrb[0].mxu0
        %v2972 = vadd.f32 0.0, %v2971
        %v2973 = vpop.f32.mrb[0].mxu0
        %v2974 = vpop.f32.mrb[0].mxu0
        %v2975 = vpop.f32.mrb[0].mxu0
        %2976 = vdwg.mxu0
        %v2977 = vadd.f32 %v2762, %v2891
        %v2978 = vadd.f32 %v2763, %v2894
        %v2979 = vadd.f32 %v2764, %v2901
        %v2980 = vadd.f32 %v2765, %v2906
        %v2981 = vadd.f32 %v2766, %v2913
        %v2982 = vadd.f32 %v2767, %v2916
        %v2983 = vadd.f32 %v2768, %v2923
        %v2984 = vadd.f32 %v2769, %v2928
        %v2985 = vadd.f32 %v2770, %v2935
        %v2986 = vadd.f32 %v2771, %v2938
        %v2987 = vadd.f32 %v2772, %v2945
        %v2988 = vadd.f32 %v2773, %v2950
        %v2989 = vadd.f32 %v2774, %v2957
        %v2990 = vadd.f32 %v2775, %v2960
        %v2991 = vadd.f32 %v2776, %v2967
        %v2992 = vadd.f32 %v2777, %v2972
        %s2993 = scalar_lea.vmem %s9, 96
        %v2994 = vld [vmem:[%s2993] sm:$0xf]
        %v2995 = vld [vmem:[%s2993 + $0x4] sm:$0xf]
        %v2996 = vld [vmem:[%s2993 + $0x8] sm:$0xf]
        %v2997 = vld [vmem:[%s2993 + $0xc] sm:$0xf]
        %v2998 = vpack.c.b16 %v1625, %v1624
        %v2999 = vpack.c.b16 %v1627, %v1626
        %v3000 = vpack.c.b16 %v1629, %v1628
        %v3005 = vunpack.c.l.b16 %v2994
        %v3006 = vunpack.c.l.b16 %v2995
        %v3007 = vunpack.c.l.b16 %v2996
        %v3008 = vunpack.c.l.b16 %v2997
        %v3009 = vpack.c.b16 %v3006, %v3005
        %v3010 = vpack.c.b16 %v3008, %v3007
        %v3014 = vsel %vm1766, %v2998, 0
        %v3017 = vsel %vm1766, %v2999, 0
        %v3020 = vsel %vm1766, %v3000, 0
        %3022 = vmatprep.subr.bf16.mxu0 0
        %3023 = vmatpush1.bf16.msra.mxu0 %v3009
        %3024 = vmatprep.subr.bf16.mxu0 0
        %3025 = vmatpush1.bf16.msra.mxu0 %v3010
        %3026 = vmatprep.subr.bf16.mxu0 0
        %3027 = vmatpush1.bf16.msra.mxu0 0
        %3028 = vmatprep.subr.bf16.mxu0 0
        %3029 = vmatpush1.bf16.msra.mxu0 0
        %3030 = vmatprep.subr.bf16.mxu0 0
        %3031 = vmatpush1.bf16.msra.mxu0 0
        %3032 = vmatprep.subr.bf16.mxu0 0
        %3033 = vmatpush1.bf16.msra.mxu0 0
        %3034 = vmatprep.subr.bf16.mxu0 0
        %3035 = vmatpush1.bf16.msra.mxu0 0
        %3036 = vmatprep.subr.bf16.mxu0 0
        %3037 = vmatpush1.bf16.msra.mxu0 0
        %3038 = vmatprep.subr.bf16.mxu0 0
        %3039 = vmatpush1.bf16.msra.mxu0 0
        %3040 = vmatprep.subr.bf16.mxu0 0
        %3041 = vmatpush1.bf16.msra.mxu0 0
        %3042 = vmatprep.subr.bf16.mxu0 0
        %3043 = vmatpush1.bf16.msra.mxu0 0
        %3044 = vmatprep.subr.bf16.mxu0 0
        %3045 = vmatpush1.bf16.msra.mxu0 0
        %3046 = vmatprep.subr.bf16.mxu0 0
        %3047 = vmatpush1.bf16.msra.mxu0 0
        %3048 = vmatprep.subr.bf16.mxu0 0
        %3049 = vmatpush1.bf16.msra.mxu0 0
        %3050 = vmatprep.subr.bf16.mxu0 0
        %3051 = vmatpush1.bf16.msra.mxu0 0
        %3052 = vmatprep.subr.bf16.mxu0 0
        %3053 = vmatpush1.bf16.msra.mxu0 0
        %3054 = vmatprep.mubr.bf16.mxu0 0
        %3055 = vmatmul.mubr.bf16.gmra.mrb[0].mxu0 %v1942
        %v3056 = vpop.f32.mrb[0].mxu0
        %v3057 = vadd.f32 0.0, %v3056
        %v3058 = vpop.f32.mrb[0].mxu0
        %v3059 = vpop.f32.mrb[0].mxu0
        %v3060 = vadd.f32 0.0, %v3059
        %v3061 = vpop.f32.mrb[0].mxu0
        %3062 = vmatprep.mubr.bf16.mxu0 0
        %3063 = vmatmul.mubr.bf16.gmra.mrb[0].mxu0 %v1944
        %v3064 = vpop.f32.mrb[0].mxu0
        %v3065 = vpop.f32.mrb[0].mxu0
        %v3066 = vpop.f32.mrb[0].mxu0
        %v3067 = vadd.f32 0.0, %v3066
        %v3068 = vpop.f32.mrb[0].mxu0
        %3069 = vmatprep.mubr.bf16.mxu0 0
        %3070 = vmatmul.mubr.bf16.gmra.mrb[0].mxu0 %v1946
        %v3071 = vpop.f32.mrb[0].mxu0
        %v3072 = vadd.f32 0.0, %v3071
        %v3073 = vpop.f32.mrb[0].mxu0
        %v3074 = vpop.f32.mrb[0].mxu0
        %v3075 = vpop.f32.mrb[0].mxu0
        %3076 = vmatprep.mubr.bf16.mxu0 0
        %3077 = vmatmul.mubr.bf16.gmra.mrb[0].mxu0 %v1948
        %v3078 = vpop.f32.mrb[0].mxu0
        %v3079 = vadd.f32 0.0, %v3078
        %v3080 = vpop.f32.mrb[0].mxu0
        %v3081 = vpop.f32.mrb[0].mxu0
        %v3082 = vadd.f32 0.0, %v3081
        %v3083 = vpop.f32.mrb[0].mxu0
        %3084 = vmatprep.mubr.bf16.mxu0 0
        %3085 = vmatmul.mubr.bf16.gmra.mrb[0].mxu0 %v1950
        %v3086 = vpop.f32.mrb[0].mxu0
        %v3087 = vpop.f32.mrb[0].mxu0
        %v3088 = vpop.f32.mrb[0].mxu0
        %v3089 = vadd.f32 0.0, %v3088
        %v3090 = vpop.f32.mrb[0].mxu0
        %3091 = vmatprep.mubr.bf16.mxu0 0
        %3092 = vmatmul.mubr.bf16.gmra.mrb[0].mxu0 %v1952
        %v3093 = vpop.f32.mrb[0].mxu0
        %v3094 = vadd.f32 0.0, %v3093
        %v3095 = vpop.f32.mrb[0].mxu0
        %v3096 = vpop.f32.mrb[0].mxu0
        %v3097 = vpop.f32.mrb[0].mxu0
        %3098 = vmatprep.mubr.bf16.mxu0 0
        %3099 = vmatmul.mubr.bf16.gmra.mrb[0].mxu0 %v1954
        %v3100 = vpop.f32.mrb[0].mxu0
        %v3101 = vadd.f32 0.0, %v3100
        %v3102 = vpop.f32.mrb[0].mxu0
        %v3103 = vpop.f32.mrb[0].mxu0
        %v3104 = vadd.f32 0.0, %v3103
        %v3105 = vpop.f32.mrb[0].mxu0
        %3106 = vmatprep.mubr.bf16.mxu0 0
        %3107 = vmatmul.mubr.bf16.gmra.mrb[0].mxu0 %v1956
        %v3108 = vpop.f32.mrb[0].mxu0
        %v3109 = vpop.f32.mrb[0].mxu0
        %v3110 = vpop.f32.mrb[0].mxu0
        %v3111 = vadd.f32 0.0, %v3110
        %v3112 = vpop.f32.mrb[0].mxu0
        %3113 = vmatprep.mubr.bf16.mxu0 0
        %3114 = vmatmul.mubr.bf16.gmra.mrb[0].mxu0 %v1958
        %v3115 = vpop.f32.mrb[0].mxu0
        %v3116 = vadd.f32 0.0, %v3115
        %v3117 = vpop.f32.mrb[0].mxu0
        %v3118 = vpop.f32.mrb[0].mxu0
        %v3119 = vpop.f32.mrb[0].mxu0
        %3120 = vmatprep.mubr.bf16.mxu0 0
        %3121 = vmatmul.mubr.bf16.gmra.mrb[0].mxu0 %v3014
        %v3122 = vpop.f32.mrb[0].mxu0
        %v3123 = vadd.f32 0.0, %v3122
        %v3124 = vpop.f32.mrb[0].mxu0
        %v3125 = vpop.f32.mrb[0].mxu0
        %v3126 = vadd.f32 0.0, %v3125
        %v3127 = vpop.f32.mrb[0].mxu0
        %3128 = vmatprep.mubr.bf16.mxu0 0
        %3129 = vmatmul.mubr.bf16.gmra.mrb[0].mxu0 %v3017
        %v3130 = vpop.f32.mrb[0].mxu0
        %v3131 = vpop.f32.mrb[0].mxu0
        %v3132 = vpop.f32.mrb[0].mxu0
        %v3133 = vadd.f32 0.0, %v3132
        %v3134 = vpop.f32.mrb[0].mxu0
        %3135 = vmatprep.mubr.bf16.mxu0 0
        %3136 = vmatmul.mubr.bf16.gmra.mrb[0].mxu0 %v3020
        %v3137 = vpop.f32.mrb[0].mxu0
        %v3138 = vadd.f32 0.0, %v3137
        %v3139 = vpop.f32.mrb[0].mxu0
        %v3140 = vpop.f32.mrb[0].mxu0
        %v3141 = vpop.f32.mrb[0].mxu0
        %3142 = vdwg.mxu0
        %v3143 = vadd.f32 %v2977, %v3057
        %v3144 = vadd.f32 %v2978, %v3060
        %v3145 = vadd.f32 %v2979, %v3067
        %v3146 = vadd.f32 %v2980, %v3072
        %v3147 = vadd.f32 %v2981, %v3079
        %v3148 = vadd.f32 %v2982, %v3082
        %v3149 = vadd.f32 %v2983, %v3089
        %v3150 = vadd.f32 %v2984, %v3094
        %v3151 = vadd.f32 %v2985, %v3101
        %v3152 = vadd.f32 %v2986, %v3104
        %v3153 = vadd.f32 %v2987, %v3111
        %v3154 = vadd.f32 %v2988, %v3116
        %v3155 = vadd.f32 %v2989, %v3123
        %v3156 = vadd.f32 %v2990, %v3126
        %v3157 = vadd.f32 %v2991, %v3133
        %v3158 = vadd.f32 %v2992, %v3138
        %s3159 = scalar_lea.vmem %s9, 112
        %v3160 = vld [vmem:[%s3159] sm:$0xf]
        %v3161 = vld [vmem:[%s3159 + $0x4] sm:$0xf]
        %v3162 = vld [vmem:[%s3159 + $0x8] sm:$0xf]
        %v3163 = vld [vmem:[%s3159 + $0xc] sm:$0xf]
        %v3164 = vpack.c.b16 %v1630, %v1630
        %v3165 = vshll.u32 %v2998, 16
        %v3167 = vrot.slane %v3165, 1
        %v3168 = vsel %vm1653, %v1748, %v3167
        %v3169 = vshrl.u32 %v2998, 16
        %v3171 = vor.u32 %v3169, %v3167
        %v3172 = vshll.u32 %v2999, 16
        %v3174 = vrot.slane %v3172, 1
        %v3175 = vsel %vm1653, %v3171, %v3174
        %v3176 = vshrl.u32 %v2999, 16
        %v3178 = vor.u32 %v3176, %v3174
        %v3179 = vshll.u32 %v3000, 16
        %v3181 = vrot.slane %v3179, 1
        %v3182 = vsel %vm1653, %v3178, %v3181
        %v3183 = vshrl.u32 %v3000, 16
        %v3185 = vor.u32 %v3183, %v3181
        %v3187 = vshll.u32 %v3164, 16
        %v3189 = vrot.slane %v3187, 1
        %v3190 = vsel %vm1653, %v3185, %v3189
        %v3195 = vunpack.c.l.b16 %v3160
        %v3196 = vunpack.c.l.b16 %v3161
        %v3197 = vunpack.c.l.b16 %v3162
        %v3198 = vunpack.c.l.b16 %v3163
        %v3199 = vpack.c.b16 %v3196, %v3195
        %v3200 = vpack.c.b16 %v3198, %v3197
        %v3204 = vsel %vm1766, %v3168, 0
        %v3207 = vsel %vm1766, %v3175, 0
        %v3210 = vsel %vm1766, %v3182, 0
        %v3213 = vsel %vm1766, %v3190, 0
        %3215 = vmatprep.subr.bf16.mxu0 0
        %3216 = vmatpush1.bf16.msra.mxu0 %v3199
        %3217 = vmatprep.subr.bf16.mxu0 0
        %3218 = vmatpush1.bf16.msra.mxu0 %v3200
        %3219 = vmatprep.subr.bf16.mxu0 0
        %3220 = vmatpush1.bf16.msra.mxu0 0
        %3221 = vmatprep.subr.bf16.mxu0 0
        %3222 = vmatpush1.bf16.msra.mxu0 0
        %3223 = vmatprep.subr.bf16.mxu0 0
        %3224 = vmatpush1.bf16.msra.mxu0 0
        %3225 = vmatprep.subr.bf16.mxu0 0
        %3226 = vmatpush1.bf16.msra.mxu0 0
        %3227 = vmatprep.subr.bf16.mxu0 0
        %3228 = vmatpush1.bf16.msra.mxu0 0
        %3229 = vmatprep.subr.bf16.mxu0 0
        %3230 = vmatpush1.bf16.msra.mxu0 0
        %3231 = vmatprep.subr.bf16.mxu0 0
        %3232 = vmatpush1.bf16.msra.mxu0 0
        %3233 = vmatprep.subr.bf16.mxu0 0
        %3234 = vmatpush1.bf16.msra.mxu0 0
        %3235 = vmatprep.subr.bf16.mxu0 0
        %3236 = vmatpush1.bf16.msra.mxu0 0
        %3237 = vmatprep.subr.bf16.mxu0 0
        %3238 = vmatpush1.bf16.msra.mxu0 0
        %3239 = vmatprep.subr.bf16.mxu0 0
        %3240 = vmatpush1.bf16.msra.mxu0 0
        %3241 = vmatprep.subr.bf16.mxu0 0
        %3242 = vmatpush1.bf16.msra.mxu0 0
        %3243 = vmatprep.subr.bf16.mxu0 0
        %3244 = vmatpush1.bf16.msra.mxu0 0
        %3245 = vmatprep.subr.bf16.mxu0 0
        %3246 = vmatpush1.bf16.msra.mxu0 0
        %3247 = vmatprep.mubr.bf16.mxu0 0
        %3248 = vmatmul.mubr.bf16.gmra.mrb[0].mxu0 %v1777
        %v3249 = vpop.f32.mrb[0].mxu0
        %v3250 = vadd.f32 0.0, %v3249
        %v3251 = vpop.f32.mrb[0].mxu0
        %v3252 = vpop.f32.mrb[0].mxu0
        %v3253 = vadd.f32 0.0, %v3252
        %v3254 = vpop.f32.mrb[0].mxu0
        %3255 = vmatprep.mubr.bf16.mxu0 0
        %3256 = vmatmul.mubr.bf16.gmra.mrb[0].mxu0 %v1780
        %v3257 = vpop.f32.mrb[0].mxu0
        %v3258 = vpop.f32.mrb[0].mxu0
        %v3259 = vpop.f32.mrb[0].mxu0
        %v3260 = vadd.f32 0.0, %v3259
        %v3261 = vpop.f32.mrb[0].mxu0
        %3262 = vmatprep.mubr.bf16.mxu0 0
        %3263 = vmatmul.mubr.bf16.gmra.mrb[0].mxu0 %v1783
        %v3264 = vpop.f32.mrb[0].mxu0
        %v3265 = vadd.f32 0.0, %v3264
        %v3266 = vpop.f32.mrb[0].mxu0
        %v3267 = vpop.f32.mrb[0].mxu0
        %v3268 = vpop.f32.mrb[0].mxu0
        %3269 = vmatprep.mubr.bf16.mxu0 0
        %3270 = vmatmul.mubr.bf16.gmra.mrb[0].mxu0 %v1786
        %v3271 = vpop.f32.mrb[0].mxu0
        %v3272 = vadd.f32 0.0, %v3271
        %v3273 = vpop.f32.mrb[0].mxu0
        %v3274 = vpop.f32.mrb[0].mxu0
        %v3275 = vadd.f32 0.0, %v3274
        %v3276 = vpop.f32.mrb[0].mxu0
        %3277 = vmatprep.mubr.bf16.mxu0 0
        %3278 = vmatmul.mubr.bf16.gmra.mrb[0].mxu0 %v1789
        %v3279 = vpop.f32.mrb[0].mxu0
        %v3280 = vpop.f32.mrb[0].mxu0
        %v3281 = vpop.f32.mrb[0].mxu0
        %v3282 = vadd.f32 0.0, %v3281
        %v3283 = vpop.f32.mrb[0].mxu0
        %3284 = vmatprep.mubr.bf16.mxu0 0
        %3285 = vmatmul.mubr.bf16.gmra.mrb[0].mxu0 %v1792
        %v3286 = vpop.f32.mrb[0].mxu0
        %v3287 = vadd.f32 0.0, %v3286
        %v3288 = vpop.f32.mrb[0].mxu0
        %v3289 = vpop.f32.mrb[0].mxu0
        %v3290 = vpop.f32.mrb[0].mxu0
        %3291 = vmatprep.mubr.bf16.mxu0 0
        %3292 = vmatmul.mubr.bf16.gmra.mrb[0].mxu0 %v1795
        %v3293 = vpop.f32.mrb[0].mxu0
        %v3294 = vadd.f32 0.0, %v3293
        %v3295 = vpop.f32.mrb[0].mxu0
        %v3296 = vpop.f32.mrb[0].mxu0
        %v3297 = vadd.f32 0.0, %v3296
        %v3298 = vpop.f32.mrb[0].mxu0
        %3299 = vmatprep.mubr.bf16.mxu0 0
        %3300 = vmatmul.mubr.bf16.gmra.mrb[0].mxu0 %v1798
        %v3301 = vpop.f32.mrb[0].mxu0
        %v3302 = vpop.f32.mrb[0].mxu0
        %v3303 = vpop.f32.mrb[0].mxu0
        %v3304 = vadd.f32 0.0, %v3303
        %v3305 = vpop.f32.mrb[0].mxu0
        %3306 = vmatprep.mubr.bf16.mxu0 0
        %3307 = vmatmul.mubr.bf16.gmra.mrb[0].mxu0 %v3204
        %v3308 = vpop.f32.mrb[0].mxu0
        %v3309 = vadd.f32 0.0, %v3308
        %v3310 = vpop.f32.mrb[0].mxu0
        %v3311 = vpop.f32.mrb[0].mxu0
        %v3312 = vpop.f32.mrb[0].mxu0
        %3313 = vmatprep.mubr.bf16.mxu0 0
        %3314 = vmatmul.mubr.bf16.gmra.mrb[0].mxu0 %v3207
        %v3315 = vpop.f32.mrb[0].mxu0
        %v3316 = vadd.f32 0.0, %v3315
        %v3317 = vpop.f32.mrb[0].mxu0
        %v3318 = vpop.f32.mrb[0].mxu0
        %v3319 = vadd.f32 0.0, %v3318
        %v3320 = vpop.f32.mrb[0].mxu0
        %3321 = vmatprep.mubr.bf16.mxu0 0
        %3322 = vmatmul.mubr.bf16.gmra.mrb[0].mxu0 %v3210
        %v3323 = vpop.f32.mrb[0].mxu0
        %v3324 = vpop.f32.mrb[0].mxu0
        %v3325 = vpop.f32.mrb[0].mxu0
        %v3326 = vadd.f32 0.0, %v3325
        %v3327 = vpop.f32.mrb[0].mxu0
        %3328 = vmatprep.mubr.bf16.mxu0 0
        %3329 = vmatmul.mubr.bf16.gmra.mrb[0].mxu0 %v3213
        %v3330 = vpop.f32.mrb[0].mxu0
        %v3331 = vadd.f32 0.0, %v3330
        %v3332 = vpop.f32.mrb[0].mxu0
        %v3333 = vpop.f32.mrb[0].mxu0
        %v3334 = vpop.f32.mrb[0].mxu0
        %3335 = vdwg.mxu0
        %v3336 = vadd.f32 %v3143, %v3250
        %v3337 = vadd.f32 %v3144, %v3253
        %v3338 = vadd.f32 %v3145, %v3260
        %v3339 = vadd.f32 %v3146, %v3265
        %v3340 = vadd.f32 %v3147, %v3272
        %v3341 = vadd.f32 %v3148, %v3275
        %v3342 = vadd.f32 %v3149, %v3282
        %v3343 = vadd.f32 %v3150, %v3287
        %v3344 = vadd.f32 %v3151, %v3294
        %v3345 = vadd.f32 %v3152, %v3297
        %v3346 = vadd.f32 %v3153, %v3304
        %v3347 = vadd.f32 %v3154, %v3309
        %v3348 = vadd.f32 %v3155, %v3316
        %v3349 = vadd.f32 %v3156, %v3319
        %v3350 = vadd.f32 %v3157, %v3326
        %v3351 = vadd.f32 %v3158, %v3331
        %s3352 = scalar_lea.vmem %s9, 128
        %v3353 = vld [vmem:[%s3352] sm:$0xf]
        %v3354 = vld [vmem:[%s3352 + $0x4] sm:$0xf]
        %v3355 = vld [vmem:[%s3352 + $0x8] sm:$0xf]
        %v3356 = vld [vmem:[%s3352 + $0xc] sm:$0xf]
        %v3357 = vrot.slane %v2998, 1
        %v3358 = vsel %vm2086, %v2108, %v3357
        %v3359 = vrot.slane %v2999, 1
        %v3360 = vsel %vm2086, %v3357, %v3359
        %v3361 = vrot.slane %v3000, 1
        %v3362 = vsel %vm2086, %v3359, %v3361
        %v3363 = vrot.slane %v3164, 1
        %v3364 = vsel %vm2086, %v3361, %v3363
        %v3369 = vunpack.c.l.b16 %v3353
        %v3370 = vunpack.c.l.b16 %v3354
        %v3371 = vunpack.c.l.b16 %v3355
        %v3372 = vunpack.c.l.b16 %v3356
        %v3373 = vpack.c.b16 %v3370, %v3369
        %v3374 = vpack.c.b16 %v3372, %v3371
        %v3378 = vsel %vm1766, %v3358, 0
        %v3381 = vsel %vm1766, %v3360, 0
        %v3384 = vsel %vm1766, %v3362, 0
        %v3387 = vsel %vm1766, %v3364, 0
        %3389 = vmatprep.subr.bf16.mxu0 0
        %3390 = vmatpush1.bf16.msra.mxu0 %v3373
        %3391 = vmatprep.subr.bf16.mxu0 0
        %3392 = vmatpush1.bf16.msra.mxu0 %v3374
        %3393 = vmatprep.subr.bf16.mxu0 0
        %3394 = vmatpush1.bf16.msra.mxu0 0
        %3395 = vmatprep.subr.bf16.mxu0 0
        %3396 = vmatpush1.bf16.msra.mxu0 0
        %3397 = vmatprep.subr.bf16.mxu0 0
        %3398 = vmatpush1.bf16.msra.mxu0 0
        %3399 = vmatprep.subr.bf16.mxu0 0
        %3400 = vmatpush1.bf16.msra.mxu0 0
        %3401 = vmatprep.subr.bf16.mxu0 0
        %3402 = vmatpush1.bf16.msra.mxu0 0
        %3403 = vmatprep.subr.bf16.mxu0 0
        %3404 = vmatpush1.bf16.msra.mxu0 0
        %3405 = vmatprep.subr.bf16.mxu0 0
        %3406 = vmatpush1.bf16.msra.mxu0 0
        %3407 = vmatprep.subr.bf16.mxu0 0
        %3408 = vmatpush1.bf16.msra.mxu0 0
        %3409 = vmatprep.subr.bf16.mxu0 0
        %3410 = vmatpush1.bf16.msra.mxu0 0
        %3411 = vmatprep.subr.bf16.mxu0 0
        %3412 = vmatpush1.bf16.msra.mxu0 0
        %3413 = vmatprep.subr.bf16.mxu0 0
        %3414 = vmatpush1.bf16.msra.mxu0 0
        %3415 = vmatprep.subr.bf16.mxu0 0
        %3416 = vmatpush1.bf16.msra.mxu0 0
        %3417 = vmatprep.subr.bf16.mxu0 0
        %3418 = vmatpush1.bf16.msra.mxu0 0
        %3419 = vmatprep.subr.bf16.mxu0 0
        %3420 = vmatpush1.bf16.msra.mxu0 0
        %3421 = vmatprep.mubr.bf16.mxu0 0
        %3422 = vmatmul.mubr.bf16.gmra.mrb[0].mxu0 %v2134
        %v3423 = vpop.f32.mrb[0].mxu0
        %v3424 = vadd.f32 0.0, %v3423
        %v3425 = vpop.f32.mrb[0].mxu0
        %v3426 = vpop.f32.mrb[0].mxu0
        %v3427 = vadd.f32 0.0, %v3426
        %v3428 = vpop.f32.mrb[0].mxu0
        %3429 = vmatprep.mubr.bf16.mxu0 0
        %3430 = vmatmul.mubr.bf16.gmra.mrb[0].mxu0 %v2137
        %v3431 = vpop.f32.mrb[0].mxu0
        %v3432 = vpop.f32.mrb[0].mxu0
        %v3433 = vpop.f32.mrb[0].mxu0
        %v3434 = vadd.f32 0.0, %v3433
        %v3435 = vpop.f32.mrb[0].mxu0
        %3436 = vmatprep.mubr.bf16.mxu0 0
        %3437 = vmatmul.mubr.bf16.gmra.mrb[0].mxu0 %v2140
        %v3438 = vpop.f32.mrb[0].mxu0
        %v3439 = vadd.f32 0.0, %v3438
        %v3440 = vpop.f32.mrb[0].mxu0
        %v3441 = vpop.f32.mrb[0].mxu0
        %v3442 = vpop.f32.mrb[0].mxu0
        %3443 = vmatprep.mubr.bf16.mxu0 0
        %3444 = vmatmul.mubr.bf16.gmra.mrb[0].mxu0 %v2143
        %v3445 = vpop.f32.mrb[0].mxu0
        %v3446 = vadd.f32 0.0, %v3445
        %v3447 = vpop.f32.mrb[0].mxu0
        %v3448 = vpop.f32.mrb[0].mxu0
        %v3449 = vadd.f32 0.0, %v3448
        %v3450 = vpop.f32.mrb[0].mxu0
        %3451 = vmatprep.mubr.bf16.mxu0 0
        %3452 = vmatmul.mubr.bf16.gmra.mrb[0].mxu0 %v2146
        %v3453 = vpop.f32.mrb[0].mxu0
        %v3454 = vpop.f32.mrb[0].mxu0
        %v3455 = vpop.f32.mrb[0].mxu0
        %v3456 = vadd.f32 0.0, %v3455
        %v3457 = vpop.f32.mrb[0].mxu0
        %3458 = vmatprep.mubr.bf16.mxu0 0
        %3459 = vmatmul.mubr.bf16.gmra.mrb[0].mxu0 %v2149
        %v3460 = vpop.f32.mrb[0].mxu0
        %v3461 = vadd.f32 0.0, %v3460
        %v3462 = vpop.f32.mrb[0].mxu0
        %v3463 = vpop.f32.mrb[0].mxu0
        %v3464 = vpop.f32.mrb[0].mxu0
        %3465 = vmatprep.mubr.bf16.mxu0 0
        %3466 = vmatmul.mubr.bf16.gmra.mrb[0].mxu0 %v2152
        %v3467 = vpop.f32.mrb[0].mxu0
        %v3468 = vadd.f32 0.0, %v3467
        %v3469 = vpop.f32.mrb[0].mxu0
        %v3470 = vpop.f32.mrb[0].mxu0
        %v3471 = vadd.f32 0.0, %v3470
        %v3472 = vpop.f32.mrb[0].mxu0
        %3473 = vmatprep.mubr.bf16.mxu0 0
        %3474 = vmatmul.mubr.bf16.gmra.mrb[0].mxu0 %v2155
        %v3475 = vpop.f32.mrb[0].mxu0
        %v3476 = vpop.f32.mrb[0].mxu0
        %v3477 = vpop.f32.mrb[0].mxu0
        %v3478 = vadd.f32 0.0, %v3477
        %v3479 = vpop.f32.mrb[0].mxu0
        %3480 = vmatprep.mubr.bf16.mxu0 0
        %3481 = vmatmul.mubr.bf16.gmra.mrb[0].mxu0 %v3378
        %v3482 = vpop.f32.mrb[0].mxu0
        %v3483 = vadd.f32 0.0, %v3482
        %v3484 = vpop.f32.mrb[0].mxu0
        %v3485 = vpop.f32.mrb[0].mxu0
        %v3486 = vpop.f32.mrb[0].mxu0
        %3487 = vmatprep.mubr.bf16.mxu0 0
        %3488 = vmatmul.mubr.bf16.gmra.mrb[0].mxu0 %v3381
        %v3489 = vpop.f32.mrb[0].mxu0
        %v3490 = vadd.f32 0.0, %v3489
        %v3491 = vpop.f32.mrb[0].mxu0
        %v3492 = vpop.f32.mrb[0].mxu0
        %v3493 = vadd.f32 0.0, %v3492
        %v3494 = vpop.f32.mrb[0].mxu0
        %3495 = vmatprep.mubr.bf16.mxu0 0
        %3496 = vmatmul.mubr.bf16.gmra.mrb[0].mxu0 %v3384
        %v3497 = vpop.f32.mrb[0].mxu0
        %v3498 = vpop.f32.mrb[0].mxu0
        %v3499 = vpop.f32.mrb[0].mxu0
        %v3500 = vadd.f32 0.0, %v3499
        %v3501 = vpop.f32.mrb[0].mxu0
        %3502 = vmatprep.mubr.bf16.mxu0 0
        %3503 = vmatmul.mubr.bf16.gmra.mrb[0].mxu0 %v3387
        %v3504 = vpop.f32.mrb[0].mxu0
        %v3505 = vadd.f32 0.0, %v3504
        %v3506 = vpop.f32.mrb[0].mxu0
        %v3507 = vpop.f32.mrb[0].mxu0
        %v3508 = vpop.f32.mrb[0].mxu0
        %3509 = vdwg.mxu0
        %v3510 = vadd.f32 %v3336, %v3424
        %v3511 = vadd.f32 %v3337, %v3427
        %v3512 = vadd.f32 %v3338, %v3434
        %v3513 = vadd.f32 %v3339, %v3439
        %v3514 = vadd.f32 %v3340, %v3446
        %v3515 = vadd.f32 %v3341, %v3449
        %v3516 = vadd.f32 %v3342, %v3456
        %v3517 = vadd.f32 %v3343, %v3461
        %v3518 = vadd.f32 %v3344, %v3468
        %v3519 = vadd.f32 %v3345, %v3471
        %v3520 = vadd.f32 %v3346, %v3478
        %v3521 = vadd.f32 %v3347, %v3483
        %v3522 = vadd.f32 %v3348, %v3490
        %v3523 = vadd.f32 %v3349, %v3493
        %v3524 = vadd.f32 %v3350, %v3500
        %v3525 = vadd.f32 %v3351, %v3505
        %v3526 = vld [vmem:[%s10] sm:$0x1]
        %v3528 = vlaneseq
        %v3529 = vshrl.u32 %v3528, 7
        %v3530 = vsub.s32 0, %v3529
        %v3531 = vrot.slane %v3526, %v3530
        %v3533 = vmul.f32 %v3510, %v3531
        %v3534 = vmul.f32 %v3511, %v3531
        %v3535 = vmul.f32 %v3512, %v3531
        %v3536 = vmul.f32 %v3513, %v3531
        %v3537 = vmul.f32 %v3514, %v3531
        %v3538 = vmul.f32 %v3515, %v3531
        %v3539 = vmul.f32 %v3516, %v3531
        %v3540 = vmul.f32 %v3517, %v3531
        %v3541 = vmul.f32 %v3518, %v3531
        %v3542 = vmul.f32 %v3519, %v3531
        %v3543 = vmul.f32 %v3520, %v3531
        %v3544 = vmul.f32 %v3521, %v3531
        %v3545 = vmul.f32 %v3522, %v3531
        %v3546 = vmul.f32 %v3523, %v3531
        %v3547 = vmul.f32 %v3524, %v3531
        %v3548 = vmul.f32 %v3525, %v3531
        %v3549 = vld [vmem:[%s11] sm:$0x1]
        %v3551 = vlaneseq
        %v3552 = vshrl.u32 %v3551, 7
        %v3553 = vsub.s32 0, %v3552
        %v3554 = vrot.slane %v3549, %v3553
        %v3556 = vadd.f32 %v3533, %v3554
        %v3557 = vadd.f32 %v3534, %v3554
        %v3558 = vadd.f32 %v3535, %v3554
        %v3559 = vadd.f32 %v3536, %v3554
        %v3560 = vadd.f32 %v3537, %v3554
        %v3561 = vadd.f32 %v3538, %v3554
        %v3562 = vadd.f32 %v3539, %v3554
        %v3563 = vadd.f32 %v3540, %v3554
        %v3564 = vadd.f32 %v3541, %v3554
        %v3565 = vadd.f32 %v3542, %v3554
        %v3566 = vadd.f32 %v3543, %v3554
        %v3567 = vadd.f32 %v3544, %v3554
        %v3568 = vadd.f32 %v3545, %v3554
        %v3569 = vadd.f32 %v3546, %v3554
        %v3570 = vadd.f32 %v3547, %v3554
        %v3571 = vadd.f32 %v3548, %v3554
        %v3572 = vmax.f32 %v3556, 0.0
        %v3573 = vmax.f32 %v3557, 0.0
        %v3574 = vmax.f32 %v3558, 0.0
        %v3575 = vmax.f32 %v3559, 0.0
        %v3576 = vmax.f32 %v3560, 0.0
        %v3577 = vmax.f32 %v3561, 0.0
        %v3578 = vmax.f32 %v3562, 0.0
        %v3579 = vmax.f32 %v3563, 0.0
        %v3580 = vmax.f32 %v3564, 0.0
        %v3581 = vmax.f32 %v3565, 0.0
        %v3582 = vmax.f32 %v3566, 0.0
        %v3583 = vmax.f32 %v3567, 0.0
        %v3584 = vmax.f32 %v3568, 0.0
        %v3585 = vmax.f32 %v3569, 0.0
        %v3586 = vmax.f32 %v3570, 0.0
        %v3587 = vmax.f32 %v3571, 0.0
        %v3588 = vpack.c.bf16 %v3573, %v3572
        %v3589 = vpack.c.bf16 %v3575, %v3574
        %v3590 = vpack.c.bf16 %v3577, %v3576
        %v3591 = vpack.c.bf16 %v3579, %v3578
        %v3592 = vpack.c.bf16 %v3581, %v3580
        %v3593 = vpack.c.bf16 %v3583, %v3582
        %v3594 = vpack.c.bf16 %v3585, %v3584
        %v3595 = vpack.c.bf16 %v3587, %v3586
        %v3604 = vunpack.c.l.b16 %v3588
        %v3605 = vunpack.c.h.b16 %v3588
        %v3606 = vunpack.c.l.b16 %v3589
        %v3607 = vunpack.c.h.b16 %v3589
        %v3608 = vunpack.c.l.b16 %v3590
        %v3609 = vunpack.c.h.b16 %v3590
        %v3610 = vunpack.c.l.b16 %v3591
        %v3611 = vunpack.c.h.b16 %v3591
        %v3612 = vunpack.c.l.b16 %v3592
        %v3613 = vunpack.c.h.b16 %v3592
        %v3614 = vunpack.c.l.b16 %v3593
        %v3615 = vunpack.c.h.b16 %v3593
        %v3616 = vunpack.c.l.b16 %v3594
        %v3617 = vunpack.c.h.b16 %v3594
        %v3618 = vunpack.c.l.b16 %v3595
        %v3619 = vunpack.c.h.b16 %v3595
        %v3620 = vpack.c.b16 %v3604, %v3604
        %v3621 = vpack.c.b16 %v3605, %v3605
        %v3622 = vpack.c.b16 %v3606, %v3606
        %v3623 = vpack.c.b16 %v3607, %v3607
        %v3624 = vpack.c.b16 %v3608, %v3608
        %v3625 = vpack.c.b16 %v3609, %v3609
        %v3626 = vpack.c.b16 %v3610, %v3610
        %v3627 = vpack.c.b16 %v3611, %v3611
        %v3628 = vpack.c.b16 %v3612, %v3612
        %v3629 = vpack.c.b16 %v3613, %v3613
        %v3630 = vpack.c.b16 %v3614, %v3614
        %v3631 = vpack.c.b16 %v3615, %v3615
        %v3632 = vpack.c.b16 %v3616, %v3616
        %v3633 = vpack.c.b16 %v3617, %v3617
        %v3634 = vpack.c.b16 %v3618, %v3618
        %v3635 = vpack.c.b16 %v3619, %v3619
        %vm3652 = vcmask 257024
        %3653 = vst.msk [vmem:[%s641] sm:$0xf] %vm3652, %v3620
        %3654 = vst.msk [vmem:[%s641 + $0x4] sm:$0xf] %vm3652, %v3621
        %3655 = vst.msk [vmem:[%s641 + $0x8] sm:$0xf] %vm3652, %v3622
        %3656 = vst.msk [vmem:[%s641 + $0xc] sm:$0xf] %vm3652, %v3623
        %3657 = vst.msk [vmem:[%s641 + $0x10] sm:$0xf] %vm3652, %v3624
        %3658 = vst.msk [vmem:[%s641 + $0x14] sm:$0xf] %vm3652, %v3625
        %3659 = vst.msk [vmem:[%s641 + $0x18] sm:$0xf] %vm3652, %v3626
        %3660 = vst.msk [vmem:[%s641 + $0x1c] sm:$0xf] %vm3652, %v3627
        %3661 = vst.msk [vmem:[%s641 + $0x20] sm:$0xf] %vm3652, %v3628
        %3662 = vst.msk [vmem:[%s641 + $0x24] sm:$0xf] %vm3652, %v3629
        %3663 = vst.msk [vmem:[%s641 + $0x28] sm:$0xf] %vm3652, %v3630
        %3664 = vst.msk [vmem:[%s641 + $0x2c] sm:$0xf] %vm3652, %v3631
        %3665 = vst.msk [vmem:[%s641 + $0x30] sm:$0xf] %vm3652, %v3632
        %3666 = vst.msk [vmem:[%s641 + $0x34] sm:$0xf] %vm3652, %v3633
        %3667 = vst.msk [vmem:[%s641 + $0x38] sm:$0xf] %vm3652, %v3634
        %3668 = vst.msk [vmem:[%s641 + $0x3c] sm:$0xf] %vm3652, %v3635
        %s3669 = sand.u32 %s374, 1
        %s3670 = scalar_lea.sflag [#allocation3], %s3669
        %s3671 = sand.u32 %s374, 1
        %s3672 = smul.addr %s3671, 64
        %s3673 = scalar_lea.vmem [#allocation2], %s3672
        // Predicated region
        $region69: #{_topdown_forward.1} parent=67 // pred_check
          %p3674 = pneg %p384
        $region70: #{_topdown_forward.1} parent=67 // pred_check_branch
          %3676 = sbr.rel (%p3674) target = $region72
        $region71: #{_topdown_forward.1} parent=67 // pred_region
          %s3677 = smul.u32 8, %s31
          %s3679 = ssub.s32 1024, 1024
          %3680 = vsyncadd %s3670, %s3679
          %s3681 = smul.addr %s3677, 2
          %s3682 = smul.addr %s30, 32
          %s3683 = sadd.s32 %s3681, %s3682
          %s3684 = smul.addr %s3683, 64
          %s3685 = scalar_lea.hbm %s12, %s3684
          %s3686 = sshll.u32 %s3673, 4
          %s3687 = int_to_ptr.vmem [resolvable:$true] %s3686
          %3692 = dma.vmem_to_hbm [thread:$0]  %s3687, 1024, %s3685, %s3670, 64, 64, 4
        $region72: #{_topdown_forward.1} parent=67 // pred_fallthru
          _
      $region68: #{_topdown_forward.1} parent=5 // pred_fallthru
        _
      %p3693 = scmp.le.s32.totalorder 2, %s21
      // Predicated region
      $region73: #{_topdown_forward.1} parent=5 // pred_check
        %p3694 = pneg %p3693
      $region74: #{_topdown_forward.1} parent=5 // pred_check_branch
        %3696 = sbr.rel (%p3694) target = $region76
      $region75: #{_topdown_forward.1} parent=5 // pred_region
        %s3697 = ssub.s32 %s21, 2
        // Predicated region
        $region77: #{_topdown_forward.1} parent=75 // pred_check
          %p3698 = pneg %p390
        $region78: #{_topdown_forward.1} parent=75 // pred_check_branch
          %3700 = sbr.rel (%p3698) target = $region80
        $region79: #{_topdown_forward.1} parent=75 // pred_region
          %s3701 = sand.u32 %s375, 1
          %s3702 = scalar_lea.sflag [#allocation3], %s3701
          %s3703 = sand.u32 %s375, 1
          %s3704 = smul.addr %s3703, 64
          %s3705 = scalar_lea.vmem [#allocation2], %s3704
          %3706 = dma.done %s3702, 1024
        $region80: #{_topdown_forward.1} parent=75 // pred_fallthru
          _
      $region76: #{_topdown_forward.1} parent=5 // pred_fallthru
        _
    $region6: #{_topdown_forward.1} parent=1 // loop_footer
      %s25 = sadd.s32 1, %s21
    $region7: #{_topdown_forward.1} parent=1 // loop_footer_branch
      %20 = sbr.rel target = $region3
    $region8: #{_topdown_forward.1} parent=1 // loop_exit
      _
    %3707 = vsyncpa [#allocation3], 1
    %s3708 = scalar_lea.sflag [#allocation3], 1
    %3709 = vsyncpa %s3708, 1

</llo_original>
